<compile_context>
chip_gen: v5e
topology: v5e:2x2
jax: 0.10.0
libtpu: 0.0.40
codegen_flags: <defaults>
</compile_context>

<pallas_src>
import functools

import jax
import jax.numpy as jnp
from jax import lax
from jax.experimental import pallas as pl
from jax.experimental.pallas import tpu as pltpu

PAD = 0


# ----------------------------------------------------------------------------
# In-kernel helpers (traced inside the fused kernel; values only, no scratch)
# ----------------------------------------------------------------------------
def _embed_tokens(ids, emb_table):
    """Exact embedding gather as a one-hot matmul (no dynamic indexing)."""
    n, l = ids.shape
    v, e = emb_table.shape
    iota_v = lax.broadcasted_iota(jnp.int32, (n, l, v), 2)
    onehot = jnp.where(ids[:, :, None] == iota_v, 1.0, 0.0)       # (n, l, v) f32
    return jnp.dot(onehot.reshape(n * l, v), emb_table,
                   preferred_element_type=jnp.float32)            # (n*l, e)


def _gather_rows(x, n, rows_in, rows_out, scale, offset):
    """Per-sample row gather with zero fill, as an exact 0/1 selection matmul.

    x holds n samples of `rows_in` rows each, stacked: x[(s, r)] = x[s*rows_in+r].
    Returns z with n samples of `rows_out` rows each where
      z[(s, i)] = x[(s, scale*i + offset)]  if 0 <= scale*i+offset < rows_in
                  0                          otherwise  (== zero padding).
    Used for conv tap shifts (scale=1, offset=k-pad) and max-pool row picks
    (scale=pool, offset=p). Only iota/compare/select/dot -> always lowers.
    """
    total_in = n * rows_in
    i0 = lax.broadcasted_iota(jnp.int32, (n, rows_out, total_in), 0)
    i1 = lax.broadcasted_iota(jnp.int32, (n, rows_out, total_in), 1)
    i2 = lax.broadcasted_iota(jnp.int32, (n, rows_out, total_in), 2)
    src = i1 * scale + offset
    hit = (i2 == i0 * rows_in + src) & (src >= 0) & (src < rows_in)
    sel = jnp.where(hit, 1.0, 0.0).reshape(n * rows_out, total_in)
    return jnp.dot(sel, x, preferred_element_type=jnp.float32)


def _conv_relu_pool(x, n, length, w_ref, b_ref, pool):
    """Conv1d(same, odd k) + bias + ReLU + MaxPool1d(pool) for n stacked rows.

    x: (n*length, cin) value; w_ref: (k, cin, cout) ref; b_ref: (1, cout) ref.
    Returns ((n * (length // pool), cout), length // pool).
    """
    k = w_ref.shape[0]
    pad = k // 2
    # Conv as k whole-batch tap matmuls; boundary padding is encoded in the
    # selection matrices (center tap needs no shift at all).
    y = None
    for kk in range(k):
        off = kk - pad
        xs = x if off == 0 else _gather_rows(x, n, length, length, 1, off)
        t = jnp.dot(xs, w_ref[kk], preferred_element_type=jnp.float32)
        y = t if y is None else y + t
    y = jnp.maximum(y + b_ref[...], 0.0)                          # (n*length, cout)

    # In-register max pool: pick rows pool*j + p per sample, combine with max.
    lp = length // pool
    pooled = _gather_rows(y, n, length, lp, pool, 0)
    for p in range(1, pool):
        pooled = jnp.maximum(pooled, _gather_rows(y, n, length, lp, pool, p))
    return pooled, lp


def _conv_tower(x, n, length, layers, pools):
    rep, l = x, length
    for (w_ref, b_ref), pool in zip(layers, pools):
        rep, l = _conv_relu_pool(rep, n, l, w_ref, b_ref, pool)
    return rep, l                                                 # (n*l, cout), l


def _tower_mlp(rep, n, l, w1_ref):
    """flatten(1) @ w1_block, with the flatten folded into per-position matmuls.

    rep: (n*l, c); w1_ref: (l*c, hid), rows already permuted to length-major.
    """
    c = rep.shape[-1]
    rep3 = rep.reshape(n, l, c)
    h = None
    for i in range(l):
        t = jnp.dot(rep3[:, i, :], w1_ref[i * c:(i + 1) * c, :],
                    preferred_element_type=jnp.float32)
        h = t if h is None else h + t
    return h                                                      # (n, hid)


# ----------------------------------------------------------------------------
# The single fused kernel
# ----------------------------------------------------------------------------
def arci_kernel(*refs, num_docs, pools, num_layers):
    q_ids_ref, d_ids_ref, emb_ref = refs[0], refs[1], refs[2]
    base = 3
    q_layers = [(refs[base + 2 * j], refs[base + 2 * j + 1]) for j in range(num_layers)]
    base += 2 * num_layers
    d_layers = [(refs[base + 2 * j], refs[base + 2 * j + 1]) for j in range(num_layers)]
    base += 2 * num_layers
    w1q_ref, w1d_ref, b1_ref, w2_ref, b2_ref, out_ref = refs[base:base + 6]

    b, lq = q_ids_ref.shape
    bd, ld = d_ids_ref.shape
    emb = emb_ref[...]

    # Query and doc towers (embedding gather + conv stacks), fully in-register.
    q_rep, lq2 = _conv_tower(_embed_tokens(q_ids_ref[...], emb), b, lq, q_layers, pools)
    d_rep, ld2 = _conv_tower(_embed_tokens(d_ids_ref[...], emb), bd, ld, d_layers, pools)

    # MLP: torch.cat([q, d], 1) @ w1 == q_flat @ w1[:fq] + d_flat @ w1[fq:].
    hq = _tower_mlp(q_rep, b, lq2, w1q_ref) + b1_ref[...]         # (b, hid)
    hd = _tower_mlp(d_rep, bd, ld2, w1d_ref)                      # (bd, hid)
    hid = hq.shape[-1]
    h = hd + jnp.broadcast_to(hq[:, None, :], (b, num_docs, hid)).reshape(bd, hid)
    out_ref[...] = (jnp.dot(h, w2_ref[...], preferred_element_type=jnp.float32)
                    + b2_ref[0])                                  # (bd, 1)


# ----------------------------------------------------------------------------
# Wrapper: one-time weight repack + the single pallas_call
# ----------------------------------------------------------------------------
def prepare_pallas_params(params, pools, max_query_len, max_doc_len):
    """One-time repack of PyTorch-layout params for the fused kernel."""
    c = params["q_conv"][-1][0].shape[-1]
    lq, ldd = max_query_len, max_doc_len
    for p in pools:
        lq //= p
        ldd //= p
    fq, fd = c * lq, c * ldd

    w1, b1, w2, b2 = params["mlp"]
    assert w1.shape[0] == fq + fd

    def to_length_major(block, l):
        # PyTorch flatten(1) of [N, C, L] is channel-major (row c*l + ll);
        # the kernel flattens length-major (row ll*c + c_idx): permute once.
        hid = block.shape[1]
        return block.reshape(c, l, hid).transpose(1, 0, 2).reshape(l * c, hid)

    def conv_prep(layers):
        return [(w, bias.reshape(1, -1)) for w, bias in layers]

    return dict(
        emb=params["emb"],
        q_conv=conv_prep(params["q_conv"]),
        d_conv=conv_prep(params["d_conv"]),
        w1q=to_length_major(w1[:fq], lq),
        w1d=to_length_major(w1[fq:], ldd),
        b1=b1.reshape(1, -1),
        w2=w2,
        b2=b2.reshape(1).astype(jnp.float32),
    )


def _full_block_spec(arr):
    zeros = (0,) * arr.ndim
    return pl.BlockSpec(arr.shape, lambda i: zeros)


def arci_forward_pallas(pparams, batch_queries, batch_docs, pools):
    b, lq = batch_queries.shape
    _, d, ldd = batch_docs.shape
    bd = b * d
    pools = tuple(int(p) for p in pools)

    q_ids = batch_queries.astype(jnp.int32)
    d_ids = batch_docs.reshape(bd, ldd).astype(jnp.int32)
    emb = pparams["emb"]
    v, e = emb.shape
    num_layers = len(pparams["q_conv"])
    hid = pparams["w2"].shape[0]

    # Kernel assumes same-padding odd conv kernels and pools that divide evenly
    # (true for the ARCI configuration used here).
    for length, layers in ((lq, pparams["q_conv"]), (ldd, pparams["d_conv"])):
        l = length
        for (w, _), p in zip(layers, pools):
            assert w.shape[0] % 2 == 1 and l % p == 0
            l //= p

    conv_inputs = []
    for w, bias in pparams["q_conv"] + pparams["d_conv"]:
        conv_inputs += [w, bias]
    inputs = [q_ids, d_ids, emb, *conv_inputs,
              pparams["w1q"], pparams["w1d"], pparams["b1"], pparams["w2"],
              pparams["b2"]]

    # Advisory cost hint for XLA scheduling around the single custom call.
    flops = 2 * (b * lq + bd * ldd) * v * e
    for nrows, length, layers in ((b, lq, pparams["q_conv"]),
                                  (bd, ldd, pparams["d_conv"])):
        l, cin = length, e
        for (w, _), p in zip(layers, pools):
            k, _, cout = w.shape
            rows = nrows * l
            flops += (k - 1) * 2 * rows * rows * cin          # boundary-masked shifts
            flops += k * 2 * rows * cin * cout                # conv tap matmuls
            flops += p * 2 * (nrows * (l // p)) * rows * cout  # max-pool row picks
            l, cin = l // p, cout
        flops += 2 * nrows * l * cin * hid                    # tower share of MLP-1
    flops += 2 * bd * hid
    bytes_accessed = sum(int(x.size) * x.dtype.itemsize for x in inputs) + bd * 4

    in_specs = [_full_block_spec(x) for x in inputs[:-1]]
    in_specs.append(pl.BlockSpec(memory_space=pltpu.MemorySpace.SMEM))  # scalar b2

    kernel = functools.partial(arci_kernel, num_docs=d, pools=pools,
                               num_layers=num_layers)
    scores = pl.pallas_call(
        kernel,
        out_shape=jax.ShapeDtypeStruct((bd, 1), jnp.float32),
        grid=(1,),
        in_specs=in_specs,
        out_specs=pl.BlockSpec((bd, 1), lambda i: (0, 0)),
        compiler_params=pltpu.CompilerParams(dimension_semantics=("arbitrary",)),
        cost_estimate=pl.CostEstimate(flops=int(flops), transcendentals=0,
                                      bytes_accessed=int(bytes_accessed)),
    )(*inputs)
    return scores[:, 0].reshape(b, d)


# ----------------------------------------------------------------------------
# Parameter init (deterministic, synthetic)
# ----------------------------------------------------------------------------
def init_params(key, emsize, vocab, filters_1d, kernel_size_1d, q_feats_final,
                d_feats_final):
    keys = jax.random.split(key, 16)
    ki = iter(keys)

    emb = 0.1 * jax.random.normal(next(ki), (vocab, emsize), jnp.float32)
    emb = emb.at[PAD].set(0.0)  # padding_idx row is zero

    def conv_stack():
        layers = []
        for i, (f, k) in enumerate(zip(filters_1d, kernel_size_1d)):
            cin = emsize if i == 0 else filters_1d[i - 1]
            w = 0.1 * jax.random.normal(next(ki), (k, cin, f), jnp.float32)  # WIO
            b = 0.05 * jax.random.normal(next(ki), (f,), jnp.float32)
            layers.append((w, b))
        return layers

    q_conv = conv_stack()
    d_conv = conv_stack()

    inpsize = filters_1d[-1] * q_feats_final + filters_1d[-1] * d_feats_final
    hid = inpsize // 2
    w1 = 0.1 * jax.random.normal(next(ki), (inpsize, hid), jnp.float32)
    b1 = 0.05 * jax.random.normal(next(ki), (hid,), jnp.float32)
    w2 = 0.1 * jax.random.normal(next(ki), (hid, 1), jnp.float32)
    b2 = 0.05 * jax.random.normal(next(ki), (1,), jnp.float32)

    return dict(emb=emb, q_conv=q_conv, d_conv=d_conv, mlp=(w1, b1, w2, b2))


# ----------------------------------------------------------------------------
# Pure-JAX reference (for the correctness check)
# ----------------------------------------------------------------------------
def conv_relu_pool_ref(x, w, b, pool):
    pad = w.shape[0] // 2
    y = lax.conv_general_dilated(
        x, w, window_strides=(1,), padding=[(pad, pad)],
        dimension_numbers=("NWC", "WIO", "NWC"),
        precision=lax.Precision.HIGHEST)
    y = jnp.maximum(y + b[None, None, :], 0.0)
    n, lout, c = y.shape
    lp = lout // pool
    return y[:, : lp * pool].reshape(n, lp, pool, c).max(axis=2)


def arci_forward_ref(params, batch_queries, batch_docs, pools):
    b, _ = batch_queries.shape
    _, d, ldd = batch_docs.shape
    emb = params["emb"]

    def tower(ids, layers):
        rep = emb[ids]
        for (w, bias), p in zip(layers, pools):
            rep = conv_relu_pool_ref(rep, w, bias, p)
        n = rep.shape[0]
        # PyTorch flatten(1) on [N, C, L'] is channel-major.
        return jnp.transpose(rep, (0, 2, 1)).reshape(n, -1)

    q = tower(batch_queries, params["q_conv"])
    dflat = tower(batch_docs.reshape(b * d, ldd), params["d_conv"])
    fq = q.shape[1]
    qrep = jnp.broadcast_to(q[:, None, :], (b, d, fq)).reshape(b * d, fq)
    com = jnp.concatenate([qrep, dflat], axis=1)
    w1, b1, w2, b2 = params["mlp"]
    score = (com @ w1 + b1[None, :]) @ w2 + b2[None, :]
    return score[:, 0].reshape(b, d)


# ----------------------------------------------------------------------------
if __name__ == "__main__":
    # Hyperparameters (args-equivalent).
    emsize = 32
    vocab = 100
    filters_1d = [16, 16]
    kernel_size_1d = [3, 3]
    maxpool_size_1d = [2, 2]
    max_query_len = 8
    max_doc_len = 16

    batch_size = 2
    num_docs = 3

    q_feats = max_query_len
    d_feats = max_doc_len
    for p in maxpool_size_1d:
        q_feats //= p
        d_feats //= p
    assert q_feats != 0 and d_feats != 0

    key = jax.random.PRNGKey(0)
    kparams, kq, kd = jax.random.split(key, 3)
    params = init_params(kparams, emsize, vocab, filters_1d, kernel_size_1d,
                         q_feats, d_feats)

    batch_queries = jax.random.randint(kq, (batch_size, max_query_len), 1, vocab,
                                       dtype=jnp.int32)
    batch_docs = jax.random.randint(kd, (batch_size, num_docs, max_doc_len), 1,
                                    vocab, dtype=jnp.int32)

    # One-time weight repack, then the single fused Pallas forward.
    pparams = prepare_pallas_params(params, maxpool_size_1d, max_query_len,
                                    max_doc_len)
    scores = arci_forward_pallas(pparams, batch_queries, batch_docs,
                                 maxpool_size_1d)
    scores = jax.block_until_ready(scores)
    assert scores.shape == (batch_size, num_docs)

    # Reference forward (pure JAX / XLA).
    scores_ref = jax.block_until_ready(
        arci_forward_ref(params, batch_queries, batch_docs, maxpool_size_1d))

    err = float(jnp.max(jnp.abs(scores - scores_ref)))
    assert err < 2e-3, f"mismatch: max|diff|={err}\n{scores}\nvs\n{scores_ref}"

    print("KERNEL_OK")
</pallas_src>

<mosaic_0001>
module attributes {stable_mosaic.version = 11 : i64} {
  func.func @arci_kernel(%arg0: i32, %arg1: memref<2x8xi32, #tpu.memory_space<vmem>>, %arg2: memref<6x16xi32, #tpu.memory_space<vmem>>, %arg3: memref<100x32xf32, #tpu.memory_space<vmem>>, %arg4: memref<3x32x16xf32, #tpu.memory_space<vmem>>, %arg5: memref<1x16xf32, #tpu.memory_space<vmem>>, %arg6: memref<3x16x16xf32, #tpu.memory_space<vmem>>, %arg7: memref<1x16xf32, #tpu.memory_space<vmem>>, %arg8: memref<3x32x16xf32, #tpu.memory_space<vmem>>, %arg9: memref<1x16xf32, #tpu.memory_space<vmem>>, %arg10: memref<3x16x16xf32, #tpu.memory_space<vmem>>, %arg11: memref<1x16xf32, #tpu.memory_space<vmem>>, %arg12: memref<32x48xf32, #tpu.memory_space<vmem>>, %arg13: memref<64x48xf32, #tpu.memory_space<vmem>>, %arg14: memref<1x48xf32, #tpu.memory_space<vmem>>, %arg15: memref<48x1xf32, #tpu.memory_space<vmem>>, %arg16: memref<1xf32, #tpu.memory_space<smem>>, %arg17: memref<6x1xf32, #tpu.memory_space<vmem>>) attributes {dimension_semantics = [#tpu.dimension_semantics<arbitrary>], iteration_bounds = array<i64: 1>, scalar_prefetch = 0 : i64, scratch_operands = 0 : i64, tpu.core_type = #tpu.core_type<tc>, window_params = [{pipeline_mode = #tpu.pipeline_mode<synchronous>, transform_indices = @transform_0, window_bounds = array<i64: 2, 8>}, {pipeline_mode = #tpu.pipeline_mode<synchronous>, transform_indices = @transform_1, window_bounds = array<i64: 6, 16>}, {pipeline_mode = #tpu.pipeline_mode<synchronous>, transform_indices = @transform_2, window_bounds = array<i64: 100, 32>}, {pipeline_mode = #tpu.pipeline_mode<synchronous>, transform_indices = @transform_3, window_bounds = array<i64: 3, 32, 16>}, {pipeline_mode = #tpu.pipeline_mode<synchronous>, transform_indices = @transform_4, window_bounds = array<i64: 1, 16>}, {pipeline_mode = #tpu.pipeline_mode<synchronous>, transform_indices = @transform_5, window_bounds = array<i64: 3, 16, 16>}, {pipeline_mode = #tpu.pipeline_mode<synchronous>, transform_indices = @transform_6, window_bounds = array<i64: 1, 16>}, {pipeline_mode = #tpu.pipeline_mode<synchronous>, transform_indices = @transform_7, window_bounds = array<i64: 3, 32, 16>}, {pipeline_mode = #tpu.pipeline_mode<synchronous>, transform_indices = @transform_8, window_bounds = array<i64: 1, 16>}, {pipeline_mode = #tpu.pipeline_mode<synchronous>, transform_indices = @transform_9, window_bounds = array<i64: 3, 16, 16>}, {pipeline_mode = #tpu.pipeline_mode<synchronous>, transform_indices = @transform_10, window_bounds = array<i64: 1, 16>}, {pipeline_mode = #tpu.pipeline_mode<synchronous>, transform_indices = @transform_11, window_bounds = array<i64: 32, 48>}, {pipeline_mode = #tpu.pipeline_mode<synchronous>, transform_indices = @transform_12, window_bounds = array<i64: 64, 48>}, {pipeline_mode = #tpu.pipeline_mode<synchronous>, transform_indices = @transform_13, window_bounds = array<i64: 1, 48>}, {pipeline_mode = #tpu.pipeline_mode<synchronous>, transform_indices = @transform_14, window_bounds = array<i64: 48, 1>}, {transform_indices = @transform_15, window_bounds = array<i64: 1>}, {pipeline_mode = #tpu.pipeline_mode<synchronous>, transform_indices = @transform_16, window_bounds = array<i64: 6, 1>}]} {
    %c0 = arith.constant 0 : index
    %c0_0 = arith.constant 0 : index
    %0 = vector.load %arg3[%c0, %c0_0] : memref<100x32xf32, #tpu.memory_space<vmem>>, vector<100x32xf32>
    %c0_1 = arith.constant 0 : index
    %c0_2 = arith.constant 0 : index
    %1 = vector.load %arg1[%c0_1, %c0_2] : memref<2x8xi32, #tpu.memory_space<vmem>>, vector<2x8xi32>
    %2 = tpu.iota {dimensions = array<i32: 2>} : vector<2x8x100xi32>
    %3 = vector.shape_cast %1 : vector<2x8xi32> to vector<2x8x1xi32>
    %4 = vector.broadcast %3 : vector<2x8x1xi32> to vector<2x8x100xi32>
    %5 = arith.cmpi eq, %4, %2 : vector<2x8x100xi32>
    %cst = arith.constant 1.000000e+00 : f32
    %cst_3 = arith.constant 0.000000e+00 : f32
    %6 = vector.broadcast %cst : f32 to vector<2x8x100xf32>
    %7 = vector.broadcast %cst_3 : f32 to vector<2x8x100xf32>
    %8 = arith.select %5, %6, %7 : vector<2x8x100xi1>, vector<2x8x100xf32>
    %9 = vector.shape_cast %8 : vector<2x8x100xf32> to vector<16x100xf32>
    %cst_4 = arith.constant dense<0.000000e+00> : vector<16x32xf32>
    %10 = tpu.matmul %9, %0, %cst_4 {dimension_numbers = #tpu.dot_dimension_numbers<[1], [0], [0], [1], [0, 0, 1, 1], [], []>} : vector<16x100xf32>, vector<100x32xf32>, vector<16x32xf32> -> vector<16x32xf32>
    %11 = tpu.iota {dimensions = array<i32: 0>} : vector<2x8x16xi32>
    %12 = tpu.iota {dimensions = array<i32: 1>} : vector<2x8x16xi32>
    %13 = tpu.iota {dimensions = array<i32: 2>} : vector<2x8x16xi32>
    %c1_i32 = arith.constant 1 : i32
    %14 = vector.broadcast %c1_i32 : i32 to vector<2x8x16xi32>
    %15 = arith.muli %12, %14 : vector<2x8x16xi32>
    %c-1_i32 = arith.constant -1 : i32
    %16 = vector.broadcast %c-1_i32 : i32 to vector<2x8x16xi32>
    %17 = arith.addi %15, %16 : vector<2x8x16xi32>
    %c8_i32 = arith.constant 8 : i32
    %18 = vector.broadcast %c8_i32 : i32 to vector<2x8x16xi32>
    %19 = arith.muli %11, %18 : vector<2x8x16xi32>
    %20 = arith.addi %19, %17 : vector<2x8x16xi32>
    %21 = arith.cmpi eq, %13, %20 : vector<2x8x16xi32>
    %c0_i32 = arith.constant 0 : i32
    %22 = vector.broadcast %c0_i32 : i32 to vector<2x8x16xi32>
    %23 = arith.cmpi sge, %17, %22 : vector<2x8x16xi32>
    %24 = arith.andi %21, %23 : vector<2x8x16xi1>
    %c8_i32_5 = arith.constant 8 : i32
    %25 = vector.broadcast %c8_i32_5 : i32 to vector<2x8x16xi32>
    %26 = arith.cmpi slt, %17, %25 : vector<2x8x16xi32>
    %27 = arith.andi %24, %26 : vector<2x8x16xi1>
    %cst_6 = arith.constant 1.000000e+00 : f32
    %cst_7 = arith.constant 0.000000e+00 : f32
    %28 = vector.broadcast %cst_6 : f32 to vector<2x8x16xf32>
    %29 = vector.broadcast %cst_7 : f32 to vector<2x8x16xf32>
    %30 = arith.select %27, %28, %29 : vector<2x8x16xi1>, vector<2x8x16xf32>
    %31 = vector.shape_cast %30 : vector<2x8x16xf32> to vector<16x16xf32>
    %cst_8 = arith.constant dense<0.000000e+00> : vector<16x32xf32>
    %32 = tpu.matmul %31, %10, %cst_8 {dimension_numbers = #tpu.dot_dimension_numbers<[1], [0], [0], [1], [0, 0, 1, 1], [], []>} : vector<16x16xf32>, vector<16x32xf32>, vector<16x32xf32> -> vector<16x32xf32>
    %c0_9 = arith.constant 0 : index
    %c0_10 = arith.constant 0 : index
    %c0_11 = arith.constant 0 : index
    %33 = vector.load %arg4[%c0_9, %c0_10, %c0_11] : memref<3x32x16xf32, #tpu.memory_space<vmem>>, vector<1x32x16xf32>
    %34 = vector.shape_cast %33 : vector<1x32x16xf32> to vector<32x16xf32>
    %cst_12 = arith.constant dense<0.000000e+00> : vector<16x16xf32>
    %35 = tpu.matmul %32, %34, %cst_12 {dimension_numbers = #tpu.dot_dimension_numbers<[1], [0], [0], [1], [0, 0, 1, 1], [], []>} : vector<16x32xf32>, vector<32x16xf32>, vector<16x16xf32> -> vector<16x16xf32>
    %c1 = arith.constant 1 : index
    %c0_13 = arith.constant 0 : index
    %c0_14 = arith.constant 0 : index
    %36 = vector.load %arg4[%c1, %c0_13, %c0_14] : memref<3x32x16xf32, #tpu.memory_space<vmem>>, vector<1x32x16xf32>
    %37 = vector.shape_cast %36 : vector<1x32x16xf32> to vector<32x16xf32>
    %cst_15 = arith.constant dense<0.000000e+00> : vector<16x16xf32>
    %38 = tpu.matmul %10, %37, %cst_15 {dimension_numbers = #tpu.dot_dimension_numbers<[1], [0], [0], [1], [0, 0, 1, 1], [], []>} : vector<16x32xf32>, vector<32x16xf32>, vector<16x16xf32> -> vector<16x16xf32>
    %39 = arith.addf %35, %38 : vector<16x16xf32>
    %40 = tpu.iota {dimensions = array<i32: 0>} : vector<2x8x16xi32>
    %41 = tpu.iota {dimensions = array<i32: 1>} : vector<2x8x16xi32>
    %42 = tpu.iota {dimensions = array<i32: 2>} : vector<2x8x16xi32>
    %c1_i32_16 = arith.constant 1 : i32
    %43 = vector.broadcast %c1_i32_16 : i32 to vector<2x8x16xi32>
    %44 = arith.muli %41, %43 : vector<2x8x16xi32>
    %c1_i32_17 = arith.constant 1 : i32
    %45 = vector.broadcast %c1_i32_17 : i32 to vector<2x8x16xi32>
    %46 = arith.addi %44, %45 : vector<2x8x16xi32>
    %c8_i32_18 = arith.constant 8 : i32
    %47 = vector.broadcast %c8_i32_18 : i32 to vector<2x8x16xi32>
    %48 = arith.muli %40, %47 : vector<2x8x16xi32>
    %49 = arith.addi %48, %46 : vector<2x8x16xi32>
    %50 = arith.cmpi eq, %42, %49 : vector<2x8x16xi32>
    %c0_i32_19 = arith.constant 0 : i32
    %51 = vector.broadcast %c0_i32_19 : i32 to vector<2x8x16xi32>
    %52 = arith.cmpi sge, %46, %51 : vector<2x8x16xi32>
    %53 = arith.andi %50, %52 : vector<2x8x16xi1>
    %c8_i32_20 = arith.constant 8 : i32
    %54 = vector.broadcast %c8_i32_20 : i32 to vector<2x8x16xi32>
    %55 = arith.cmpi slt, %46, %54 : vector<2x8x16xi32>
    %56 = arith.andi %53, %55 : vector<2x8x16xi1>
    %cst_21 = arith.constant 1.000000e+00 : f32
    %cst_22 = arith.constant 0.000000e+00 : f32
    %57 = vector.broadcast %cst_21 : f32 to vector<2x8x16xf32>
    %58 = vector.broadcast %cst_22 : f32 to vector<2x8x16xf32>
    %59 = arith.select %56, %57, %58 : vector<2x8x16xi1>, vector<2x8x16xf32>
    %60 = vector.shape_cast %59 : vector<2x8x16xf32> to vector<16x16xf32>
    %cst_23 = arith.constant dense<0.000000e+00> : vector<16x32xf32>
    %61 = tpu.matmul %60, %10, %cst_23 {dimension_numbers = #tpu.dot_dimension_numbers<[1], [0], [0], [1], [0, 0, 1, 1], [], []>} : vector<16x16xf32>, vector<16x32xf32>, vector<16x32xf32> -> vector<16x32xf32>
    %c2 = arith.constant 2 : index
    %c0_24 = arith.constant 0 : index
    %c0_25 = arith.constant 0 : index
    %62 = vector.load %arg4[%c2, %c0_24, %c0_25] : memref<3x32x16xf32, #tpu.memory_space<vmem>>, vector<1x32x16xf32>
    %63 = vector.shape_cast %62 : vector<1x32x16xf32> to vector<32x16xf32>
    %cst_26 = arith.constant dense<0.000000e+00> : vector<16x16xf32>
    %64 = tpu.matmul %61, %63, %cst_26 {dimension_numbers = #tpu.dot_dimension_numbers<[1], [0], [0], [1], [0, 0, 1, 1], [], []>} : vector<16x32xf32>, vector<32x16xf32>, vector<16x16xf32> -> vector<16x16xf32>
    %65 = arith.addf %39, %64 : vector<16x16xf32>
    %c0_27 = arith.constant 0 : index
    %c0_28 = arith.constant 0 : index
    %66 = vector.load %arg5[%c0_27, %c0_28] : memref<1x16xf32, #tpu.memory_space<vmem>>, vector<1x16xf32>
    %67 = vector.broadcast %66 : vector<1x16xf32> to vector<16x16xf32>
    %68 = arith.addf %65, %67 : vector<16x16xf32>
    %cst_29 = arith.constant 0.000000e+00 : f32
    %69 = vector.broadcast %cst_29 : f32 to vector<16x16xf32>
    %70 = arith.maximumf %68, %69 : vector<16x16xf32>
    %71 = tpu.iota {dimensions = array<i32: 0>} : vector<2x4x16xi32>
    %72 = tpu.iota {dimensions = array<i32: 1>} : vector<2x4x16xi32>
    %73 = tpu.iota {dimensions = array<i32: 2>} : vector<2x4x16xi32>
    %c2_i32 = arith.constant 2 : i32
    %74 = vector.broadcast %c2_i32 : i32 to vector<2x4x16xi32>
    %75 = arith.muli %72, %74 : vector<2x4x16xi32>
    %c0_i32_30 = arith.constant 0 : i32
    %76 = vector.broadcast %c0_i32_30 : i32 to vector<2x4x16xi32>
    %77 = arith.addi %75, %76 : vector<2x4x16xi32>
    %c8_i32_31 = arith.constant 8 : i32
    %78 = vector.broadcast %c8_i32_31 : i32 to vector<2x4x16xi32>
    %79 = arith.muli %71, %78 : vector<2x4x16xi32>
    %80 = arith.addi %79, %77 : vector<2x4x16xi32>
    %81 = arith.cmpi eq, %73, %80 : vector<2x4x16xi32>
    %c0_i32_32 = arith.constant 0 : i32
    %82 = vector.broadcast %c0_i32_32 : i32 to vector<2x4x16xi32>
    %83 = arith.cmpi sge, %77, %82 : vector<2x4x16xi32>
    %84 = arith.andi %81, %83 : vector<2x4x16xi1>
    %c8_i32_33 = arith.constant 8 : i32
    %85 = vector.broadcast %c8_i32_33 : i32 to vector<2x4x16xi32>
    %86 = arith.cmpi slt, %77, %85 : vector<2x4x16xi32>
    %87 = arith.andi %84, %86 : vector<2x4x16xi1>
    %cst_34 = arith.constant 1.000000e+00 : f32
    %cst_35 = arith.constant 0.000000e+00 : f32
    %88 = vector.broadcast %cst_34 : f32 to vector<2x4x16xf32>
    %89 = vector.broadcast %cst_35 : f32 to vector<2x4x16xf32>
    %90 = arith.select %87, %88, %89 : vector<2x4x16xi1>, vector<2x4x16xf32>
    %91 = vector.shape_cast %90 : vector<2x4x16xf32> to vector<8x16xf32>
    %cst_36 = arith.constant dense<0.000000e+00> : vector<8x16xf32>
    %92 = tpu.matmul %91, %70, %cst_36 {dimension_numbers = #tpu.dot_dimension_numbers<[1], [0], [0], [1], [0, 0, 1, 1], [], []>} : vector<8x16xf32>, vector<16x16xf32>, vector<8x16xf32> -> vector<8x16xf32>
    %93 = tpu.iota {dimensions = array<i32: 0>} : vector<2x4x16xi32>
    %94 = tpu.iota {dimensions = array<i32: 1>} : vector<2x4x16xi32>
    %95 = tpu.iota {dimensions = array<i32: 2>} : vector<2x4x16xi32>
    %c2_i32_37 = arith.constant 2 : i32
    %96 = vector.broadcast %c2_i32_37 : i32 to vector<2x4x16xi32>
    %97 = arith.muli %94, %96 : vector<2x4x16xi32>
    %c1_i32_38 = arith.constant 1 : i32
    %98 = vector.broadcast %c1_i32_38 : i32 to vector<2x4x16xi32>
    %99 = arith.addi %97, %98 : vector<2x4x16xi32>
    %c8_i32_39 = arith.constant 8 : i32
    %100 = vector.broadcast %c8_i32_39 : i32 to vector<2x4x16xi32>
    %101 = arith.muli %93, %100 : vector<2x4x16xi32>
    %102 = arith.addi %101, %99 : vector<2x4x16xi32>
    %103 = arith.cmpi eq, %95, %102 : vector<2x4x16xi32>
    %c0_i32_40 = arith.constant 0 : i32
    %104 = vector.broadcast %c0_i32_40 : i32 to vector<2x4x16xi32>
    %105 = arith.cmpi sge, %99, %104 : vector<2x4x16xi32>
    %106 = arith.andi %103, %105 : vector<2x4x16xi1>
    %c8_i32_41 = arith.constant 8 : i32
    %107 = vector.broadcast %c8_i32_41 : i32 to vector<2x4x16xi32>
    %108 = arith.cmpi slt, %99, %107 : vector<2x4x16xi32>
    %109 = arith.andi %106, %108 : vector<2x4x16xi1>
    %cst_42 = arith.constant 1.000000e+00 : f32
    %cst_43 = arith.constant 0.000000e+00 : f32
    %110 = vector.broadcast %cst_42 : f32 to vector<2x4x16xf32>
    %111 = vector.broadcast %cst_43 : f32 to vector<2x4x16xf32>
    %112 = arith.select %109, %110, %111 : vector<2x4x16xi1>, vector<2x4x16xf32>
    %113 = vector.shape_cast %112 : vector<2x4x16xf32> to vector<8x16xf32>
    %cst_44 = arith.constant dense<0.000000e+00> : vector<8x16xf32>
    %114 = tpu.matmul %113, %70, %cst_44 {dimension_numbers = #tpu.dot_dimension_numbers<[1], [0], [0], [1], [0, 0, 1, 1], [], []>} : vector<8x16xf32>, vector<16x16xf32>, vector<8x16xf32> -> vector<8x16xf32>
    %115 = arith.maximumf %92, %114 : vector<8x16xf32>
    %116 = tpu.iota {dimensions = array<i32: 0>} : vector<2x4x8xi32>
    %117 = tpu.iota {dimensions = array<i32: 1>} : vector<2x4x8xi32>
    %118 = tpu.iota {dimensions = array<i32: 2>} : vector<2x4x8xi32>
    %c1_i32_45 = arith.constant 1 : i32
    %119 = vector.broadcast %c1_i32_45 : i32 to vector<2x4x8xi32>
    %120 = arith.muli %117, %119 : vector<2x4x8xi32>
    %c-1_i32_46 = arith.constant -1 : i32
    %121 = vector.broadcast %c-1_i32_46 : i32 to vector<2x4x8xi32>
    %122 = arith.addi %120, %121 : vector<2x4x8xi32>
    %c4_i32 = arith.constant 4 : i32
    %123 = vector.broadcast %c4_i32 : i32 to vector<2x4x8xi32>
    %124 = arith.muli %116, %123 : vector<2x4x8xi32>
    %125 = arith.addi %124, %122 : vector<2x4x8xi32>
    %126 = arith.cmpi eq, %118, %125 : vector<2x4x8xi32>
    %c0_i32_47 = arith.constant 0 : i32
    %127 = vector.broadcast %c0_i32_47 : i32 to vector<2x4x8xi32>
    %128 = arith.cmpi sge, %122, %127 : vector<2x4x8xi32>
    %129 = arith.andi %126, %128 : vector<2x4x8xi1>
    %c4_i32_48 = arith.constant 4 : i32
    %130 = vector.broadcast %c4_i32_48 : i32 to vector<2x4x8xi32>
    %131 = arith.cmpi slt, %122, %130 : vector<2x4x8xi32>
    %132 = arith.andi %129, %131 : vector<2x4x8xi1>
    %cst_49 = arith.constant 1.000000e+00 : f32
    %cst_50 = arith.constant 0.000000e+00 : f32
    %133 = vector.broadcast %cst_49 : f32 to vector<2x4x8xf32>
    %134 = vector.broadcast %cst_50 : f32 to vector<2x4x8xf32>
    %135 = arith.select %132, %133, %134 : vector<2x4x8xi1>, vector<2x4x8xf32>
    %136 = vector.shape_cast %135 : vector<2x4x8xf32> to vector<8x8xf32>
    %cst_51 = arith.constant dense<0.000000e+00> : vector<8x16xf32>
    %137 = tpu.matmul %136, %115, %cst_51 {dimension_numbers = #tpu.dot_dimension_numbers<[1], [0], [0], [1], [0, 0, 1, 1], [], []>} : vector<8x8xf32>, vector<8x16xf32>, vector<8x16xf32> -> vector<8x16xf32>
    %c0_52 = arith.constant 0 : index
    %c0_53 = arith.constant 0 : index
    %c0_54 = arith.constant 0 : index
    %138 = vector.load %arg6[%c0_52, %c0_53, %c0_54] : memref<3x16x16xf32, #tpu.memory_space<vmem>>, vector<1x16x16xf32>
    %139 = vector.shape_cast %138 : vector<1x16x16xf32> to vector<16x16xf32>
    %cst_55 = arith.constant dense<0.000000e+00> : vector<8x16xf32>
    %140 = tpu.matmul %137, %139, %cst_55 {dimension_numbers = #tpu.dot_dimension_numbers<[1], [0], [0], [1], [0, 0, 1, 1], [], []>} : vector<8x16xf32>, vector<16x16xf32>, vector<8x16xf32> -> vector<8x16xf32>
    %c1_56 = arith.constant 1 : index
    %c0_57 = arith.constant 0 : index
    %c0_58 = arith.constant 0 : index
    %141 = vector.load %arg6[%c1_56, %c0_57, %c0_58] : memref<3x16x16xf32, #tpu.memory_space<vmem>>, vector<1x16x16xf32>
    %142 = vector.shape_cast %141 : vector<1x16x16xf32> to vector<16x16xf32>
    %cst_59 = arith.constant dense<0.000000e+00> : vector<8x16xf32>
    %143 = tpu.matmul %115, %142, %cst_59 {dimension_numbers = #tpu.dot_dimension_numbers<[1], [0], [0], [1], [0, 0, 1, 1], [], []>} : vector<8x16xf32>, vector<16x16xf32>, vector<8x16xf32> -> vector<8x16xf32>
    %144 = arith.addf %140, %143 : vector<8x16xf32>
    %145 = tpu.iota {dimensions = array<i32: 0>} : vector<2x4x8xi32>
    %146 = tpu.iota {dimensions = array<i32: 1>} : vector<2x4x8xi32>
    %147 = tpu.iota {dimensions = array<i32: 2>} : vector<2x4x8xi32>
    %c1_i32_60 = arith.constant 1 : i32
    %148 = vector.broadcast %c1_i32_60 : i32 to vector<2x4x8xi32>
    %149 = arith.muli %146, %148 : vector<2x4x8xi32>
    %c1_i32_61 = arith.constant 1 : i32
    %150 = vector.broadcast %c1_i32_61 : i32 to vector<2x4x8xi32>
    %151 = arith.addi %149, %150 : vector<2x4x8xi32>
    %c4_i32_62 = arith.constant 4 : i32
    %152 = vector.broadcast %c4_i32_62 : i32 to vector<2x4x8xi32>
    %153 = arith.muli %145, %152 : vector<2x4x8xi32>
    %154 = arith.addi %153, %151 : vector<2x4x8xi32>
    %155 = arith.cmpi eq, %147, %154 : vector<2x4x8xi32>
    %c0_i32_63 = arith.constant 0 : i32
    %156 = vector.broadcast %c0_i32_63 : i32 to vector<2x4x8xi32>
    %157 = arith.cmpi sge, %151, %156 : vector<2x4x8xi32>
    %158 = arith.andi %155, %157 : vector<2x4x8xi1>
    %c4_i32_64 = arith.constant 4 : i32
    %159 = vector.broadcast %c4_i32_64 : i32 to vector<2x4x8xi32>
    %160 = arith.cmpi slt, %151, %159 : vector<2x4x8xi32>
    %161 = arith.andi %158, %160 : vector<2x4x8xi1>
    %cst_65 = arith.constant 1.000000e+00 : f32
    %cst_66 = arith.constant 0.000000e+00 : f32
    %162 = vector.broadcast %cst_65 : f32 to vector<2x4x8xf32>
    %163 = vector.broadcast %cst_66 : f32 to vector<2x4x8xf32>
    %164 = arith.select %161, %162, %163 : vector<2x4x8xi1>, vector<2x4x8xf32>
    %165 = vector.shape_cast %164 : vector<2x4x8xf32> to vector<8x8xf32>
    %cst_67 = arith.constant dense<0.000000e+00> : vector<8x16xf32>
    %166 = tpu.matmul %165, %115, %cst_67 {dimension_numbers = #tpu.dot_dimension_numbers<[1], [0], [0], [1], [0, 0, 1, 1], [], []>} : vector<8x8xf32>, vector<8x16xf32>, vector<8x16xf32> -> vector<8x16xf32>
    %c2_68 = arith.constant 2 : index
    %c0_69 = arith.constant 0 : index
    %c0_70 = arith.constant 0 : index
    %167 = vector.load %arg6[%c2_68, %c0_69, %c0_70] : memref<3x16x16xf32, #tpu.memory_space<vmem>>, vector<1x16x16xf32>
    %168 = vector.shape_cast %167 : vector<1x16x16xf32> to vector<16x16xf32>
    %cst_71 = arith.constant dense<0.000000e+00> : vector<8x16xf32>
    %169 = tpu.matmul %166, %168, %cst_71 {dimension_numbers = #tpu.dot_dimension_numbers<[1], [0], [0], [1], [0, 0, 1, 1], [], []>} : vector<8x16xf32>, vector<16x16xf32>, vector<8x16xf32> -> vector<8x16xf32>
    %170 = arith.addf %144, %169 : vector<8x16xf32>
    %c0_72 = arith.constant 0 : index
    %c0_73 = arith.constant 0 : index
    %171 = vector.load %arg7[%c0_72, %c0_73] : memref<1x16xf32, #tpu.memory_space<vmem>>, vector<1x16xf32>
    %172 = vector.broadcast %171 : vector<1x16xf32> to vector<8x16xf32>
    %173 = arith.addf %170, %172 : vector<8x16xf32>
    %cst_74 = arith.constant 0.000000e+00 : f32
    %174 = vector.broadcast %cst_74 : f32 to vector<8x16xf32>
    %175 = arith.maximumf %173, %174 : vector<8x16xf32>
    %176 = tpu.iota {dimensions = array<i32: 0>} : vector<2x2x8xi32>
    %177 = tpu.iota {dimensions = array<i32: 1>} : vector<2x2x8xi32>
    %178 = tpu.iota {dimensions = array<i32: 2>} : vector<2x2x8xi32>
    %c2_i32_75 = arith.constant 2 : i32
    %179 = vector.broadcast %c2_i32_75 : i32 to vector<2x2x8xi32>
    %180 = arith.muli %177, %179 : vector<2x2x8xi32>
    %c0_i32_76 = arith.constant 0 : i32
    %181 = vector.broadcast %c0_i32_76 : i32 to vector<2x2x8xi32>
    %182 = arith.addi %180, %181 : vector<2x2x8xi32>
    %c4_i32_77 = arith.constant 4 : i32
    %183 = vector.broadcast %c4_i32_77 : i32 to vector<2x2x8xi32>
    %184 = arith.muli %176, %183 : vector<2x2x8xi32>
    %185 = arith.addi %184, %182 : vector<2x2x8xi32>
    %186 = arith.cmpi eq, %178, %185 : vector<2x2x8xi32>
    %c0_i32_78 = arith.constant 0 : i32
    %187 = vector.broadcast %c0_i32_78 : i32 to vector<2x2x8xi32>
    %188 = arith.cmpi sge, %182, %187 : vector<2x2x8xi32>
    %189 = arith.andi %186, %188 : vector<2x2x8xi1>
    %c4_i32_79 = arith.constant 4 : i32
    %190 = vector.broadcast %c4_i32_79 : i32 to vector<2x2x8xi32>
    %191 = arith.cmpi slt, %182, %190 : vector<2x2x8xi32>
    %192 = arith.andi %189, %191 : vector<2x2x8xi1>
    %cst_80 = arith.constant 1.000000e+00 : f32
    %cst_81 = arith.constant 0.000000e+00 : f32
    %193 = vector.broadcast %cst_80 : f32 to vector<2x2x8xf32>
    %194 = vector.broadcast %cst_81 : f32 to vector<2x2x8xf32>
    %195 = arith.select %192, %193, %194 : vector<2x2x8xi1>, vector<2x2x8xf32>
    %196 = vector.shape_cast %195 : vector<2x2x8xf32> to vector<4x8xf32>
    %cst_82 = arith.constant dense<0.000000e+00> : vector<4x16xf32>
    %197 = tpu.matmul %196, %175, %cst_82 {dimension_numbers = #tpu.dot_dimension_numbers<[1], [0], [0], [1], [0, 0, 1, 1], [], []>} : vector<4x8xf32>, vector<8x16xf32>, vector<4x16xf32> -> vector<4x16xf32>
    %198 = tpu.iota {dimensions = array<i32: 0>} : vector<2x2x8xi32>
    %199 = tpu.iota {dimensions = array<i32: 1>} : vector<2x2x8xi32>
    %200 = tpu.iota {dimensions = array<i32: 2>} : vector<2x2x8xi32>
    %c2_i32_83 = arith.constant 2 : i32
    %201 = vector.broadcast %c2_i32_83 : i32 to vector<2x2x8xi32>
    %202 = arith.muli %199, %201 : vector<2x2x8xi32>
    %c1_i32_84 = arith.constant 1 : i32
    %203 = vector.broadcast %c1_i32_84 : i32 to vector<2x2x8xi32>
    %204 = arith.addi %202, %203 : vector<2x2x8xi32>
    %c4_i32_85 = arith.constant 4 : i32
    %205 = vector.broadcast %c4_i32_85 : i32 to vector<2x2x8xi32>
    %206 = arith.muli %198, %205 : vector<2x2x8xi32>
    %207 = arith.addi %206, %204 : vector<2x2x8xi32>
    %208 = arith.cmpi eq, %200, %207 : vector<2x2x8xi32>
    %c0_i32_86 = arith.constant 0 : i32
    %209 = vector.broadcast %c0_i32_86 : i32 to vector<2x2x8xi32>
    %210 = arith.cmpi sge, %204, %209 : vector<2x2x8xi32>
    %211 = arith.andi %208, %210 : vector<2x2x8xi1>
    %c4_i32_87 = arith.constant 4 : i32
    %212 = vector.broadcast %c4_i32_87 : i32 to vector<2x2x8xi32>
    %213 = arith.cmpi slt, %204, %212 : vector<2x2x8xi32>
    %214 = arith.andi %211, %213 : vector<2x2x8xi1>
    %cst_88 = arith.constant 1.000000e+00 : f32
    %cst_89 = arith.constant 0.000000e+00 : f32
    %215 = vector.broadcast %cst_88 : f32 to vector<2x2x8xf32>
    %216 = vector.broadcast %cst_89 : f32 to vector<2x2x8xf32>
    %217 = arith.select %214, %215, %216 : vector<2x2x8xi1>, vector<2x2x8xf32>
    %218 = vector.shape_cast %217 : vector<2x2x8xf32> to vector<4x8xf32>
    %cst_90 = arith.constant dense<0.000000e+00> : vector<4x16xf32>
    %219 = tpu.matmul %218, %175, %cst_90 {dimension_numbers = #tpu.dot_dimension_numbers<[1], [0], [0], [1], [0, 0, 1, 1], [], []>} : vector<4x8xf32>, vector<8x16xf32>, vector<4x16xf32> -> vector<4x16xf32>
    %220 = arith.maximumf %197, %219 : vector<4x16xf32>
    %c0_91 = arith.constant 0 : index
    %c0_92 = arith.constant 0 : index
    %221 = vector.load %arg2[%c0_91, %c0_92] : memref<6x16xi32, #tpu.memory_space<vmem>>, vector<6x16xi32>
    %222 = tpu.iota {dimensions = array<i32: 2>} : vector<6x16x100xi32>
    %223 = vector.shape_cast %221 : vector<6x16xi32> to vector<6x16x1xi32>
    %224 = vector.broadcast %223 : vector<6x16x1xi32> to vector<6x16x100xi32>
    %225 = arith.cmpi eq, %224, %222 : vector<6x16x100xi32>
    %cst_93 = arith.constant 1.000000e+00 : f32
    %cst_94 = arith.constant 0.000000e+00 : f32
    %226 = vector.broadcast %cst_93 : f32 to vector<6x16x100xf32>
    %227 = vector.broadcast %cst_94 : f32 to vector<6x16x100xf32>
    %228 = arith.select %225, %226, %227 : vector<6x16x100xi1>, vector<6x16x100xf32>
    %229 = vector.shape_cast %228 : vector<6x16x100xf32> to vector<96x100xf32>
    %cst_95 = arith.constant dense<0.000000e+00> : vector<96x32xf32>
    %230 = tpu.matmul %229, %0, %cst_95 {dimension_numbers = #tpu.dot_dimension_numbers<[1], [0], [0], [1], [0, 0, 1, 1], [], []>} : vector<96x100xf32>, vector<100x32xf32>, vector<96x32xf32> -> vector<96x32xf32>
    %231 = tpu.iota {dimensions = array<i32: 0>} : vector<6x16x96xi32>
    %232 = tpu.iota {dimensions = array<i32: 1>} : vector<6x16x96xi32>
    %233 = tpu.iota {dimensions = array<i32: 2>} : vector<6x16x96xi32>
    %c1_i32_96 = arith.constant 1 : i32
    %234 = vector.broadcast %c1_i32_96 : i32 to vector<6x16x96xi32>
    %235 = arith.muli %232, %234 : vector<6x16x96xi32>
    %c-1_i32_97 = arith.constant -1 : i32
    %236 = vector.broadcast %c-1_i32_97 : i32 to vector<6x16x96xi32>
    %237 = arith.addi %235, %236 : vector<6x16x96xi32>
    %c16_i32 = arith.constant 16 : i32
    %238 = vector.broadcast %c16_i32 : i32 to vector<6x16x96xi32>
    %239 = arith.muli %231, %238 : vector<6x16x96xi32>
    %240 = arith.addi %239, %237 : vector<6x16x96xi32>
    %241 = arith.cmpi eq, %233, %240 : vector<6x16x96xi32>
    %c0_i32_98 = arith.constant 0 : i32
    %242 = vector.broadcast %c0_i32_98 : i32 to vector<6x16x96xi32>
    %243 = arith.cmpi sge, %237, %242 : vector<6x16x96xi32>
    %244 = arith.andi %241, %243 : vector<6x16x96xi1>
    %c16_i32_99 = arith.constant 16 : i32
    %245 = vector.broadcast %c16_i32_99 : i32 to vector<6x16x96xi32>
    %246 = arith.cmpi slt, %237, %245 : vector<6x16x96xi32>
    %247 = arith.andi %244, %246 : vector<6x16x96xi1>
    %cst_100 = arith.constant 1.000000e+00 : f32
    %cst_101 = arith.constant 0.000000e+00 : f32
    %248 = vector.broadcast %cst_100 : f32 to vector<6x16x96xf32>
    %249 = vector.broadcast %cst_101 : f32 to vector<6x16x96xf32>
    %250 = arith.select %247, %248, %249 : vector<6x16x96xi1>, vector<6x16x96xf32>
    %251 = vector.shape_cast %250 : vector<6x16x96xf32> to vector<96x96xf32>
    %cst_102 = arith.constant dense<0.000000e+00> : vector<96x32xf32>
    %252 = tpu.matmul %251, %230, %cst_102 {dimension_numbers = #tpu.dot_dimension_numbers<[1], [0], [0], [1], [0, 0, 1, 1], [], []>} : vector<96x96xf32>, vector<96x32xf32>, vector<96x32xf32> -> vector<96x32xf32>
    %c0_103 = arith.constant 0 : index
    %c0_104 = arith.constant 0 : index
    %c0_105 = arith.constant 0 : index
    %253 = vector.load %arg8[%c0_103, %c0_104, %c0_105] : memref<3x32x16xf32, #tpu.memory_space<vmem>>, vector<1x32x16xf32>
    %254 = vector.shape_cast %253 : vector<1x32x16xf32> to vector<32x16xf32>
    %cst_106 = arith.constant dense<0.000000e+00> : vector<96x16xf32>
    %255 = tpu.matmul %252, %254, %cst_106 {dimension_numbers = #tpu.dot_dimension_numbers<[1], [0], [0], [1], [0, 0, 1, 1], [], []>} : vector<96x32xf32>, vector<32x16xf32>, vector<96x16xf32> -> vector<96x16xf32>
    %c1_107 = arith.constant 1 : index
    %c0_108 = arith.constant 0 : index
    %c0_109 = arith.constant 0 : index
    %256 = vector.load %arg8[%c1_107, %c0_108, %c0_109] : memref<3x32x16xf32, #tpu.memory_space<vmem>>, vector<1x32x16xf32>
    %257 = vector.shape_cast %256 : vector<1x32x16xf32> to vector<32x16xf32>
    %cst_110 = arith.constant dense<0.000000e+00> : vector<96x16xf32>
    %258 = tpu.matmul %230, %257, %cst_110 {dimension_numbers = #tpu.dot_dimension_numbers<[1], [0], [0], [1], [0, 0, 1, 1], [], []>} : vector<96x32xf32>, vector<32x16xf32>, vector<96x16xf32> -> vector<96x16xf32>
    %259 = arith.addf %255, %258 : vector<96x16xf32>
    %260 = tpu.iota {dimensions = array<i32: 0>} : vector<6x16x96xi32>
    %261 = tpu.iota {dimensions = array<i32: 1>} : vector<6x16x96xi32>
    %262 = tpu.iota {dimensions = array<i32: 2>} : vector<6x16x96xi32>
    %c1_i32_111 = arith.constant 1 : i32
    %263 = vector.broadcast %c1_i32_111 : i32 to vector<6x16x96xi32>
    %264 = arith.muli %261, %263 : vector<6x16x96xi32>
    %c1_i32_112 = arith.constant 1 : i32
    %265 = vector.broadcast %c1_i32_112 : i32 to vector<6x16x96xi32>
    %266 = arith.addi %264, %265 : vector<6x16x96xi32>
    %c16_i32_113 = arith.constant 16 : i32
    %267 = vector.broadcast %c16_i32_113 : i32 to vector<6x16x96xi32>
    %268 = arith.muli %260, %267 : vector<6x16x96xi32>
    %269 = arith.addi %268, %266 : vector<6x16x96xi32>
    %270 = arith.cmpi eq, %262, %269 : vector<6x16x96xi32>
    %c0_i32_114 = arith.constant 0 : i32
    %271 = vector.broadcast %c0_i32_114 : i32 to vector<6x16x96xi32>
    %272 = arith.cmpi sge, %266, %271 : vector<6x16x96xi32>
    %273 = arith.andi %270, %272 : vector<6x16x96xi1>
    %c16_i32_115 = arith.constant 16 : i32
    %274 = vector.broadcast %c16_i32_115 : i32 to vector<6x16x96xi32>
    %275 = arith.cmpi slt, %266, %274 : vector<6x16x96xi32>
    %276 = arith.andi %273, %275 : vector<6x16x96xi1>
    %cst_116 = arith.constant 1.000000e+00 : f32
    %cst_117 = arith.constant 0.000000e+00 : f32
    %277 = vector.broadcast %cst_116 : f32 to vector<6x16x96xf32>
    %278 = vector.broadcast %cst_117 : f32 to vector<6x16x96xf32>
    %279 = arith.select %276, %277, %278 : vector<6x16x96xi1>, vector<6x16x96xf32>
    %280 = vector.shape_cast %279 : vector<6x16x96xf32> to vector<96x96xf32>
    %cst_118 = arith.constant dense<0.000000e+00> : vector<96x32xf32>
    %281 = tpu.matmul %280, %230, %cst_118 {dimension_numbers = #tpu.dot_dimension_numbers<[1], [0], [0], [1], [0, 0, 1, 1], [], []>} : vector<96x96xf32>, vector<96x32xf32>, vector<96x32xf32> -> vector<96x32xf32>
    %c2_119 = arith.constant 2 : index
    %c0_120 = arith.constant 0 : index
    %c0_121 = arith.constant 0 : index
    %282 = vector.load %arg8[%c2_119, %c0_120, %c0_121] : memref<3x32x16xf32, #tpu.memory_space<vmem>>, vector<1x32x16xf32>
    %283 = vector.shape_cast %282 : vector<1x32x16xf32> to vector<32x16xf32>
    %cst_122 = arith.constant dense<0.000000e+00> : vector<96x16xf32>
    %284 = tpu.matmul %281, %283, %cst_122 {dimension_numbers = #tpu.dot_dimension_numbers<[1], [0], [0], [1], [0, 0, 1, 1], [], []>} : vector<96x32xf32>, vector<32x16xf32>, vector<96x16xf32> -> vector<96x16xf32>
    %285 = arith.addf %259, %284 : vector<96x16xf32>
    %c0_123 = arith.constant 0 : index
    %c0_124 = arith.constant 0 : index
    %286 = vector.load %arg9[%c0_123, %c0_124] : memref<1x16xf32, #tpu.memory_space<vmem>>, vector<1x16xf32>
    %287 = vector.broadcast %286 : vector<1x16xf32> to vector<96x16xf32>
    %288 = arith.addf %285, %287 : vector<96x16xf32>
    %cst_125 = arith.constant 0.000000e+00 : f32
    %289 = vector.broadcast %cst_125 : f32 to vector<96x16xf32>
    %290 = arith.maximumf %288, %289 : vector<96x16xf32>
    %291 = tpu.iota {dimensions = array<i32: 0>} : vector<6x8x96xi32>
    %292 = tpu.iota {dimensions = array<i32: 1>} : vector<6x8x96xi32>
    %293 = tpu.iota {dimensions = array<i32: 2>} : vector<6x8x96xi32>
    %c2_i32_126 = arith.constant 2 : i32
    %294 = vector.broadcast %c2_i32_126 : i32 to vector<6x8x96xi32>
    %295 = arith.muli %292, %294 : vector<6x8x96xi32>
    %c0_i32_127 = arith.constant 0 : i32
    %296 = vector.broadcast %c0_i32_127 : i32 to vector<6x8x96xi32>
    %297 = arith.addi %295, %296 : vector<6x8x96xi32>
    %c16_i32_128 = arith.constant 16 : i32
    %298 = vector.broadcast %c16_i32_128 : i32 to vector<6x8x96xi32>
    %299 = arith.muli %291, %298 : vector<6x8x96xi32>
    %300 = arith.addi %299, %297 : vector<6x8x96xi32>
    %301 = arith.cmpi eq, %293, %300 : vector<6x8x96xi32>
    %c0_i32_129 = arith.constant 0 : i32
    %302 = vector.broadcast %c0_i32_129 : i32 to vector<6x8x96xi32>
    %303 = arith.cmpi sge, %297, %302 : vector<6x8x96xi32>
    %304 = arith.andi %301, %303 : vector<6x8x96xi1>
    %c16_i32_130 = arith.constant 16 : i32
    %305 = vector.broadcast %c16_i32_130 : i32 to vector<6x8x96xi32>
    %306 = arith.cmpi slt, %297, %305 : vector<6x8x96xi32>
    %307 = arith.andi %304, %306 : vector<6x8x96xi1>
    %cst_131 = arith.constant 1.000000e+00 : f32
    %cst_132 = arith.constant 0.000000e+00 : f32
    %308 = vector.broadcast %cst_131 : f32 to vector<6x8x96xf32>
    %309 = vector.broadcast %cst_132 : f32 to vector<6x8x96xf32>
    %310 = arith.select %307, %308, %309 : vector<6x8x96xi1>, vector<6x8x96xf32>
    %311 = vector.shape_cast %310 : vector<6x8x96xf32> to vector<48x96xf32>
    %cst_133 = arith.constant dense<0.000000e+00> : vector<48x16xf32>
    %312 = tpu.matmul %311, %290, %cst_133 {dimension_numbers = #tpu.dot_dimension_numbers<[1], [0], [0], [1], [0, 0, 1, 1], [], []>} : vector<48x96xf32>, vector<96x16xf32>, vector<48x16xf32> -> vector<48x16xf32>
    %313 = tpu.iota {dimensions = array<i32: 0>} : vector<6x8x96xi32>
    %314 = tpu.iota {dimensions = array<i32: 1>} : vector<6x8x96xi32>
    %315 = tpu.iota {dimensions = array<i32: 2>} : vector<6x8x96xi32>
    %c2_i32_134 = arith.constant 2 : i32
    %316 = vector.broadcast %c2_i32_134 : i32 to vector<6x8x96xi32>
    %317 = arith.muli %314, %316 : vector<6x8x96xi32>
    %c1_i32_135 = arith.constant 1 : i32
    %318 = vector.broadcast %c1_i32_135 : i32 to vector<6x8x96xi32>
    %319 = arith.addi %317, %318 : vector<6x8x96xi32>
    %c16_i32_136 = arith.constant 16 : i32
    %320 = vector.broadcast %c16_i32_136 : i32 to vector<6x8x96xi32>
    %321 = arith.muli %313, %320 : vector<6x8x96xi32>
    %322 = arith.addi %321, %319 : vector<6x8x96xi32>
    %323 = arith.cmpi eq, %315, %322 : vector<6x8x96xi32>
    %c0_i32_137 = arith.constant 0 : i32
    %324 = vector.broadcast %c0_i32_137 : i32 to vector<6x8x96xi32>
    %325 = arith.cmpi sge, %319, %324 : vector<6x8x96xi32>
    %326 = arith.andi %323, %325 : vector<6x8x96xi1>
    %c16_i32_138 = arith.constant 16 : i32
    %327 = vector.broadcast %c16_i32_138 : i32 to vector<6x8x96xi32>
    %328 = arith.cmpi slt, %319, %327 : vector<6x8x96xi32>
    %329 = arith.andi %326, %328 : vector<6x8x96xi1>
    %cst_139 = arith.constant 1.000000e+00 : f32
    %cst_140 = arith.constant 0.000000e+00 : f32
    %330 = vector.broadcast %cst_139 : f32 to vector<6x8x96xf32>
    %331 = vector.broadcast %cst_140 : f32 to vector<6x8x96xf32>
    %332 = arith.select %329, %330, %331 : vector<6x8x96xi1>, vector<6x8x96xf32>
    %333 = vector.shape_cast %332 : vector<6x8x96xf32> to vector<48x96xf32>
    %cst_141 = arith.constant dense<0.000000e+00> : vector<48x16xf32>
    %334 = tpu.matmul %333, %290, %cst_141 {dimension_numbers = #tpu.dot_dimension_numbers<[1], [0], [0], [1], [0, 0, 1, 1], [], []>} : vector<48x96xf32>, vector<96x16xf32>, vector<48x16xf32> -> vector<48x16xf32>
    %335 = arith.maximumf %312, %334 : vector<48x16xf32>
    %336 = tpu.iota {dimensions = array<i32: 0>} : vector<6x8x48xi32>
    %337 = tpu.iota {dimensions = array<i32: 1>} : vector<6x8x48xi32>
    %338 = tpu.iota {dimensions = array<i32: 2>} : vector<6x8x48xi32>
    %c1_i32_142 = arith.constant 1 : i32
    %339 = vector.broadcast %c1_i32_142 : i32 to vector<6x8x48xi32>
    %340 = arith.muli %337, %339 : vector<6x8x48xi32>
    %c-1_i32_143 = arith.constant -1 : i32
    %341 = vector.broadcast %c-1_i32_143 : i32 to vector<6x8x48xi32>
    %342 = arith.addi %340, %341 : vector<6x8x48xi32>
    %c8_i32_144 = arith.constant 8 : i32
    %343 = vector.broadcast %c8_i32_144 : i32 to vector<6x8x48xi32>
    %344 = arith.muli %336, %343 : vector<6x8x48xi32>
    %345 = arith.addi %344, %342 : vector<6x8x48xi32>
    %346 = arith.cmpi eq, %338, %345 : vector<6x8x48xi32>
    %c0_i32_145 = arith.constant 0 : i32
    %347 = vector.broadcast %c0_i32_145 : i32 to vector<6x8x48xi32>
    %348 = arith.cmpi sge, %342, %347 : vector<6x8x48xi32>
    %349 = arith.andi %346, %348 : vector<6x8x48xi1>
    %c8_i32_146 = arith.constant 8 : i32
    %350 = vector.broadcast %c8_i32_146 : i32 to vector<6x8x48xi32>
    %351 = arith.cmpi slt, %342, %350 : vector<6x8x48xi32>
    %352 = arith.andi %349, %351 : vector<6x8x48xi1>
    %cst_147 = arith.constant 1.000000e+00 : f32
    %cst_148 = arith.constant 0.000000e+00 : f32
    %353 = vector.broadcast %cst_147 : f32 to vector<6x8x48xf32>
    %354 = vector.broadcast %cst_148 : f32 to vector<6x8x48xf32>
    %355 = arith.select %352, %353, %354 : vector<6x8x48xi1>, vector<6x8x48xf32>
    %356 = vector.shape_cast %355 : vector<6x8x48xf32> to vector<48x48xf32>
    %cst_149 = arith.constant dense<0.000000e+00> : vector<48x16xf32>
    %357 = tpu.matmul %356, %335, %cst_149 {dimension_numbers = #tpu.dot_dimension_numbers<[1], [0], [0], [1], [0, 0, 1, 1], [], []>} : vector<48x48xf32>, vector<48x16xf32>, vector<48x16xf32> -> vector<48x16xf32>
    %c0_150 = arith.constant 0 : index
    %c0_151 = arith.constant 0 : index
    %c0_152 = arith.constant 0 : index
    %358 = vector.load %arg10[%c0_150, %c0_151, %c0_152] : memref<3x16x16xf32, #tpu.memory_space<vmem>>, vector<1x16x16xf32>
    %359 = vector.shape_cast %358 : vector<1x16x16xf32> to vector<16x16xf32>
    %cst_153 = arith.constant dense<0.000000e+00> : vector<48x16xf32>
    %360 = tpu.matmul %357, %359, %cst_153 {dimension_numbers = #tpu.dot_dimension_numbers<[1], [0], [0], [1], [0, 0, 1, 1], [], []>} : vector<48x16xf32>, vector<16x16xf32>, vector<48x16xf32> -> vector<48x16xf32>
    %c1_154 = arith.constant 1 : index
    %c0_155 = arith.constant 0 : index
    %c0_156 = arith.constant 0 : index
    %361 = vector.load %arg10[%c1_154, %c0_155, %c0_156] : memref<3x16x16xf32, #tpu.memory_space<vmem>>, vector<1x16x16xf32>
    %362 = vector.shape_cast %361 : vector<1x16x16xf32> to vector<16x16xf32>
    %cst_157 = arith.constant dense<0.000000e+00> : vector<48x16xf32>
    %363 = tpu.matmul %335, %362, %cst_157 {dimension_numbers = #tpu.dot_dimension_numbers<[1], [0], [0], [1], [0, 0, 1, 1], [], []>} : vector<48x16xf32>, vector<16x16xf32>, vector<48x16xf32> -> vector<48x16xf32>
    %364 = arith.addf %360, %363 : vector<48x16xf32>
    %365 = tpu.iota {dimensions = array<i32: 0>} : vector<6x8x48xi32>
    %366 = tpu.iota {dimensions = array<i32: 1>} : vector<6x8x48xi32>
    %367 = tpu.iota {dimensions = array<i32: 2>} : vector<6x8x48xi32>
    %c1_i32_158 = arith.constant 1 : i32
    %368 = vector.broadcast %c1_i32_158 : i32 to vector<6x8x48xi32>
    %369 = arith.muli %366, %368 : vector<6x8x48xi32>
    %c1_i32_159 = arith.constant 1 : i32
    %370 = vector.broadcast %c1_i32_159 : i32 to vector<6x8x48xi32>
    %371 = arith.addi %369, %370 : vector<6x8x48xi32>
    %c8_i32_160 = arith.constant 8 : i32
    %372 = vector.broadcast %c8_i32_160 : i32 to vector<6x8x48xi32>
    %373 = arith.muli %365, %372 : vector<6x8x48xi32>
    %374 = arith.addi %373, %371 : vector<6x8x48xi32>
    %375 = arith.cmpi eq, %367, %374 : vector<6x8x48xi32>
    %c0_i32_161 = arith.constant 0 : i32
    %376 = vector.broadcast %c0_i32_161 : i32 to vector<6x8x48xi32>
    %377 = arith.cmpi sge, %371, %376 : vector<6x8x48xi32>
    %378 = arith.andi %375, %377 : vector<6x8x48xi1>
    %c8_i32_162 = arith.constant 8 : i32
    %379 = vector.broadcast %c8_i32_162 : i32 to vector<6x8x48xi32>
    %380 = arith.cmpi slt, %371, %379 : vector<6x8x48xi32>
    %381 = arith.andi %378, %380 : vector<6x8x48xi1>
    %cst_163 = arith.constant 1.000000e+00 : f32
    %cst_164 = arith.constant 0.000000e+00 : f32
    %382 = vector.broadcast %cst_163 : f32 to vector<6x8x48xf32>
    %383 = vector.broadcast %cst_164 : f32 to vector<6x8x48xf32>
    %384 = arith.select %381, %382, %383 : vector<6x8x48xi1>, vector<6x8x48xf32>
    %385 = vector.shape_cast %384 : vector<6x8x48xf32> to vector<48x48xf32>
    %cst_165 = arith.constant dense<0.000000e+00> : vector<48x16xf32>
    %386 = tpu.matmul %385, %335, %cst_165 {dimension_numbers = #tpu.dot_dimension_numbers<[1], [0], [0], [1], [0, 0, 1, 1], [], []>} : vector<48x48xf32>, vector<48x16xf32>, vector<48x16xf32> -> vector<48x16xf32>
    %c2_166 = arith.constant 2 : index
    %c0_167 = arith.constant 0 : index
    %c0_168 = arith.constant 0 : index
    %387 = vector.load %arg10[%c2_166, %c0_167, %c0_168] : memref<3x16x16xf32, #tpu.memory_space<vmem>>, vector<1x16x16xf32>
    %388 = vector.shape_cast %387 : vector<1x16x16xf32> to vector<16x16xf32>
    %cst_169 = arith.constant dense<0.000000e+00> : vector<48x16xf32>
    %389 = tpu.matmul %386, %388, %cst_169 {dimension_numbers = #tpu.dot_dimension_numbers<[1], [0], [0], [1], [0, 0, 1, 1], [], []>} : vector<48x16xf32>, vector<16x16xf32>, vector<48x16xf32> -> vector<48x16xf32>
    %390 = arith.addf %364, %389 : vector<48x16xf32>
    %c0_170 = arith.constant 0 : index
    %c0_171 = arith.constant 0 : index
    %391 = vector.load %arg11[%c0_170, %c0_171] : memref<1x16xf32, #tpu.memory_space<vmem>>, vector<1x16xf32>
    %392 = vector.broadcast %391 : vector<1x16xf32> to vector<48x16xf32>
    %393 = arith.addf %390, %392 : vector<48x16xf32>
    %cst_172 = arith.constant 0.000000e+00 : f32
    %394 = vector.broadcast %cst_172 : f32 to vector<48x16xf32>
    %395 = arith.maximumf %393, %394 : vector<48x16xf32>
    %396 = tpu.iota {dimensions = array<i32: 0>} : vector<6x4x48xi32>
    %397 = tpu.iota {dimensions = array<i32: 1>} : vector<6x4x48xi32>
    %398 = tpu.iota {dimensions = array<i32: 2>} : vector<6x4x48xi32>
    %c2_i32_173 = arith.constant 2 : i32
    %399 = vector.broadcast %c2_i32_173 : i32 to vector<6x4x48xi32>
    %400 = arith.muli %397, %399 : vector<6x4x48xi32>
    %c0_i32_174 = arith.constant 0 : i32
    %401 = vector.broadcast %c0_i32_174 : i32 to vector<6x4x48xi32>
    %402 = arith.addi %400, %401 : vector<6x4x48xi32>
    %c8_i32_175 = arith.constant 8 : i32
    %403 = vector.broadcast %c8_i32_175 : i32 to vector<6x4x48xi32>
    %404 = arith.muli %396, %403 : vector<6x4x48xi32>
    %405 = arith.addi %404, %402 : vector<6x4x48xi32>
    %406 = arith.cmpi eq, %398, %405 : vector<6x4x48xi32>
    %c0_i32_176 = arith.constant 0 : i32
    %407 = vector.broadcast %c0_i32_176 : i32 to vector<6x4x48xi32>
    %408 = arith.cmpi sge, %402, %407 : vector<6x4x48xi32>
    %409 = arith.andi %406, %408 : vector<6x4x48xi1>
    %c8_i32_177 = arith.constant 8 : i32
    %410 = vector.broadcast %c8_i32_177 : i32 to vector<6x4x48xi32>
    %411 = arith.cmpi slt, %402, %410 : vector<6x4x48xi32>
    %412 = arith.andi %409, %411 : vector<6x4x48xi1>
    %cst_178 = arith.constant 1.000000e+00 : f32
    %cst_179 = arith.constant 0.000000e+00 : f32
    %413 = vector.broadcast %cst_178 : f32 to vector<6x4x48xf32>
    %414 = vector.broadcast %cst_179 : f32 to vector<6x4x48xf32>
    %415 = arith.select %412, %413, %414 : vector<6x4x48xi1>, vector<6x4x48xf32>
    %416 = vector.shape_cast %415 : vector<6x4x48xf32> to vector<24x48xf32>
    %cst_180 = arith.constant dense<0.000000e+00> : vector<24x16xf32>
    %417 = tpu.matmul %416, %395, %cst_180 {dimension_numbers = #tpu.dot_dimension_numbers<[1], [0], [0], [1], [0, 0, 1, 1], [], []>} : vector<24x48xf32>, vector<48x16xf32>, vector<24x16xf32> -> vector<24x16xf32>
    %418 = tpu.iota {dimensions = array<i32: 0>} : vector<6x4x48xi32>
    %419 = tpu.iota {dimensions = array<i32: 1>} : vector<6x4x48xi32>
    %420 = tpu.iota {dimensions = array<i32: 2>} : vector<6x4x48xi32>
    %c2_i32_181 = arith.constant 2 : i32
    %421 = vector.broadcast %c2_i32_181 : i32 to vector<6x4x48xi32>
    %422 = arith.muli %419, %421 : vector<6x4x48xi32>
    %c1_i32_182 = arith.constant 1 : i32
    %423 = vector.broadcast %c1_i32_182 : i32 to vector<6x4x48xi32>
    %424 = arith.addi %422, %423 : vector<6x4x48xi32>
    %c8_i32_183 = arith.constant 8 : i32
    %425 = vector.broadcast %c8_i32_183 : i32 to vector<6x4x48xi32>
    %426 = arith.muli %418, %425 : vector<6x4x48xi32>
    %427 = arith.addi %426, %424 : vector<6x4x48xi32>
    %428 = arith.cmpi eq, %420, %427 : vector<6x4x48xi32>
    %c0_i32_184 = arith.constant 0 : i32
    %429 = vector.broadcast %c0_i32_184 : i32 to vector<6x4x48xi32>
    %430 = arith.cmpi sge, %424, %429 : vector<6x4x48xi32>
    %431 = arith.andi %428, %430 : vector<6x4x48xi1>
    %c8_i32_185 = arith.constant 8 : i32
    %432 = vector.broadcast %c8_i32_185 : i32 to vector<6x4x48xi32>
    %433 = arith.cmpi slt, %424, %432 : vector<6x4x48xi32>
    %434 = arith.andi %431, %433 : vector<6x4x48xi1>
    %cst_186 = arith.constant 1.000000e+00 : f32
    %cst_187 = arith.constant 0.000000e+00 : f32
    %435 = vector.broadcast %cst_186 : f32 to vector<6x4x48xf32>
    %436 = vector.broadcast %cst_187 : f32 to vector<6x4x48xf32>
    %437 = arith.select %434, %435, %436 : vector<6x4x48xi1>, vector<6x4x48xf32>
    %438 = vector.shape_cast %437 : vector<6x4x48xf32> to vector<24x48xf32>
    %cst_188 = arith.constant dense<0.000000e+00> : vector<24x16xf32>
    %439 = tpu.matmul %438, %395, %cst_188 {dimension_numbers = #tpu.dot_dimension_numbers<[1], [0], [0], [1], [0, 0, 1, 1], [], []>} : vector<24x48xf32>, vector<48x16xf32>, vector<24x16xf32> -> vector<24x16xf32>
    %440 = arith.maximumf %417, %439 : vector<24x16xf32>
    %441 = vector.shape_cast %220 : vector<4x16xf32> to vector<2x2x16xf32>
    %442 = vector.extract_strided_slice %441 {offsets = [0, 0, 0], sizes = [2, 1, 16], strides = [1, 1, 1]} : vector<2x2x16xf32> to vector<2x1x16xf32>
    %443 = vector.shape_cast %442 : vector<2x1x16xf32> to vector<2x16xf32>
    %c0_189 = arith.constant 0 : index
    %c0_190 = arith.constant 0 : index
    %444 = vector.load %arg12[%c0_189, %c0_190] : memref<32x48xf32, #tpu.memory_space<vmem>>, vector<16x48xf32>
    %cst_191 = arith.constant dense<0.000000e+00> : vector<2x48xf32>
    %445 = tpu.matmul %443, %444, %cst_191 {dimension_numbers = #tpu.dot_dimension_numbers<[1], [0], [0], [1], [0, 0, 1, 1], [], []>} : vector<2x16xf32>, vector<16x48xf32>, vector<2x48xf32> -> vector<2x48xf32>
    %446 = vector.extract_strided_slice %441 {offsets = [0, 1, 0], sizes = [2, 1, 16], strides = [1, 1, 1]} : vector<2x2x16xf32> to vector<2x1x16xf32>
    %447 = vector.shape_cast %446 : vector<2x1x16xf32> to vector<2x16xf32>
    %c16 = arith.constant 16 : index
    %c0_192 = arith.constant 0 : index
    %448 = vector.load %arg12[%c16, %c0_192] : memref<32x48xf32, #tpu.memory_space<vmem>>, vector<16x48xf32>
    %cst_193 = arith.constant dense<0.000000e+00> : vector<2x48xf32>
    %449 = tpu.matmul %447, %448, %cst_193 {dimension_numbers = #tpu.dot_dimension_numbers<[1], [0], [0], [1], [0, 0, 1, 1], [], []>} : vector<2x16xf32>, vector<16x48xf32>, vector<2x48xf32> -> vector<2x48xf32>
    %450 = arith.addf %445, %449 : vector<2x48xf32>
    %c0_194 = arith.constant 0 : index
    %c0_195 = arith.constant 0 : index
    %451 = vector.load %arg14[%c0_194, %c0_195] : memref<1x48xf32, #tpu.memory_space<vmem>>, vector<1x48xf32>
    %452 = vector.broadcast %451 : vector<1x48xf32> to vector<2x48xf32>
    %453 = arith.addf %450, %452 : vector<2x48xf32>
    %454 = vector.shape_cast %440 : vector<24x16xf32> to vector<6x4x16xf32>
    %455 = vector.extract_strided_slice %454 {offsets = [0, 0, 0], sizes = [6, 1, 16], strides = [1, 1, 1]} : vector<6x4x16xf32> to vector<6x1x16xf32>
    %456 = vector.shape_cast %455 : vector<6x1x16xf32> to vector<6x16xf32>
    %c0_196 = arith.constant 0 : index
    %c0_197 = arith.constant 0 : index
    %457 = vector.load %arg13[%c0_196, %c0_197] : memref<64x48xf32, #tpu.memory_space<vmem>>, vector<16x48xf32>
    %cst_198 = arith.constant dense<0.000000e+00> : vector<6x48xf32>
    %458 = tpu.matmul %456, %457, %cst_198 {dimension_numbers = #tpu.dot_dimension_numbers<[1], [0], [0], [1], [0, 0, 1, 1], [], []>} : vector<6x16xf32>, vector<16x48xf32>, vector<6x48xf32> -> vector<6x48xf32>
    %459 = vector.extract_strided_slice %454 {offsets = [0, 1, 0], sizes = [6, 1, 16], strides = [1, 1, 1]} : vector<6x4x16xf32> to vector<6x1x16xf32>
    %460 = vector.shape_cast %459 : vector<6x1x16xf32> to vector<6x16xf32>
    %c16_199 = arith.constant 16 : index
    %c0_200 = arith.constant 0 : index
    %461 = vector.load %arg13[%c16_199, %c0_200] : memref<64x48xf32, #tpu.memory_space<vmem>>, vector<16x48xf32>
    %cst_201 = arith.constant dense<0.000000e+00> : vector<6x48xf32>
    %462 = tpu.matmul %460, %461, %cst_201 {dimension_numbers = #tpu.dot_dimension_numbers<[1], [0], [0], [1], [0, 0, 1, 1], [], []>} : vector<6x16xf32>, vector<16x48xf32>, vector<6x48xf32> -> vector<6x48xf32>
    %463 = arith.addf %458, %462 : vector<6x48xf32>
    %464 = vector.extract_strided_slice %454 {offsets = [0, 2, 0], sizes = [6, 1, 16], strides = [1, 1, 1]} : vector<6x4x16xf32> to vector<6x1x16xf32>
    %465 = vector.shape_cast %464 : vector<6x1x16xf32> to vector<6x16xf32>
    %c32 = arith.constant 32 : index
    %c0_202 = arith.constant 0 : index
    %466 = vector.load %arg13[%c32, %c0_202] : memref<64x48xf32, #tpu.memory_space<vmem>>, vector<16x48xf32>
    %cst_203 = arith.constant dense<0.000000e+00> : vector<6x48xf32>
    %467 = tpu.matmul %465, %466, %cst_203 {dimension_numbers = #tpu.dot_dimension_numbers<[1], [0], [0], [1], [0, 0, 1, 1], [], []>} : vector<6x16xf32>, vector<16x48xf32>, vector<6x48xf32> -> vector<6x48xf32>
    %468 = arith.addf %463, %467 : vector<6x48xf32>
    %469 = vector.extract_strided_slice %454 {offsets = [0, 3, 0], sizes = [6, 1, 16], strides = [1, 1, 1]} : vector<6x4x16xf32> to vector<6x1x16xf32>
    %470 = vector.shape_cast %469 : vector<6x1x16xf32> to vector<6x16xf32>
    %c48 = arith.constant 48 : index
    %c0_204 = arith.constant 0 : index
    %471 = vector.load %arg13[%c48, %c0_204] : memref<64x48xf32, #tpu.memory_space<vmem>>, vector<16x48xf32>
    %cst_205 = arith.constant dense<0.000000e+00> : vector<6x48xf32>
    %472 = tpu.matmul %470, %471, %cst_205 {dimension_numbers = #tpu.dot_dimension_numbers<[1], [0], [0], [1], [0, 0, 1, 1], [], []>} : vector<6x16xf32>, vector<16x48xf32>, vector<6x48xf32> -> vector<6x48xf32>
    %473 = arith.addf %468, %472 : vector<6x48xf32>
    %474 = vector.shape_cast %453 : vector<2x48xf32> to vector<2x1x48xf32>
    %475 = vector.shape_cast %474 : vector<2x1x48xf32> to vector<2x1x48xf32>
    %476 = vector.broadcast %475 : vector<2x1x48xf32> to vector<2x3x48xf32>
    %477 = vector.shape_cast %476 : vector<2x3x48xf32> to vector<6x48xf32>
    %478 = arith.addf %473, %477 : vector<6x48xf32>
    %c0_206 = arith.constant 0 : index
    %c0_207 = arith.constant 0 : index
    %479 = vector.load %arg15[%c0_206, %c0_207] : memref<48x1xf32, #tpu.memory_space<vmem>>, vector<48x1xf32>
    %cst_208 = arith.constant dense<0.000000e+00> : vector<6x1xf32>
    %480 = tpu.matmul %478, %479, %cst_208 {dimension_numbers = #tpu.dot_dimension_numbers<[1], [0], [0], [1], [0, 0, 1, 1], [], []>} : vector<6x48xf32>, vector<48x1xf32>, vector<6x1xf32> -> vector<6x1xf32>
    %c0_209 = arith.constant 0 : index
    %481 = memref.load %arg16[%c0_209] : memref<1xf32, #tpu.memory_space<smem>>
    %482 = vector.broadcast %481 : f32 to vector<6x1xf32>
    %483 = arith.addf %480, %482 : vector<6x1xf32>
    %c0_210 = arith.constant 0 : index
    %c0_211 = arith.constant 0 : index
    %484 = vector.load %arg17[%c0_210, %c0_211] : memref<6x1xf32, #tpu.memory_space<vmem>>, vector<6x1xf32>
    tpu.vector_store %arg17[%c0_210, %c0_211], %483 {strides = array<i32>} : memref<6x1xf32, #tpu.memory_space<vmem>>, vector<6x1xf32>,
    return
  }
  func.func @transform_0(%arg0: i32) -> (i32, i32) {
    %c0_i32 = arith.constant 0 : i32
    %c0_i32_0 = arith.constant 0 : i32
    %c0_i32_1 = arith.constant 0 : i32
    return %c0_i32, %c0_i32_0 : i32, i32
  }
  func.func @transform_1(%arg0: i32) -> (i32, i32) {
    %c0_i32 = arith.constant 0 : i32
    %c0_i32_0 = arith.constant 0 : i32
    %c0_i32_1 = arith.constant 0 : i32
    return %c0_i32, %c0_i32_0 : i32, i32
  }
  func.func @transform_2(%arg0: i32) -> (i32, i32) {
    %c0_i32 = arith.constant 0 : i32
    %c0_i32_0 = arith.constant 0 : i32
    %c0_i32_1 = arith.constant 0 : i32
    return %c0_i32, %c0_i32_0 : i32, i32
  }
  func.func @transform_3(%arg0: i32) -> (i32, i32, i32) {
    %c0_i32 = arith.constant 0 : i32
    %c0_i32_0 = arith.constant 0 : i32
    %c0_i32_1 = arith.constant 0 : i32
    %c0_i32_2 = arith.constant 0 : i32
    return %c0_i32, %c0_i32_0, %c0_i32_1 : i32, i32, i32
  }
  func.func @transform_4(%arg0: i32) -> (i32, i32) {
    %c0_i32 = arith.constant 0 : i32
    %c0_i32_0 = arith.constant 0 : i32
    %c0_i32_1 = arith.constant 0 : i32
    return %c0_i32, %c0_i32_0 : i32, i32
  }
  func.func @transform_5(%arg0: i32) -> (i32, i32, i32) {
    %c0_i32 = arith.constant 0 : i32
    %c0_i32_0 = arith.constant 0 : i32
    %c0_i32_1 = arith.constant 0 : i32
    %c0_i32_2 = arith.constant 0 : i32
    return %c0_i32, %c0_i32_0, %c0_i32_1 : i32, i32, i32
  }
  func.func @transform_6(%arg0: i32) -> (i32, i32) {
    %c0_i32 = arith.constant 0 : i32
    %c0_i32_0 = arith.constant 0 : i32
    %c0_i32_1 = arith.constant 0 : i32
    return %c0_i32, %c0_i32_0 : i32, i32
  }
  func.func @transform_7(%arg0: i32) -> (i32, i32, i32) {
    %c0_i32 = arith.constant 0 : i32
    %c0_i32_0 = arith.constant 0 : i32
    %c0_i32_1 = arith.constant 0 : i32
    %c0_i32_2 = arith.constant 0 : i32
    return %c0_i32, %c0_i32_0, %c0_i32_1 : i32, i32, i32
  }
  func.func @transform_8(%arg0: i32) -> (i32, i32) {
    %c0_i32 = arith.constant 0 : i32
    %c0_i32_0 = arith.constant 0 : i32
    %c0_i32_1 = arith.constant 0 : i32
    return %c0_i32, %c0_i32_0 : i32, i32
  }
  func.func @transform_9(%arg0: i32) -> (i32, i32, i32) {
    %c0_i32 = arith.constant 0 : i32
    %c0_i32_0 = arith.constant 0 : i32
    %c0_i32_1 = arith.constant 0 : i32
    %c0_i32_2 = arith.constant 0 : i32
    return %c0_i32, %c0_i32_0, %c0_i32_1 : i32, i32, i32
  }
  func.func @transform_10(%arg0: i32) -> (i32, i32) {
    %c0_i32 = arith.constant 0 : i32
    %c0_i32_0 = arith.constant 0 : i32
    %c0_i32_1 = arith.constant 0 : i32
    return %c0_i32, %c0_i32_0 : i32, i32
  }
  func.func @transform_11(%arg0: i32) -> (i32, i32) {
    %c0_i32 = arith.constant 0 : i32
    %c0_i32_0 = arith.constant 0 : i32
    %c0_i32_1 = arith.constant 0 : i32
    return %c0_i32, %c0_i32_0 : i32, i32
  }
  func.func @transform_12(%arg0: i32) -> (i32, i32) {
    %c0_i32 = arith.constant 0 : i32
    %c0_i32_0 = arith.constant 0 : i32
    %c0_i32_1 = arith.constant 0 : i32
    return %c0_i32, %c0_i32_0 : i32, i32
  }
  func.func @transform_13(%arg0: i32) -> (i32, i32) {
    %c0_i32 = arith.constant 0 : i32
    %c0_i32_0 = arith.constant 0 : i32
    %c0_i32_1 = arith.constant 0 : i32
    return %c0_i32, %c0_i32_0 : i32, i32
  }
  func.func @transform_14(%arg0: i32) -> (i32, i32) {
    %c0_i32 = arith.constant 0 : i32
    %c0_i32_0 = arith.constant 0 : i32
    %c0_i32_1 = arith.constant 0 : i32
    return %c0_i32, %c0_i32_0 : i32, i32
  }
  func.func @transform_15(%arg0: i32) -> i32 {
    %c0_i32 = arith.constant 0 : i32
    %c0_i32_0 = arith.constant 0 : i32
    return %c0_i32 : i32
  }
  func.func @transform_16(%arg0: i32) -> (i32, i32) {
    %c0_i32 = arith.constant 0 : i32
    %c0_i32_0 = arith.constant 0 : i32
    %c0_i32_1 = arith.constant 0 : i32
    return %c0_i32, %c0_i32_0 : i32, i32
  }
}

</mosaic_0001>

<llo_original>
// kernel: tpu_custom_call.1
$region0: #{tpu_custom_call.1}
  #allocation0 [shape = 'u32[]', space=smem, size = 0x4, offset = 0x4, fixed_abs, tag = 'smem constant byte address 0x4 - core index']
  #allocation1 [shape = 'u32[72,128]{1,0:T(1,128)}', space=vmem, size = 0x9000, scoped, tag = 'internal scratch']
  #allocation2 [shape = 'f32[1]{0:T(128)S(6)}', space=smem, size = 0x200, scoped, tag = 'scoped memory for tpu_custom_call.1']
  %s0 = inlined_call_operand.vmem [shape: s32[2,8], index: 0, kind: input, shape index: {}]
  %s1 = inlined_call_operand.vmem [shape: s32[6,16], index: 1, kind: input, shape index: {}]
  %s2 = inlined_call_operand.vmem [shape: f32[100,32], index: 2, kind: input, shape index: {}]
  %s3 = inlined_call_operand.vmem [shape: f32[3,32,16], index: 3, kind: input, shape index: {}]
  %s4 = inlined_call_operand.vmem [shape: f32[1,16], index: 4, kind: input, shape index: {}]
  %s5 = inlined_call_operand.vmem [shape: f32[3,16,16], index: 5, kind: input, shape index: {}]
  %s6 = inlined_call_operand.vmem [shape: f32[1,16], index: 6, kind: input, shape index: {}]
  %s7 = inlined_call_operand.vmem [shape: f32[3,32,16], index: 7, kind: input, shape index: {}]
  %s8 = inlined_call_operand.vmem [shape: f32[1,16], index: 8, kind: input, shape index: {}]
  %s9 = inlined_call_operand.vmem [shape: f32[3,16,16], index: 9, kind: input, shape index: {}]
  %s10 = inlined_call_operand.vmem [shape: f32[1,16], index: 10, kind: input, shape index: {}]
  %s11 = inlined_call_operand.vmem [shape: f32[32,48], index: 11, kind: input, shape index: {}]
  %s12 = inlined_call_operand.vmem [shape: f32[64,48], index: 12, kind: input, shape index: {}]
  %s13 = inlined_call_operand.vmem [shape: f32[1,48], index: 13, kind: input, shape index: {}]
  %s14 = inlined_call_operand.vmem [shape: f32[48,1], index: 14, kind: input, shape index: {}]
  %s15 = inlined_call_operand.<no memory space> [shape: f32[1], index: 15, kind: input, shape index: {}]
  %s16 = inlined_call_operand.vmem [shape: f32[6,1], index: 16, kind: output, shape index: {}]
  %s17 = sld [smem:[#allocation0]]
  $region74: #{tpu_custom_call.1} parent=0
    _
  %s19 = ssub.s32 1, %s17
  %s20 = scalar_select 0, %s19, %s17
  %21 = sst [smem:[#allocation2]] %s15
  // Predicated region
  $region2: #{tpu_custom_call.1} parent=0 // pred_check
    _
  $region3: #{tpu_custom_call.1} parent=0 // pred_check_branch
    %23 = sbr.rel (0) target = $region5
  $region4: #{tpu_custom_call.1} parent=0 // pred_region
    _
  $region5: #{tpu_custom_call.1} parent=0 // pred_fallthru
    _
  // Predicated region
  $region6: #{tpu_custom_call.1} parent=0 // pred_check
    _
  $region7: #{tpu_custom_call.1} parent=0 // pred_check_branch
    %25 = sbr.rel (0) target = $region9
  $region8: #{tpu_custom_call.1} parent=0 // pred_region
    _
  $region9: #{tpu_custom_call.1} parent=0 // pred_fallthru
    _
  // Predicated region
  $region10: #{tpu_custom_call.1} parent=0 // pred_check
    _
  $region11: #{tpu_custom_call.1} parent=0 // pred_check_branch
    %27 = sbr.rel (0) target = $region13
  $region12: #{tpu_custom_call.1} parent=0 // pred_region
    _
  $region13: #{tpu_custom_call.1} parent=0 // pred_fallthru
    _
  // Predicated region
  $region14: #{tpu_custom_call.1} parent=0 // pred_check
    _
  $region15: #{tpu_custom_call.1} parent=0 // pred_check_branch
    %29 = sbr.rel (0) target = $region17
  $region16: #{tpu_custom_call.1} parent=0 // pred_region
    _
  $region17: #{tpu_custom_call.1} parent=0 // pred_fallthru
    _
  // Predicated region
  $region18: #{tpu_custom_call.1} parent=0 // pred_check
    _
  $region19: #{tpu_custom_call.1} parent=0 // pred_check_branch
    %31 = sbr.rel (0) target = $region21
  $region20: #{tpu_custom_call.1} parent=0 // pred_region
    _
  $region21: #{tpu_custom_call.1} parent=0 // pred_fallthru
    _
  // Predicated region
  $region22: #{tpu_custom_call.1} parent=0 // pred_check
    _
  $region23: #{tpu_custom_call.1} parent=0 // pred_check_branch
    %33 = sbr.rel (0) target = $region25
  $region24: #{tpu_custom_call.1} parent=0 // pred_region
    _
  $region25: #{tpu_custom_call.1} parent=0 // pred_fallthru
    _
  // Predicated region
  $region26: #{tpu_custom_call.1} parent=0 // pred_check
    _
  $region27: #{tpu_custom_call.1} parent=0 // pred_check_branch
    %35 = sbr.rel (0) target = $region29
  $region28: #{tpu_custom_call.1} parent=0 // pred_region
    _
  $region29: #{tpu_custom_call.1} parent=0 // pred_fallthru
    _
  // Predicated region
  $region30: #{tpu_custom_call.1} parent=0 // pred_check
    _
  $region31: #{tpu_custom_call.1} parent=0 // pred_check_branch
    %37 = sbr.rel (0) target = $region33
  $region32: #{tpu_custom_call.1} parent=0 // pred_region
    _
  $region33: #{tpu_custom_call.1} parent=0 // pred_fallthru
    _
  // Predicated region
  $region34: #{tpu_custom_call.1} parent=0 // pred_check
    _
  $region35: #{tpu_custom_call.1} parent=0 // pred_check_branch
    %39 = sbr.rel (0) target = $region37
  $region36: #{tpu_custom_call.1} parent=0 // pred_region
    _
  $region37: #{tpu_custom_call.1} parent=0 // pred_fallthru
    _
  // Predicated region
  $region38: #{tpu_custom_call.1} parent=0 // pred_check
    _
  $region39: #{tpu_custom_call.1} parent=0 // pred_check_branch
    %41 = sbr.rel (0) target = $region41
  $region40: #{tpu_custom_call.1} parent=0 // pred_region
    _
  $region41: #{tpu_custom_call.1} parent=0 // pred_fallthru
    _
  // Predicated region
  $region42: #{tpu_custom_call.1} parent=0 // pred_check
    _
  $region43: #{tpu_custom_call.1} parent=0 // pred_check_branch
    %43 = sbr.rel (0) target = $region45
  $region44: #{tpu_custom_call.1} parent=0 // pred_region
    _
  $region45: #{tpu_custom_call.1} parent=0 // pred_fallthru
    _
  // Predicated region
  $region46: #{tpu_custom_call.1} parent=0 // pred_check
    _
  $region47: #{tpu_custom_call.1} parent=0 // pred_check_branch
    %45 = sbr.rel (0) target = $region49
  $region48: #{tpu_custom_call.1} parent=0 // pred_region
    _
  $region49: #{tpu_custom_call.1} parent=0 // pred_fallthru
    _
  // Predicated region
  $region50: #{tpu_custom_call.1} parent=0 // pred_check
    _
  $region51: #{tpu_custom_call.1} parent=0 // pred_check_branch
    %47 = sbr.rel (0) target = $region53
  $region52: #{tpu_custom_call.1} parent=0 // pred_region
    _
  $region53: #{tpu_custom_call.1} parent=0 // pred_fallthru
    _
  // Predicated region
  $region54: #{tpu_custom_call.1} parent=0 // pred_check
    _
  $region55: #{tpu_custom_call.1} parent=0 // pred_check_branch
    %49 = sbr.rel (0) target = $region57
  $region56: #{tpu_custom_call.1} parent=0 // pred_region
    _
  $region57: #{tpu_custom_call.1} parent=0 // pred_fallthru
    _
  // Predicated region
  $region58: #{tpu_custom_call.1} parent=0 // pred_check
    _
  $region59: #{tpu_custom_call.1} parent=0 // pred_check_branch
    %51 = sbr.rel (0) target = $region61
  $region60: #{tpu_custom_call.1} parent=0 // pred_region
    _
  $region61: #{tpu_custom_call.1} parent=0 // pred_fallthru
    _
  // Predicated region
  $region62: #{tpu_custom_call.1} parent=0 // pred_check
    _
  $region63: #{tpu_custom_call.1} parent=0 // pred_check_branch
    %53 = sbr.rel (0) target = $region65
  $region64: #{tpu_custom_call.1} parent=0 // pred_region
    _
  $region65: #{tpu_custom_call.1} parent=0 // pred_fallthru
    _
  %v54 = vld [vmem:[%s2] sm:$0xff]
  %v55 = vld [vmem:[%s2 + $0x8] sm:$0xff]
  %v56 = vld [vmem:[%s2 + $0x10] sm:$0xff]
  %v57 = vld [vmem:[%s2 + $0x18] sm:$0xff]
  %v58 = vld [vmem:[%s2 + $0x20] sm:$0xff]
  %v59 = vld [vmem:[%s2 + $0x28] sm:$0xff]
  %v60 = vld [vmem:[%s2 + $0x30] sm:$0xff]
  %v61 = vld [vmem:[%s2 + $0x38] sm:$0xff]
  %v62 = vld [vmem:[%s2 + $0x40] sm:$0xff]
  %v63 = vld [vmem:[%s2 + $0x48] sm:$0xff]
  %v64 = vld [vmem:[%s2 + $0x50] sm:$0xff]
  %v65 = vld [vmem:[%s2 + $0x58] sm:$0xff]
  %v66 = vld [vmem:[%s2 + $0x60] sm:$0xf]
  %v67 = vld [vmem:[%s0] sm:$0x3]
  %v68 = vlaneseq
  %v69 = vand.u32 %v68, 127
  %v70 = vperm.slane %v67, 0
  %v71 = vlaneseq
  %v72 = vshrl.u32 %v71, 7
  %74 = vset.pattern.permute.xlu0 %v72
  %75 = vperm.xlu0 %74, %v70
  %v76 = vpop.permute.xlu0 %75
  %v77 = vperm.slane %v67, 1
  %v78 = vlaneseq
  %v79 = vshrl.u32 %v78, 7
  %81 = vset.pattern.permute.xlu0 %v79
  %82 = vperm.xlu0 %81, %v77
  %v83 = vpop.permute.xlu0 %82
  %vm84 = vcmp.eq.s32.totalorder %v76, %v69
  %vm85 = vcmp.eq.s32.totalorder %v83, %v69
  %v86 = vsel %vm84, 1.0, 0.0
  %v87 = vsel %vm85, 1.0, 0.0
  %vm88 = vcmask 818176
  %v90 = vsel %vm88, %v86, 0
  %v93 = vsel %vm88, %v87, 0
  %vm95 = vcmask 1043456
  %v97 = vsel %vm95, %v66, 0
  %99 = vmatpush.msra.mxu0 0.0
  %100 = vmatpush.msra.mxu0 0.0
  %101 = vmatpush.msra.mxu0 0.0
  %102 = vmatpush.msra.mxu0 %v97
  %103 = vmatpush.msra.mxu0 %v65
  %104 = vmatpush.msra.mxu0 %v64
  %105 = vmatpush.msra.mxu0 %v63
  %106 = vmatpush.msra.mxu0 %v62
  %107 = vmatpush.msra.mxu0 %v61
  %108 = vmatpush.msra.mxu0 %v60
  %109 = vmatpush.msra.mxu0 %v59
  %110 = vmatpush.msra.mxu0 %v58
  %111 = vmatpush.msra.mxu0 %v57
  %112 = vmatpush.msra.mxu0 %v56
  %113 = vmatpush.msra.mxu0 %v55
  %114 = vmatpush.msra.mxu0 %v54
  %115 = vmatmul.f32.gmra.mxu0 %v90
  %v116 = vpop.f32.mrf.mxu0
  %v117 = vadd.f32 0.0, %v116
  %118 = vmatmul.f32.gmra.mxu0 %v93
  %v119 = vpop.f32.mrf.mxu0
  %v120 = vadd.f32 0.0, %v119
  %121 = vdwg.mxu0
  %v122 = vlaneseq
  %v123 = vshrl.u32 %v122, 7
  %v124 = vadd.s32 %v123, 4294967295
  %v125 = vadd.s32 %v124, 8
  %vm126 = vcmp.eq.s32.totalorder %v69, %v124
  %vm127 = vcmp.eq.s32.totalorder %v69, %v125
  %vm128 = vcmp.ge.s32.totalorder %v124, 0
  %vm129 = vmand %vm126, %vm128
  %vm130 = vmand %vm127, %vm128
  %vm131 = vcmp.lt.s32.totalorder %v124, 8
  %vm132 = vmand %vm129, %vm131
  %vm133 = vmand %vm130, %vm131
  %v134 = vsel %vm132, 1.0, 0.0
  %v135 = vsel %vm133, 1.0, 0.0
  %vm136 = vcmask 130048
  %v138 = vsel %vm136, %v134, 0
  %v141 = vsel %vm136, %v135, 0
  %143 = vmatpush.msra.mxu0 0.0
  %144 = vmatpush.msra.mxu0 0.0
  %145 = vmatpush.msra.mxu0 0.0
  %146 = vmatpush.msra.mxu0 0.0
  %147 = vmatpush.msra.mxu0 0.0
  %148 = vmatpush.msra.mxu0 0.0
  %149 = vmatpush.msra.mxu0 0.0
  %150 = vmatpush.msra.mxu0 0.0
  %151 = vmatpush.msra.mxu0 0.0
  %152 = vmatpush.msra.mxu0 0.0
  %153 = vmatpush.msra.mxu0 0.0
  %154 = vmatpush.msra.mxu0 0.0
  %155 = vmatpush.msra.mxu0 0.0
  %156 = vmatpush.msra.mxu0 0.0
  %157 = vmatpush.msra.mxu0 %v120
  %158 = vmatpush.msra.mxu0 %v117
  %159 = vmatmul.f32.gmra.mxu0 %v138
  %v160 = vpop.f32.mrf.mxu0
  %v161 = vadd.f32 0.0, %v160
  %162 = vmatmul.f32.gmra.mxu0 %v141
  %v163 = vpop.f32.mrf.mxu0
  %v164 = vadd.f32 0.0, %v163
  %165 = vdwg.mxu0
  %v166 = vld [vmem:[%s3] sm:$0xff]
  %v167 = vld [vmem:[%s3 + $0x8] sm:$0xff]
  %v168 = vld [vmem:[%s3 + $0x10] sm:$0xff]
  %v169 = vld [vmem:[%s3 + $0x18] sm:$0xff]
  %s170 = scalar_lea.vmem %s3, 32
  %v171 = vld [vmem:[%s170] sm:$0xff]
  %v172 = vld [vmem:[%s170 + $0x8] sm:$0xff]
  %v173 = vld [vmem:[%s170 + $0x10] sm:$0xff]
  %v174 = vld [vmem:[%s170 + $0x18] sm:$0xff]
  %vm175 = vcmask 261120
  %v177 = vsel %vm175, %v117, 0
  %v180 = vsel %vm175, %v120, 0
  %182 = vmatpush.msra.mxu0 0.0
  %183 = vmatpush.msra.mxu0 0.0
  %184 = vmatpush.msra.mxu0 0.0
  %185 = vmatpush.msra.mxu0 0.0
  %186 = vmatpush.msra.mxu0 0.0
  %187 = vmatpush.msra.mxu0 0.0
  %188 = vmatpush.msra.mxu0 0.0
  %189 = vmatpush.msra.mxu0 0.0
  %190 = vmatpush.msra.mxu0 0.0
  %191 = vmatpush.msra.mxu0 0.0
  %192 = vmatpush.msra.mxu0 0.0
  %193 = vmatpush.msra.mxu0 0.0
  %194 = vmatpush.msra.mxu0 %v174
  %195 = vmatpush.msra.mxu0 %v173
  %196 = vmatpush.msra.mxu0 %v172
  %197 = vmatpush.msra.mxu0 %v171
  %198 = vmatmul.f32.gmra.mxu0 %v177
  %v199 = vpop.f32.mrf.mxu0
  %v200 = vadd.f32 0.0, %v199
  %201 = vmatmul.f32.gmra.mxu0 %v180
  %v202 = vpop.f32.mrf.mxu0
  %v203 = vadd.f32 0.0, %v202
  %204 = vdwg.mxu0
  %v206 = vsel %vm175, %v161, 0
  %v209 = vsel %vm175, %v164, 0
  %211 = vmatpush.msra.mxu0 0.0
  %212 = vmatpush.msra.mxu0 0.0
  %213 = vmatpush.msra.mxu0 0.0
  %214 = vmatpush.msra.mxu0 0.0
  %215 = vmatpush.msra.mxu0 0.0
  %216 = vmatpush.msra.mxu0 0.0
  %217 = vmatpush.msra.mxu0 0.0
  %218 = vmatpush.msra.mxu0 0.0
  %219 = vmatpush.msra.mxu0 0.0
  %220 = vmatpush.msra.mxu0 0.0
  %221 = vmatpush.msra.mxu0 0.0
  %222 = vmatpush.msra.mxu0 0.0
  %223 = vmatpush.msra.mxu0 %v169
  %224 = vmatpush.msra.mxu0 %v168
  %225 = vmatpush.msra.mxu0 %v167
  %226 = vmatpush.msra.mxu0 %v166
  %227 = vmatmul.f32.gmra.mxu0 %v206
  %v228 = vpop.f32.mrf.mxu0
  %v229 = vadd.f32 %v200, %v228
  %230 = vmatmul.f32.gmra.mxu0 %v209
  %v231 = vpop.f32.mrf.mxu0
  %v232 = vadd.f32 %v203, %v231
  %233 = vdwg.mxu0
  %v234 = vadd.s32 %v123, 1
  %v235 = vadd.s32 %v234, 8
  %vm236 = vcmp.eq.s32.totalorder %v69, %v234
  %vm237 = vcmp.eq.s32.totalorder %v69, %v235
  %vm238 = vcmp.ge.s32.totalorder %v234, 0
  %vm239 = vmand %vm236, %vm238
  %vm240 = vmand %vm237, %vm238
  %vm241 = vcmp.lt.s32.totalorder %v234, 8
  %vm242 = vmand %vm239, %vm241
  %vm243 = vmand %vm240, %vm241
  %v244 = vsel %vm242, 1.0, 0.0
  %v245 = vsel %vm243, 1.0, 0.0
  %v247 = vsel %vm136, %v244, 0
  %v250 = vsel %vm136, %v245, 0
  %252 = vmatpush.msra.mxu0 0.0
  %253 = vmatpush.msra.mxu0 0.0
  %254 = vmatpush.msra.mxu0 0.0
  %255 = vmatpush.msra.mxu0 0.0
  %256 = vmatpush.msra.mxu0 0.0
  %257 = vmatpush.msra.mxu0 0.0
  %258 = vmatpush.msra.mxu0 0.0
  %259 = vmatpush.msra.mxu0 0.0
  %260 = vmatpush.msra.mxu0 0.0
  %261 = vmatpush.msra.mxu0 0.0
  %262 = vmatpush.msra.mxu0 0.0
  %263 = vmatpush.msra.mxu0 0.0
  %264 = vmatpush.msra.mxu0 0.0
  %265 = vmatpush.msra.mxu0 0.0
  %266 = vmatpush.msra.mxu0 %v120
  %267 = vmatpush.msra.mxu0 %v117
  %268 = vmatmul.f32.gmra.mxu0 %v247
  %v269 = vpop.f32.mrf.mxu0
  %v270 = vadd.f32 0.0, %v269
  %271 = vmatmul.f32.gmra.mxu0 %v250
  %v272 = vpop.f32.mrf.mxu0
  %v273 = vadd.f32 0.0, %v272
  %274 = vdwg.mxu0
  %s275 = scalar_lea.vmem %s3, 64
  %v276 = vld [vmem:[%s275] sm:$0xff]
  %v277 = vld [vmem:[%s275 + $0x8] sm:$0xff]
  %v278 = vld [vmem:[%s275 + $0x10] sm:$0xff]
  %v279 = vld [vmem:[%s275 + $0x18] sm:$0xff]
  %v281 = vsel %vm175, %v270, 0
  %v284 = vsel %vm175, %v273, 0
  %286 = vmatpush.msra.mxu0 0.0
  %287 = vmatpush.msra.mxu0 0.0
  %288 = vmatpush.msra.mxu0 0.0
  %289 = vmatpush.msra.mxu0 0.0
  %290 = vmatpush.msra.mxu0 0.0
  %291 = vmatpush.msra.mxu0 0.0
  %292 = vmatpush.msra.mxu0 0.0
  %293 = vmatpush.msra.mxu0 0.0
  %294 = vmatpush.msra.mxu0 0.0
  %295 = vmatpush.msra.mxu0 0.0
  %296 = vmatpush.msra.mxu0 0.0
  %297 = vmatpush.msra.mxu0 0.0
  %298 = vmatpush.msra.mxu0 %v279
  %299 = vmatpush.msra.mxu0 %v278
  %300 = vmatpush.msra.mxu0 %v277
  %301 = vmatpush.msra.mxu0 %v276
  %302 = vmatmul.f32.gmra.mxu0 %v281
  %v303 = vpop.f32.mrf.mxu0
  %v304 = vadd.f32 0.0, %v303
  %305 = vmatmul.f32.gmra.mxu0 %v284
  %v306 = vpop.f32.mrf.mxu0
  %v307 = vadd.f32 0.0, %v306
  %308 = vdwg.mxu0
  %v309 = vadd.f32 %v229, %v304
  %v310 = vadd.f32 %v232, %v307
  %v311 = vld [vmem:[%s4] sm:$0x1]
  %v313 = vperm.slane %v311, 0
  %v315 = vadd.f32 %v309, %v313
  %v316 = vadd.f32 %v310, %v313
  %v317 = vmax.f32 %v315, 0.0
  %v318 = vmax.f32 %v316, 0.0
  %v319 = vmul.u32 %v123, 2
  %v320 = vadd.s32 %v319, 8
  %vm321 = vcmp.eq.s32.totalorder %v69, %v319
  %vm322 = vcmp.eq.s32.totalorder %v69, %v320
  %vm323 = vcmp.ge.s32.totalorder %v319, 0
  %vm324 = vmand %vm321, %vm323
  %vm325 = vmand %vm322, %vm323
  %vm326 = vcmp.lt.s32.totalorder %v319, 8
  %vm327 = vmand %vm324, %vm326
  %vm328 = vmand %vm325, %vm326
  %v329 = vsel %vm327, 1.0, 0.0
  %v330 = vsel %vm328, 1.0, 0.0
  %333 = vst [vmem:[#allocation1] ss:$2 sm:$0xff] %v329
  %s334 = scalar_lea.vmem [#allocation1], 1
  %335 = vst [vmem:[%s334] ss:$2 sm:$0xff] %v330
  %v336 = vld.sshfl [vmem:[#allocation1] sm:$0xff pattern:$0x75316420]
  %v337 = vsel %vm136, %v336, 0
  %339 = vmatpush.msra.mxu0 0.0
  %340 = vmatpush.msra.mxu0 0.0
  %341 = vmatpush.msra.mxu0 0.0
  %342 = vmatpush.msra.mxu0 0.0
  %343 = vmatpush.msra.mxu0 0.0
  %344 = vmatpush.msra.mxu0 0.0
  %345 = vmatpush.msra.mxu0 0.0
  %346 = vmatpush.msra.mxu0 0.0
  %347 = vmatpush.msra.mxu0 0.0
  %348 = vmatpush.msra.mxu0 0.0
  %349 = vmatpush.msra.mxu0 0.0
  %350 = vmatpush.msra.mxu0 0.0
  %351 = vmatpush.msra.mxu0 0.0
  %352 = vmatpush.msra.mxu0 0.0
  %353 = vmatpush.msra.mxu0 %v318
  %354 = vmatpush.msra.mxu0 %v317
  %355 = vmatmul.f32.gmra.mxu0 %v337
  %v356 = vpop.f32.mrf.mxu0
  %v357 = vadd.f32 0.0, %v356
  %358 = vdwg.mxu0
  %v359 = vadd.s32 %v319, 1
  %v360 = vadd.s32 %v359, 8
  %vm361 = vcmp.eq.s32.totalorder %v69, %v359
  %vm362 = vcmp.eq.s32.totalorder %v69, %v360
  %vm363 = vcmp.ge.s32.totalorder %v359, 0
  %vm364 = vmand %vm361, %vm363
  %vm365 = vmand %vm362, %vm363
  %vm366 = vcmp.lt.s32.totalorder %v359, 8
  %vm367 = vmand %vm364, %vm366
  %vm368 = vmand %vm365, %vm366
  %v369 = vsel %vm367, 1.0, 0.0
  %v370 = vsel %vm368, 1.0, 0.0
  %373 = vst [vmem:[#allocation1] ss:$2 sm:$0xff] %v369
  %s374 = scalar_lea.vmem [#allocation1], 1
  %375 = vst [vmem:[%s374] ss:$2 sm:$0xff] %v370
  %v376 = vld.sshfl [vmem:[#allocation1] sm:$0xff pattern:$0x75316420]
  %v377 = vsel %vm136, %v376, 0
  %379 = vmatpush.msra.mxu0 0.0
  %380 = vmatpush.msra.mxu0 0.0
  %381 = vmatpush.msra.mxu0 0.0
  %382 = vmatpush.msra.mxu0 0.0
  %383 = vmatpush.msra.mxu0 0.0
  %384 = vmatpush.msra.mxu0 0.0
  %385 = vmatpush.msra.mxu0 0.0
  %386 = vmatpush.msra.mxu0 0.0
  %387 = vmatpush.msra.mxu0 0.0
  %388 = vmatpush.msra.mxu0 0.0
  %389 = vmatpush.msra.mxu0 0.0
  %390 = vmatpush.msra.mxu0 0.0
  %391 = vmatpush.msra.mxu0 0.0
  %392 = vmatpush.msra.mxu0 0.0
  %393 = vmatpush.msra.mxu0 %v318
  %394 = vmatpush.msra.mxu0 %v317
  %395 = vmatmul.f32.gmra.mxu0 %v377
  %v396 = vpop.f32.mrf.mxu0
  %v397 = vadd.f32 0.0, %v396
  %398 = vdwg.mxu0
  %v399 = vmax.f32 %v357, %v397
  %v400 = vadd.s32 %v124, 4
  %vm401 = vcmp.eq.s32.totalorder %v69, %v400
  %vm402 = vmand %vm401, %vm128
  %vm403 = vcmp.lt.s32.totalorder %v124, 4
  %vm404 = vmand %vm129, %vm403
  %vm405 = vmand %vm402, %vm403
  %v406 = vsel %vm404, 1.0, 0.0
  %v407 = vsel %vm405, 1.0, 0.0
  %410 = vst [vmem:[#allocation1] ss:$2 sm:$0xff] %v406
  %s411 = scalar_lea.vmem [#allocation1], 1
  %412 = vst [vmem:[%s411] ss:$2 sm:$0xff] %v407
  %v413 = vld.sshfl [vmem:[#allocation1] sm:$0xff pattern:$0x75316420]
  %vm414 = vcmask 64512
  %v415 = vsel %vm414, %v413, 0
  %417 = vmatpush.msra.mxu0 0.0
  %418 = vmatpush.msra.mxu0 0.0
  %419 = vmatpush.msra.mxu0 0.0
  %420 = vmatpush.msra.mxu0 0.0
  %421 = vmatpush.msra.mxu0 0.0
  %422 = vmatpush.msra.mxu0 0.0
  %423 = vmatpush.msra.mxu0 0.0
  %424 = vmatpush.msra.mxu0 0.0
  %425 = vmatpush.msra.mxu0 0.0
  %426 = vmatpush.msra.mxu0 0.0
  %427 = vmatpush.msra.mxu0 0.0
  %428 = vmatpush.msra.mxu0 0.0
  %429 = vmatpush.msra.mxu0 0.0
  %430 = vmatpush.msra.mxu0 0.0
  %431 = vmatpush.msra.mxu0 0.0
  %432 = vmatpush.msra.mxu0 %v399
  %433 = vmatmul.f32.gmra.mxu0 %v415
  %v434 = vpop.f32.mrf.mxu0
  %v435 = vadd.f32 0.0, %v434
  %436 = vdwg.mxu0
  %v437 = vld [vmem:[%s5] sm:$0xff]
  %v438 = vld [vmem:[%s5 + $0x8] sm:$0xff]
  %s439 = scalar_lea.vmem %s5, 16
  %v440 = vld [vmem:[%s439] sm:$0xff]
  %v441 = vld [vmem:[%s439 + $0x8] sm:$0xff]
  %v443 = vsel %vm136, %v399, 0
  %445 = vmatpush.msra.mxu0 0.0
  %446 = vmatpush.msra.mxu0 0.0
  %447 = vmatpush.msra.mxu0 0.0
  %448 = vmatpush.msra.mxu0 0.0
  %449 = vmatpush.msra.mxu0 0.0
  %450 = vmatpush.msra.mxu0 0.0
  %451 = vmatpush.msra.mxu0 0.0
  %452 = vmatpush.msra.mxu0 0.0
  %453 = vmatpush.msra.mxu0 0.0
  %454 = vmatpush.msra.mxu0 0.0
  %455 = vmatpush.msra.mxu0 0.0
  %456 = vmatpush.msra.mxu0 0.0
  %457 = vmatpush.msra.mxu0 0.0
  %458 = vmatpush.msra.mxu0 0.0
  %459 = vmatpush.msra.mxu0 %v441
  %460 = vmatpush.msra.mxu0 %v440
  %461 = vmatmul.f32.gmra.mxu0 %v443
  %v462 = vpop.f32.mrf.mxu0
  %v463 = vadd.f32 0.0, %v462
  %464 = vdwg.mxu0
  %v466 = vsel %vm136, %v435, 0
  %468 = vmatpush.msra.mxu0 0.0
  %469 = vmatpush.msra.mxu0 0.0
  %470 = vmatpush.msra.mxu0 0.0
  %471 = vmatpush.msra.mxu0 0.0
  %472 = vmatpush.msra.mxu0 0.0
  %473 = vmatpush.msra.mxu0 0.0
  %474 = vmatpush.msra.mxu0 0.0
  %475 = vmatpush.msra.mxu0 0.0
  %476 = vmatpush.msra.mxu0 0.0
  %477 = vmatpush.msra.mxu0 0.0
  %478 = vmatpush.msra.mxu0 0.0
  %479 = vmatpush.msra.mxu0 0.0
  %480 = vmatpush.msra.mxu0 0.0
  %481 = vmatpush.msra.mxu0 0.0
  %482 = vmatpush.msra.mxu0 %v438
  %483 = vmatpush.msra.mxu0 %v437
  %484 = vmatmul.f32.gmra.mxu0 %v466
  %v485 = vpop.f32.mrf.mxu0
  %v486 = vadd.f32 %v463, %v485
  %487 = vdwg.mxu0
  %v488 = vadd.s32 %v234, 4
  %vm489 = vcmp.eq.s32.totalorder %v69, %v488
  %vm490 = vmand %vm489, %vm238
  %vm491 = vcmp.lt.s32.totalorder %v234, 4
  %vm492 = vmand %vm239, %vm491
  %vm493 = vmand %vm490, %vm491
  %v494 = vsel %vm492, 1.0, 0.0
  %v495 = vsel %vm493, 1.0, 0.0
  %498 = vst [vmem:[#allocation1] ss:$2 sm:$0xff] %v494
  %s499 = scalar_lea.vmem [#allocation1], 1
  %500 = vst [vmem:[%s499] ss:$2 sm:$0xff] %v495
  %v501 = vld.sshfl [vmem:[#allocation1] sm:$0xff pattern:$0x75316420]
  %v502 = vsel %vm414, %v501, 0
  %504 = vmatpush.msra.mxu0 0.0
  %505 = vmatpush.msra.mxu0 0.0
  %506 = vmatpush.msra.mxu0 0.0
  %507 = vmatpush.msra.mxu0 0.0
  %508 = vmatpush.msra.mxu0 0.0
  %509 = vmatpush.msra.mxu0 0.0
  %510 = vmatpush.msra.mxu0 0.0
  %511 = vmatpush.msra.mxu0 0.0
  %512 = vmatpush.msra.mxu0 0.0
  %513 = vmatpush.msra.mxu0 0.0
  %514 = vmatpush.msra.mxu0 0.0
  %515 = vmatpush.msra.mxu0 0.0
  %516 = vmatpush.msra.mxu0 0.0
  %517 = vmatpush.msra.mxu0 0.0
  %518 = vmatpush.msra.mxu0 0.0
  %519 = vmatpush.msra.mxu0 %v399
  %520 = vmatmul.f32.gmra.mxu0 %v502
  %v521 = vpop.f32.mrf.mxu0
  %v522 = vadd.f32 0.0, %v521
  %523 = vdwg.mxu0
  %s524 = scalar_lea.vmem %s5, 32
  %v525 = vld [vmem:[%s524] sm:$0xff]
  %v526 = vld [vmem:[%s524 + $0x8] sm:$0xff]
  %v528 = vsel %vm136, %v522, 0
  %530 = vmatpush.msra.mxu0 0.0
  %531 = vmatpush.msra.mxu0 0.0
  %532 = vmatpush.msra.mxu0 0.0
  %533 = vmatpush.msra.mxu0 0.0
  %534 = vmatpush.msra.mxu0 0.0
  %535 = vmatpush.msra.mxu0 0.0
  %536 = vmatpush.msra.mxu0 0.0
  %537 = vmatpush.msra.mxu0 0.0
  %538 = vmatpush.msra.mxu0 0.0
  %539 = vmatpush.msra.mxu0 0.0
  %540 = vmatpush.msra.mxu0 0.0
  %541 = vmatpush.msra.mxu0 0.0
  %542 = vmatpush.msra.mxu0 0.0
  %543 = vmatpush.msra.mxu0 0.0
  %544 = vmatpush.msra.mxu0 %v526
  %545 = vmatpush.msra.mxu0 %v525
  %546 = vmatmul.f32.gmra.mxu0 %v528
  %v547 = vpop.f32.mrf.mxu0
  %v548 = vadd.f32 0.0, %v547
  %549 = vdwg.mxu0
  %v550 = vadd.f32 %v486, %v548
  %v551 = vld [vmem:[%s6] sm:$0x1]
  %v553 = vperm.slane %v551, 0
  %v555 = vadd.f32 %v550, %v553
  %v556 = vmax.f32 %v555, 0.0
  %v557 = vadd.s32 %v319, 4
  %vm558 = vcmp.eq.s32.totalorder %v69, %v557
  %vm559 = vmand %vm558, %vm323
  %vm560 = vcmp.lt.s32.totalorder %v319, 4
  %vm561 = vmand %vm324, %vm560
  %vm562 = vmand %vm559, %vm560
  %v563 = vsel %vm561, 1.0, 0.0
  %v564 = vsel %vm562, 1.0, 0.0
  %567 = vst [vmem:[#allocation1] ss:$4 sm:$0xff] %v563
  %s568 = scalar_lea.vmem [#allocation1], 1
  %569 = vst [vmem:[%s568] ss:$4 sm:$0xff] %v564
  %v570 = vld.sshfl [vmem:[#allocation1] sm:$0xff pattern:$0x73625140]
  %v571 = vsel %vm414, %v570, 0
  %573 = vmatpush.msra.mxu0 0.0
  %574 = vmatpush.msra.mxu0 0.0
  %575 = vmatpush.msra.mxu0 0.0
  %576 = vmatpush.msra.mxu0 0.0
  %577 = vmatpush.msra.mxu0 0.0
  %578 = vmatpush.msra.mxu0 0.0
  %579 = vmatpush.msra.mxu0 0.0
  %580 = vmatpush.msra.mxu0 0.0
  %581 = vmatpush.msra.mxu0 0.0
  %582 = vmatpush.msra.mxu0 0.0
  %583 = vmatpush.msra.mxu0 0.0
  %584 = vmatpush.msra.mxu0 0.0
  %585 = vmatpush.msra.mxu0 0.0
  %586 = vmatpush.msra.mxu0 0.0
  %587 = vmatpush.msra.mxu0 0.0
  %588 = vmatpush.msra.mxu0 %v556
  %589 = vmatmul.f32.gmra.mxu0 %v571
  %v590 = vpop.f32.mrf.mxu0
  %v591 = vadd.f32 0.0, %v590
  %592 = vdwg.mxu0
  %v593 = vadd.s32 %v359, 4
  %vm594 = vcmp.eq.s32.totalorder %v69, %v593
  %vm595 = vmand %vm594, %vm363
  %vm596 = vcmp.lt.s32.totalorder %v359, 4
  %vm597 = vmand %vm364, %vm596
  %vm598 = vmand %vm595, %vm596
  %v599 = vsel %vm597, 1.0, 0.0
  %v600 = vsel %vm598, 1.0, 0.0
  %603 = vst [vmem:[#allocation1] ss:$4 sm:$0xff] %v599
  %s604 = scalar_lea.vmem [#allocation1], 1
  %605 = vst [vmem:[%s604] ss:$4 sm:$0xff] %v600
  %v606 = vld.sshfl [vmem:[#allocation1] sm:$0xff pattern:$0x73625140]
  %v607 = vsel %vm414, %v606, 0
  %609 = vmatpush.msra.mxu0 0.0
  %610 = vmatpush.msra.mxu0 0.0
  %611 = vmatpush.msra.mxu0 0.0
  %612 = vmatpush.msra.mxu0 0.0
  %613 = vmatpush.msra.mxu0 0.0
  %614 = vmatpush.msra.mxu0 0.0
  %615 = vmatpush.msra.mxu0 0.0
  %616 = vmatpush.msra.mxu0 0.0
  %617 = vmatpush.msra.mxu0 0.0
  %618 = vmatpush.msra.mxu0 0.0
  %619 = vmatpush.msra.mxu0 0.0
  %620 = vmatpush.msra.mxu0 0.0
  %621 = vmatpush.msra.mxu0 0.0
  %622 = vmatpush.msra.mxu0 0.0
  %623 = vmatpush.msra.mxu0 0.0
  %624 = vmatpush.msra.mxu0 %v556
  %625 = vmatmul.f32.gmra.mxu0 %v607
  %v626 = vpop.f32.mrf.mxu0
  %v627 = vadd.f32 0.0, %v626
  %628 = vdwg.mxu0
  %v629 = vmax.f32 %v591, %v627
  %v630 = vld [vmem:[%s1] sm:$0x3f]
  %v631 = vperm.slane %v630, 0
  %v632 = vlaneseq
  %v633 = vshrl.u32 %v632, 7
  %635 = vset.pattern.permute.xlu0 %v633
  %636 = vperm.xlu0 %635, %v631
  %v637 = vpop.permute.xlu0 %636
  %v638 = vlaneseq
  %v639 = vshrl.u32 %v638, 7
  %v640 = vadd.s32 %v639, 8
  %641 = vset.pattern.permute.xlu0 %v640
  %642 = vperm.xlu0 %641, %v631
  %v643 = vpop.permute.xlu0 %642
  %v644 = vperm.slane %v630, 1
  %v645 = vlaneseq
  %v646 = vshrl.u32 %v645, 7
  %648 = vset.pattern.permute.xlu0 %v646
  %649 = vperm.xlu0 %648, %v644
  %v650 = vpop.permute.xlu0 %649
  %v651 = vlaneseq
  %v652 = vshrl.u32 %v651, 7
  %v653 = vadd.s32 %v652, 8
  %654 = vset.pattern.permute.xlu0 %v653
  %655 = vperm.xlu0 %654, %v644
  %v656 = vpop.permute.xlu0 %655
  %v657 = vperm.slane %v630, 2
  %v658 = vlaneseq
  %v659 = vshrl.u32 %v658, 7
  %661 = vset.pattern.permute.xlu0 %v659
  %662 = vperm.xlu0 %661, %v657
  %v663 = vpop.permute.xlu0 %662
  %v664 = vlaneseq
  %v665 = vshrl.u32 %v664, 7
  %v666 = vadd.s32 %v665, 8
  %667 = vset.pattern.permute.xlu0 %v666
  %668 = vperm.xlu0 %667, %v657
  %v669 = vpop.permute.xlu0 %668
  %v670 = vperm.slane %v630, 3
  %v671 = vlaneseq
  %v672 = vshrl.u32 %v671, 7
  %674 = vset.pattern.permute.xlu0 %v672
  %675 = vperm.xlu0 %674, %v670
  %v676 = vpop.permute.xlu0 %675
  %v677 = vlaneseq
  %v678 = vshrl.u32 %v677, 7
  %v679 = vadd.s32 %v678, 8
  %680 = vset.pattern.permute.xlu0 %v679
  %681 = vperm.xlu0 %680, %v670
  %v682 = vpop.permute.xlu0 %681
  %v683 = vperm.slane %v630, 4
  %v684 = vlaneseq
  %v685 = vshrl.u32 %v684, 7
  %687 = vset.pattern.permute.xlu0 %v685
  %688 = vperm.xlu0 %687, %v683
  %v689 = vpop.permute.xlu0 %688
  %v690 = vlaneseq
  %v691 = vshrl.u32 %v690, 7
  %v692 = vadd.s32 %v691, 8
  %693 = vset.pattern.permute.xlu0 %v692
  %694 = vperm.xlu0 %693, %v683
  %v695 = vpop.permute.xlu0 %694
  %v696 = vperm.slane %v630, 5
  %v697 = vlaneseq
  %v698 = vshrl.u32 %v697, 7
  %700 = vset.pattern.permute.xlu0 %v698
  %701 = vperm.xlu0 %700, %v696
  %v702 = vpop.permute.xlu0 %701
  %v703 = vlaneseq
  %v704 = vshrl.u32 %v703, 7
  %v705 = vadd.s32 %v704, 8
  %706 = vset.pattern.permute.xlu0 %v705
  %707 = vperm.xlu0 %706, %v696
  %v708 = vpop.permute.xlu0 %707
  %vm709 = vcmp.eq.s32.totalorder %v637, %v69
  %vm710 = vcmp.eq.s32.totalorder %v643, %v69
  %vm711 = vcmp.eq.s32.totalorder %v650, %v69
  %vm712 = vcmp.eq.s32.totalorder %v656, %v69
  %vm713 = vcmp.eq.s32.totalorder %v663, %v69
  %vm714 = vcmp.eq.s32.totalorder %v669, %v69
  %vm715 = vcmp.eq.s32.totalorder %v676, %v69
  %vm716 = vcmp.eq.s32.totalorder %v682, %v69
  %vm717 = vcmp.eq.s32.totalorder %v689, %v69
  %vm718 = vcmp.eq.s32.totalorder %v695, %v69
  %vm719 = vcmp.eq.s32.totalorder %v702, %v69
  %vm720 = vcmp.eq.s32.totalorder %v708, %v69
  %v721 = vsel %vm709, 1.0, 0.0
  %v722 = vsel %vm710, 1.0, 0.0
  %v723 = vsel %vm711, 1.0, 0.0
  %v724 = vsel %vm712, 1.0, 0.0
  %v725 = vsel %vm713, 1.0, 0.0
  %v726 = vsel %vm714, 1.0, 0.0
  %v727 = vsel %vm715, 1.0, 0.0
  %v728 = vsel %vm716, 1.0, 0.0
  %v729 = vsel %vm717, 1.0, 0.0
  %v730 = vsel %vm718, 1.0, 0.0
  %v731 = vsel %vm719, 1.0, 0.0
  %v732 = vsel %vm720, 1.0, 0.0
  %v734 = vsel %vm88, %v721, 0
  %v737 = vsel %vm88, %v722, 0
  %v740 = vsel %vm88, %v723, 0
  %v743 = vsel %vm88, %v724, 0
  %v746 = vsel %vm88, %v725, 0
  %v749 = vsel %vm88, %v726, 0
  %v752 = vsel %vm88, %v727, 0
  %v755 = vsel %vm88, %v728, 0
  %v758 = vsel %vm88, %v729, 0
  %v761 = vsel %vm88, %v730, 0
  %v764 = vsel %vm88, %v731, 0
  %v767 = vsel %vm88, %v732, 0
  %769 = vmatpush.msra.mxu0 0.0
  %770 = vmatpush.msra.mxu0 0.0
  %771 = vmatpush.msra.mxu0 0.0
  %772 = vmatpush.msra.mxu0 %v97
  %773 = vmatpush.msra.mxu0 %v65
  %774 = vmatpush.msra.mxu0 %v64
  %775 = vmatpush.msra.mxu0 %v63
  %776 = vmatpush.msra.mxu0 %v62
  %777 = vmatpush.msra.mxu0 %v61
  %778 = vmatpush.msra.mxu0 %v60
  %779 = vmatpush.msra.mxu0 %v59
  %780 = vmatpush.msra.mxu0 %v58
  %781 = vmatpush.msra.mxu0 %v57
  %782 = vmatpush.msra.mxu0 %v56
  %783 = vmatpush.msra.mxu0 %v55
  %784 = vmatpush.msra.mxu0 %v54
  %785 = vmatmul.f32.gmra.mxu0 %v734
  %v786 = vpop.f32.mrf.mxu0
  %v787 = vadd.f32 0.0, %v786
  %788 = vmatmul.f32.gmra.mxu0 %v737
  %v789 = vpop.f32.mrf.mxu0
  %v790 = vadd.f32 0.0, %v789
  %791 = vmatmul.f32.gmra.mxu0 %v740
  %v792 = vpop.f32.mrf.mxu0
  %v793 = vadd.f32 0.0, %v792
  %794 = vmatmul.f32.gmra.mxu0 %v743
  %v795 = vpop.f32.mrf.mxu0
  %v796 = vadd.f32 0.0, %v795
  %797 = vmatmul.f32.gmra.mxu0 %v746
  %v798 = vpop.f32.mrf.mxu0
  %v799 = vadd.f32 0.0, %v798
  %800 = vmatmul.f32.gmra.mxu0 %v749
  %v801 = vpop.f32.mrf.mxu0
  %v802 = vadd.f32 0.0, %v801
  %803 = vmatmul.f32.gmra.mxu0 %v752
  %v804 = vpop.f32.mrf.mxu0
  %v805 = vadd.f32 0.0, %v804
  %806 = vmatmul.f32.gmra.mxu0 %v755
  %v807 = vpop.f32.mrf.mxu0
  %v808 = vadd.f32 0.0, %v807
  %809 = vmatmul.f32.gmra.mxu0 %v758
  %v810 = vpop.f32.mrf.mxu0
  %v811 = vadd.f32 0.0, %v810
  %812 = vmatmul.f32.gmra.mxu0 %v761
  %v813 = vpop.f32.mrf.mxu0
  %v814 = vadd.f32 0.0, %v813
  %815 = vmatmul.f32.gmra.mxu0 %v764
  %v816 = vpop.f32.mrf.mxu0
  %v817 = vadd.f32 0.0, %v816
  %818 = vmatmul.f32.gmra.mxu0 %v767
  %v819 = vpop.f32.mrf.mxu0
  %v820 = vadd.f32 0.0, %v819
  %821 = vdwg.mxu0
  %v822 = vadd.s32 %v123, 8
  %v823 = vadd.s32 %v822, 4294967295
  %v824 = vadd.s32 %v124, 16
  %v825 = vadd.s32 %v823, 16
  %v826 = vadd.s32 %v124, 32
  %v827 = vadd.s32 %v823, 32
  %v828 = vadd.s32 %v124, 48
  %v829 = vadd.s32 %v823, 48
  %v830 = vadd.s32 %v124, 64
  %v831 = vadd.s32 %v823, 64
  %v832 = vadd.s32 %v124, 80
  %v833 = vadd.s32 %v823, 80
  %vm834 = vcmp.eq.s32.totalorder %v69, %v823
  %vm835 = vcmp.eq.s32.totalorder %v69, %v824
  %vm836 = vcmp.eq.s32.totalorder %v69, %v825
  %vm837 = vcmp.eq.s32.totalorder %v69, %v826
  %vm838 = vcmp.eq.s32.totalorder %v69, %v827
  %vm839 = vcmp.eq.s32.totalorder %v69, %v828
  %vm840 = vcmp.eq.s32.totalorder %v69, %v829
  %vm841 = vcmp.eq.s32.totalorder %v69, %v830
  %vm842 = vcmp.eq.s32.totalorder %v69, %v831
  %vm843 = vcmp.eq.s32.totalorder %v69, %v832
  %vm844 = vcmp.eq.s32.totalorder %v69, %v833
  %vm845 = vcmp.ge.s32.totalorder %v823, 0
  %vm846 = vmand %vm834, %vm845
  %vm847 = vmand %vm835, %vm128
  %vm848 = vmand %vm836, %vm845
  %vm849 = vmand %vm837, %vm128
  %vm850 = vmand %vm838, %vm845
  %vm851 = vmand %vm839, %vm128
  %vm852 = vmand %vm840, %vm845
  %vm853 = vmand %vm841, %vm128
  %vm854 = vmand %vm842, %vm845
  %vm855 = vmand %vm843, %vm128
  %vm856 = vmand %vm844, %vm845
  %vm857 = vcmp.lt.s32.totalorder %v124, 16
  %vm858 = vcmp.lt.s32.totalorder %v823, 16
  %vm859 = vmand %vm129, %vm857
  %vm860 = vmand %vm846, %vm858
  %vm861 = vmand %vm847, %vm857
  %vm862 = vmand %vm848, %vm858
  %vm863 = vmand %vm849, %vm857
  %vm864 = vmand %vm850, %vm858
  %vm865 = vmand %vm851, %vm857
  %vm866 = vmand %vm852, %vm858
  %vm867 = vmand %vm853, %vm857
  %vm868 = vmand %vm854, %vm858
  %vm869 = vmand %vm855, %vm857
  %vm870 = vmand %vm856, %vm858
  %v871 = vsel %vm859, 1.0, 0.0
  %v872 = vsel %vm860, 1.0, 0.0
  %v873 = vsel %vm861, 1.0, 0.0
  %v874 = vsel %vm862, 1.0, 0.0
  %v875 = vsel %vm863, 1.0, 0.0
  %v876 = vsel %vm864, 1.0, 0.0
  %v877 = vsel %vm865, 1.0, 0.0
  %v878 = vsel %vm866, 1.0, 0.0
  %v879 = vsel %vm867, 1.0, 0.0
  %v880 = vsel %vm868, 1.0, 0.0
  %v881 = vsel %vm869, 1.0, 0.0
  %v882 = vsel %vm870, 1.0, 0.0
  %vm883 = vcmask 785408
  %v885 = vsel %vm883, %v871, 0
  %v888 = vsel %vm883, %v872, 0
  %v891 = vsel %vm883, %v873, 0
  %v894 = vsel %vm883, %v874, 0
  %v897 = vsel %vm883, %v875, 0
  %v900 = vsel %vm883, %v876, 0
  %v903 = vsel %vm883, %v877, 0
  %v906 = vsel %vm883, %v878, 0
  %v909 = vsel %vm883, %v879, 0
  %v912 = vsel %vm883, %v880, 0
  %v915 = vsel %vm883, %v881, 0
  %v918 = vsel %vm883, %v882, 0
  %920 = vmatpush.msra.mxu0 0.0
  %921 = vmatpush.msra.mxu0 0.0
  %922 = vmatpush.msra.mxu0 0.0
  %923 = vmatpush.msra.mxu0 0.0
  %924 = vmatpush.msra.mxu0 %v820
  %925 = vmatpush.msra.mxu0 %v817
  %926 = vmatpush.msra.mxu0 %v814
  %927 = vmatpush.msra.mxu0 %v811
  %928 = vmatpush.msra.mxu0 %v808
  %929 = vmatpush.msra.mxu0 %v805
  %930 = vmatpush.msra.mxu0 %v802
  %931 = vmatpush.msra.mxu0 %v799
  %932 = vmatpush.msra.mxu0 %v796
  %933 = vmatpush.msra.mxu0 %v793
  %934 = vmatpush.msra.mxu0 %v790
  %935 = vmatpush.msra.mxu0 %v787
  %936 = vmatmul.f32.gmra.mxu0 %v885
  %v937 = vpop.f32.mrf.mxu0
  %v938 = vadd.f32 0.0, %v937
  %939 = vmatmul.f32.gmra.mxu0 %v888
  %v940 = vpop.f32.mrf.mxu0
  %v941 = vadd.f32 0.0, %v940
  %942 = vmatmul.f32.gmra.mxu0 %v891
  %v943 = vpop.f32.mrf.mxu0
  %v944 = vadd.f32 0.0, %v943
  %945 = vmatmul.f32.gmra.mxu0 %v894
  %v946 = vpop.f32.mrf.mxu0
  %v947 = vadd.f32 0.0, %v946
  %948 = vmatmul.f32.gmra.mxu0 %v897
  %v949 = vpop.f32.mrf.mxu0
  %v950 = vadd.f32 0.0, %v949
  %951 = vmatmul.f32.gmra.mxu0 %v900
  %v952 = vpop.f32.mrf.mxu0
  %v953 = vadd.f32 0.0, %v952
  %954 = vmatmul.f32.gmra.mxu0 %v903
  %v955 = vpop.f32.mrf.mxu0
  %v956 = vadd.f32 0.0, %v955
  %957 = vmatmul.f32.gmra.mxu0 %v906
  %v958 = vpop.f32.mrf.mxu0
  %v959 = vadd.f32 0.0, %v958
  %960 = vmatmul.f32.gmra.mxu0 %v909
  %v961 = vpop.f32.mrf.mxu0
  %v962 = vadd.f32 0.0, %v961
  %963 = vmatmul.f32.gmra.mxu0 %v912
  %v964 = vpop.f32.mrf.mxu0
  %v965 = vadd.f32 0.0, %v964
  %966 = vmatmul.f32.gmra.mxu0 %v915
  %v967 = vpop.f32.mrf.mxu0
  %v968 = vadd.f32 0.0, %v967
  %969 = vmatmul.f32.gmra.mxu0 %v918
  %v970 = vpop.f32.mrf.mxu0
  %v971 = vadd.f32 0.0, %v970
  %972 = vdwg.mxu0
  %v973 = vld [vmem:[%s7] sm:$0xff]
  %v974 = vld [vmem:[%s7 + $0x8] sm:$0xff]
  %v975 = vld [vmem:[%s7 + $0x10] sm:$0xff]
  %v976 = vld [vmem:[%s7 + $0x18] sm:$0xff]
  %s977 = scalar_lea.vmem %s7, 32
  %v978 = vld [vmem:[%s977] sm:$0xff]
  %v979 = vld [vmem:[%s977 + $0x8] sm:$0xff]
  %v980 = vld [vmem:[%s977 + $0x10] sm:$0xff]
  %v981 = vld [vmem:[%s977 + $0x18] sm:$0xff]
  %v983 = vsel %vm175, %v787, 0
  %v986 = vsel %vm175, %v790, 0
  %v989 = vsel %vm175, %v793, 0
  %v992 = vsel %vm175, %v796, 0
  %v995 = vsel %vm175, %v799, 0
  %v998 = vsel %vm175, %v802, 0
  %v1001 = vsel %vm175, %v805, 0
  %v1004 = vsel %vm175, %v808, 0
  %v1007 = vsel %vm175, %v811, 0
  %v1010 = vsel %vm175, %v814, 0
  %v1013 = vsel %vm175, %v817, 0
  %v1016 = vsel %vm175, %v820, 0
  %1018 = vmatpush.msra.mxu0 0.0
  %1019 = vmatpush.msra.mxu0 0.0
  %1020 = vmatpush.msra.mxu0 0.0
  %1021 = vmatpush.msra.mxu0 0.0
  %1022 = vmatpush.msra.mxu0 0.0
  %1023 = vmatpush.msra.mxu0 0.0
  %1024 = vmatpush.msra.mxu0 0.0
  %1025 = vmatpush.msra.mxu0 0.0
  %1026 = vmatpush.msra.mxu0 0.0
  %1027 = vmatpush.msra.mxu0 0.0
  %1028 = vmatpush.msra.mxu0 0.0
  %1029 = vmatpush.msra.mxu0 0.0
  %1030 = vmatpush.msra.mxu0 %v981
  %1031 = vmatpush.msra.mxu0 %v980
  %1032 = vmatpush.msra.mxu0 %v979
  %1033 = vmatpush.msra.mxu0 %v978
  %1034 = vmatmul.f32.gmra.mxu0 %v983
  %v1035 = vpop.f32.mrf.mxu0
  %v1036 = vadd.f32 0.0, %v1035
  %1037 = vmatmul.f32.gmra.mxu0 %v986
  %v1038 = vpop.f32.mrf.mxu0
  %v1039 = vadd.f32 0.0, %v1038
  %1040 = vmatmul.f32.gmra.mxu0 %v989
  %v1041 = vpop.f32.mrf.mxu0
  %v1042 = vadd.f32 0.0, %v1041
  %1043 = vmatmul.f32.gmra.mxu0 %v992
  %v1044 = vpop.f32.mrf.mxu0
  %v1045 = vadd.f32 0.0, %v1044
  %1046 = vmatmul.f32.gmra.mxu0 %v995
  %v1047 = vpop.f32.mrf.mxu0
  %v1048 = vadd.f32 0.0, %v1047
  %1049 = vmatmul.f32.gmra.mxu0 %v998
  %v1050 = vpop.f32.mrf.mxu0
  %v1051 = vadd.f32 0.0, %v1050
  %1052 = vmatmul.f32.gmra.mxu0 %v1001
  %v1053 = vpop.f32.mrf.mxu0
  %v1054 = vadd.f32 0.0, %v1053
  %1055 = vmatmul.f32.gmra.mxu0 %v1004
  %v1056 = vpop.f32.mrf.mxu0
  %v1057 = vadd.f32 0.0, %v1056
  %1058 = vmatmul.f32.gmra.mxu0 %v1007
  %v1059 = vpop.f32.mrf.mxu0
  %v1060 = vadd.f32 0.0, %v1059
  %1061 = vmatmul.f32.gmra.mxu0 %v1010
  %v1062 = vpop.f32.mrf.mxu0
  %v1063 = vadd.f32 0.0, %v1062
  %1064 = vmatmul.f32.gmra.mxu0 %v1013
  %v1065 = vpop.f32.mrf.mxu0
  %v1066 = vadd.f32 0.0, %v1065
  %1067 = vmatmul.f32.gmra.mxu0 %v1016
  %v1068 = vpop.f32.mrf.mxu0
  %v1069 = vadd.f32 0.0, %v1068
  %1070 = vdwg.mxu0
  %v1072 = vsel %vm175, %v938, 0
  %v1075 = vsel %vm175, %v941, 0
  %v1078 = vsel %vm175, %v944, 0
  %v1081 = vsel %vm175, %v947, 0
  %v1084 = vsel %vm175, %v950, 0
  %v1087 = vsel %vm175, %v953, 0
  %v1090 = vsel %vm175, %v956, 0
  %v1093 = vsel %vm175, %v959, 0
  %v1096 = vsel %vm175, %v962, 0
  %v1099 = vsel %vm175, %v965, 0
  %v1102 = vsel %vm175, %v968, 0
  %v1105 = vsel %vm175, %v971, 0
  %1107 = vmatpush.msra.mxu0 0.0
  %1108 = vmatpush.msra.mxu0 0.0
  %1109 = vmatpush.msra.mxu0 0.0
  %1110 = vmatpush.msra.mxu0 0.0
  %1111 = vmatpush.msra.mxu0 0.0
  %1112 = vmatpush.msra.mxu0 0.0
  %1113 = vmatpush.msra.mxu0 0.0
  %1114 = vmatpush.msra.mxu0 0.0
  %1115 = vmatpush.msra.mxu0 0.0
  %1116 = vmatpush.msra.mxu0 0.0
  %1117 = vmatpush.msra.mxu0 0.0
  %1118 = vmatpush.msra.mxu0 0.0
  %1119 = vmatpush.msra.mxu0 %v976
  %1120 = vmatpush.msra.mxu0 %v975
  %1121 = vmatpush.msra.mxu0 %v974
  %1122 = vmatpush.msra.mxu0 %v973
  %1123 = vmatmul.f32.gmra.mxu0 %v1072
  %v1124 = vpop.f32.mrf.mxu0
  %v1125 = vadd.f32 %v1036, %v1124
  %1126 = vmatmul.f32.gmra.mxu0 %v1075
  %v1127 = vpop.f32.mrf.mxu0
  %v1128 = vadd.f32 %v1039, %v1127
  %1129 = vmatmul.f32.gmra.mxu0 %v1078
  %v1130 = vpop.f32.mrf.mxu0
  %v1131 = vadd.f32 %v1042, %v1130
  %1132 = vmatmul.f32.gmra.mxu0 %v1081
  %v1133 = vpop.f32.mrf.mxu0
  %v1134 = vadd.f32 %v1045, %v1133
  %1135 = vmatmul.f32.gmra.mxu0 %v1084
  %v1136 = vpop.f32.mrf.mxu0
  %v1137 = vadd.f32 %v1048, %v1136
  %1138 = vmatmul.f32.gmra.mxu0 %v1087
  %v1139 = vpop.f32.mrf.mxu0
  %v1140 = vadd.f32 %v1051, %v1139
  %1141 = vmatmul.f32.gmra.mxu0 %v1090
  %v1142 = vpop.f32.mrf.mxu0
  %v1143 = vadd.f32 %v1054, %v1142
  %1144 = vmatmul.f32.gmra.mxu0 %v1093
  %v1145 = vpop.f32.mrf.mxu0
  %v1146 = vadd.f32 %v1057, %v1145
  %1147 = vmatmul.f32.gmra.mxu0 %v1096
  %v1148 = vpop.f32.mrf.mxu0
  %v1149 = vadd.f32 %v1060, %v1148
  %1150 = vmatmul.f32.gmra.mxu0 %v1099
  %v1151 = vpop.f32.mrf.mxu0
  %v1152 = vadd.f32 %v1063, %v1151
  %1153 = vmatmul.f32.gmra.mxu0 %v1102
  %v1154 = vpop.f32.mrf.mxu0
  %v1155 = vadd.f32 %v1066, %v1154
  %1156 = vmatmul.f32.gmra.mxu0 %v1105
  %v1157 = vpop.f32.mrf.mxu0
  %v1158 = vadd.f32 %v1069, %v1157
  %1159 = vdwg.mxu0
  %v1160 = vadd.s32 %v822, 1
  %v1161 = vadd.s32 %v234, 16
  %v1162 = vadd.s32 %v1160, 16
  %v1163 = vadd.s32 %v234, 32
  %v1164 = vadd.s32 %v1160, 32
  %v1165 = vadd.s32 %v234, 48
  %v1166 = vadd.s32 %v1160, 48
  %v1167 = vadd.s32 %v234, 64
  %v1168 = vadd.s32 %v1160, 64
  %v1169 = vadd.s32 %v234, 80
  %v1170 = vadd.s32 %v1160, 80
  %vm1171 = vcmp.eq.s32.totalorder %v69, %v1160
  %vm1172 = vcmp.eq.s32.totalorder %v69, %v1161
  %vm1173 = vcmp.eq.s32.totalorder %v69, %v1162
  %vm1174 = vcmp.eq.s32.totalorder %v69, %v1163
  %vm1175 = vcmp.eq.s32.totalorder %v69, %v1164
  %vm1176 = vcmp.eq.s32.totalorder %v69, %v1165
  %vm1177 = vcmp.eq.s32.totalorder %v69, %v1166
  %vm1178 = vcmp.eq.s32.totalorder %v69, %v1167
  %vm1179 = vcmp.eq.s32.totalorder %v69, %v1168
  %vm1180 = vcmp.eq.s32.totalorder %v69, %v1169
  %vm1181 = vcmp.eq.s32.totalorder %v69, %v1170
  %vm1182 = vcmp.ge.s32.totalorder %v1160, 0
  %vm1183 = vmand %vm1171, %vm1182
  %vm1184 = vmand %vm1172, %vm238
  %vm1185 = vmand %vm1173, %vm1182
  %vm1186 = vmand %vm1174, %vm238
  %vm1187 = vmand %vm1175, %vm1182
  %vm1188 = vmand %vm1176, %vm238
  %vm1189 = vmand %vm1177, %vm1182
  %vm1190 = vmand %vm1178, %vm238
  %vm1191 = vmand %vm1179, %vm1182
  %vm1192 = vmand %vm1180, %vm238
  %vm1193 = vmand %vm1181, %vm1182
  %vm1194 = vcmp.lt.s32.totalorder %v234, 16
  %vm1195 = vcmp.lt.s32.totalorder %v1160, 16
  %vm1196 = vmand %vm239, %vm1194
  %vm1197 = vmand %vm1183, %vm1195
  %vm1198 = vmand %vm1184, %vm1194
  %vm1199 = vmand %vm1185, %vm1195
  %vm1200 = vmand %vm1186, %vm1194
  %vm1201 = vmand %vm1187, %vm1195
  %vm1202 = vmand %vm1188, %vm1194
  %vm1203 = vmand %vm1189, %vm1195
  %vm1204 = vmand %vm1190, %vm1194
  %vm1205 = vmand %vm1191, %vm1195
  %vm1206 = vmand %vm1192, %vm1194
  %vm1207 = vmand %vm1193, %vm1195
  %v1208 = vsel %vm1196, 1.0, 0.0
  %v1209 = vsel %vm1197, 1.0, 0.0
  %v1210 = vsel %vm1198, 1.0, 0.0
  %v1211 = vsel %vm1199, 1.0, 0.0
  %v1212 = vsel %vm1200, 1.0, 0.0
  %v1213 = vsel %vm1201, 1.0, 0.0
  %v1214 = vsel %vm1202, 1.0, 0.0
  %v1215 = vsel %vm1203, 1.0, 0.0
  %v1216 = vsel %vm1204, 1.0, 0.0
  %v1217 = vsel %vm1205, 1.0, 0.0
  %v1218 = vsel %vm1206, 1.0, 0.0
  %v1219 = vsel %vm1207, 1.0, 0.0
  %v1221 = vsel %vm883, %v1208, 0
  %v1224 = vsel %vm883, %v1209, 0
  %v1227 = vsel %vm883, %v1210, 0
  %v1230 = vsel %vm883, %v1211, 0
  %v1233 = vsel %vm883, %v1212, 0
  %v1236 = vsel %vm883, %v1213, 0
  %v1239 = vsel %vm883, %v1214, 0
  %v1242 = vsel %vm883, %v1215, 0
  %v1245 = vsel %vm883, %v1216, 0
  %v1248 = vsel %vm883, %v1217, 0
  %v1251 = vsel %vm883, %v1218, 0
  %v1254 = vsel %vm883, %v1219, 0
  %1256 = vmatpush.msra.mxu0 0.0
  %1257 = vmatpush.msra.mxu0 0.0
  %1258 = vmatpush.msra.mxu0 0.0
  %1259 = vmatpush.msra.mxu0 0.0
  %1260 = vmatpush.msra.mxu0 %v820
  %1261 = vmatpush.msra.mxu0 %v817
  %1262 = vmatpush.msra.mxu0 %v814
  %1263 = vmatpush.msra.mxu0 %v811
  %1264 = vmatpush.msra.mxu0 %v808
  %1265 = vmatpush.msra.mxu0 %v805
  %1266 = vmatpush.msra.mxu0 %v802
  %1267 = vmatpush.msra.mxu0 %v799
  %1268 = vmatpush.msra.mxu0 %v796
  %1269 = vmatpush.msra.mxu0 %v793
  %1270 = vmatpush.msra.mxu0 %v790
  %1271 = vmatpush.msra.mxu0 %v787
  %1272 = vmatmul.f32.gmra.mxu0 %v1221
  %v1273 = vpop.f32.mrf.mxu0
  %v1274 = vadd.f32 0.0, %v1273
  %1275 = vmatmul.f32.gmra.mxu0 %v1224
  %v1276 = vpop.f32.mrf.mxu0
  %v1277 = vadd.f32 0.0, %v1276
  %1278 = vmatmul.f32.gmra.mxu0 %v1227
  %v1279 = vpop.f32.mrf.mxu0
  %v1280 = vadd.f32 0.0, %v1279
  %1281 = vmatmul.f32.gmra.mxu0 %v1230
  %v1282 = vpop.f32.mrf.mxu0
  %v1283 = vadd.f32 0.0, %v1282
  %1284 = vmatmul.f32.gmra.mxu0 %v1233
  %v1285 = vpop.f32.mrf.mxu0
  %v1286 = vadd.f32 0.0, %v1285
  %1287 = vmatmul.f32.gmra.mxu0 %v1236
  %v1288 = vpop.f32.mrf.mxu0
  %v1289 = vadd.f32 0.0, %v1288
  %1290 = vmatmul.f32.gmra.mxu0 %v1239
  %v1291 = vpop.f32.mrf.mxu0
  %v1292 = vadd.f32 0.0, %v1291
  %1293 = vmatmul.f32.gmra.mxu0 %v1242
  %v1294 = vpop.f32.mrf.mxu0
  %v1295 = vadd.f32 0.0, %v1294
  %1296 = vmatmul.f32.gmra.mxu0 %v1245
  %v1297 = vpop.f32.mrf.mxu0
  %v1298 = vadd.f32 0.0, %v1297
  %1299 = vmatmul.f32.gmra.mxu0 %v1248
  %v1300 = vpop.f32.mrf.mxu0
  %v1301 = vadd.f32 0.0, %v1300
  %1302 = vmatmul.f32.gmra.mxu0 %v1251
  %v1303 = vpop.f32.mrf.mxu0
  %v1304 = vadd.f32 0.0, %v1303
  %1305 = vmatmul.f32.gmra.mxu0 %v1254
  %v1306 = vpop.f32.mrf.mxu0
  %v1307 = vadd.f32 0.0, %v1306
  %1308 = vdwg.mxu0
  %s1309 = scalar_lea.vmem %s7, 64
  %v1310 = vld [vmem:[%s1309] sm:$0xff]
  %v1311 = vld [vmem:[%s1309 + $0x8] sm:$0xff]
  %v1312 = vld [vmem:[%s1309 + $0x10] sm:$0xff]
  %v1313 = vld [vmem:[%s1309 + $0x18] sm:$0xff]
  %v1315 = vsel %vm175, %v1274, 0
  %v1318 = vsel %vm175, %v1277, 0
  %v1321 = vsel %vm175, %v1280, 0
  %v1324 = vsel %vm175, %v1283, 0
  %v1327 = vsel %vm175, %v1286, 0
  %v1330 = vsel %vm175, %v1289, 0
  %v1333 = vsel %vm175, %v1292, 0
  %v1336 = vsel %vm175, %v1295, 0
  %v1339 = vsel %vm175, %v1298, 0
  %v1342 = vsel %vm175, %v1301, 0
  %v1345 = vsel %vm175, %v1304, 0
  %v1348 = vsel %vm175, %v1307, 0
  %1350 = vmatpush.msra.mxu0 0.0
  %1351 = vmatpush.msra.mxu0 0.0
  %1352 = vmatpush.msra.mxu0 0.0
  %1353 = vmatpush.msra.mxu0 0.0
  %1354 = vmatpush.msra.mxu0 0.0
  %1355 = vmatpush.msra.mxu0 0.0
  %1356 = vmatpush.msra.mxu0 0.0
  %1357 = vmatpush.msra.mxu0 0.0
  %1358 = vmatpush.msra.mxu0 0.0
  %1359 = vmatpush.msra.mxu0 0.0
  %1360 = vmatpush.msra.mxu0 0.0
  %1361 = vmatpush.msra.mxu0 0.0
  %1362 = vmatpush.msra.mxu0 %v1313
  %1363 = vmatpush.msra.mxu0 %v1312
  %1364 = vmatpush.msra.mxu0 %v1311
  %1365 = vmatpush.msra.mxu0 %v1310
  %1366 = vmatmul.f32.gmra.mxu0 %v1315
  %v1367 = vpop.f32.mrf.mxu0
  %v1368 = vadd.f32 0.0, %v1367
  %1369 = vmatmul.f32.gmra.mxu0 %v1318
  %v1370 = vpop.f32.mrf.mxu0
  %v1371 = vadd.f32 0.0, %v1370
  %1372 = vmatmul.f32.gmra.mxu0 %v1321
  %v1373 = vpop.f32.mrf.mxu0
  %v1374 = vadd.f32 0.0, %v1373
  %1375 = vmatmul.f32.gmra.mxu0 %v1324
  %v1376 = vpop.f32.mrf.mxu0
  %v1377 = vadd.f32 0.0, %v1376
  %1378 = vmatmul.f32.gmra.mxu0 %v1327
  %v1379 = vpop.f32.mrf.mxu0
  %v1380 = vadd.f32 0.0, %v1379
  %1381 = vmatmul.f32.gmra.mxu0 %v1330
  %v1382 = vpop.f32.mrf.mxu0
  %v1383 = vadd.f32 0.0, %v1382
  %1384 = vmatmul.f32.gmra.mxu0 %v1333
  %v1385 = vpop.f32.mrf.mxu0
  %v1386 = vadd.f32 0.0, %v1385
  %1387 = vmatmul.f32.gmra.mxu0 %v1336
  %v1388 = vpop.f32.mrf.mxu0
  %v1389 = vadd.f32 0.0, %v1388
  %1390 = vmatmul.f32.gmra.mxu0 %v1339
  %v1391 = vpop.f32.mrf.mxu0
  %v1392 = vadd.f32 0.0, %v1391
  %1393 = vmatmul.f32.gmra.mxu0 %v1342
  %v1394 = vpop.f32.mrf.mxu0
  %v1395 = vadd.f32 0.0, %v1394
  %1396 = vmatmul.f32.gmra.mxu0 %v1345
  %v1397 = vpop.f32.mrf.mxu0
  %v1398 = vadd.f32 0.0, %v1397
  %1399 = vmatmul.f32.gmra.mxu0 %v1348
  %v1400 = vpop.f32.mrf.mxu0
  %v1401 = vadd.f32 0.0, %v1400
  %1402 = vdwg.mxu0
  %v1403 = vadd.f32 %v1125, %v1368
  %v1404 = vadd.f32 %v1128, %v1371
  %v1405 = vadd.f32 %v1131, %v1374
  %v1406 = vadd.f32 %v1134, %v1377
  %v1407 = vadd.f32 %v1137, %v1380
  %v1408 = vadd.f32 %v1140, %v1383
  %v1409 = vadd.f32 %v1143, %v1386
  %v1410 = vadd.f32 %v1146, %v1389
  %v1411 = vadd.f32 %v1149, %v1392
  %v1412 = vadd.f32 %v1152, %v1395
  %v1413 = vadd.f32 %v1155, %v1398
  %v1414 = vadd.f32 %v1158, %v1401
  %v1415 = vld [vmem:[%s8] sm:$0x1]
  %v1417 = vperm.slane %v1415, 0
  %v1419 = vadd.f32 %v1403, %v1417
  %v1420 = vadd.f32 %v1404, %v1417
  %v1421 = vadd.f32 %v1405, %v1417
  %v1422 = vadd.f32 %v1406, %v1417
  %v1423 = vadd.f32 %v1407, %v1417
  %v1424 = vadd.f32 %v1408, %v1417
  %v1425 = vadd.f32 %v1409, %v1417
  %v1426 = vadd.f32 %v1410, %v1417
  %v1427 = vadd.f32 %v1411, %v1417
  %v1428 = vadd.f32 %v1412, %v1417
  %v1429 = vadd.f32 %v1413, %v1417
  %v1430 = vadd.f32 %v1414, %v1417
  %v1431 = vmax.f32 %v1419, 0.0
  %v1432 = vmax.f32 %v1420, 0.0
  %v1433 = vmax.f32 %v1421, 0.0
  %v1434 = vmax.f32 %v1422, 0.0
  %v1435 = vmax.f32 %v1423, 0.0
  %v1436 = vmax.f32 %v1424, 0.0
  %v1437 = vmax.f32 %v1425, 0.0
  %v1438 = vmax.f32 %v1426, 0.0
  %v1439 = vmax.f32 %v1427, 0.0
  %v1440 = vmax.f32 %v1428, 0.0
  %v1441 = vmax.f32 %v1429, 0.0
  %v1442 = vmax.f32 %v1430, 0.0
  %v1443 = vadd.s32 %v319, 16
  %v1444 = vadd.s32 %v319, 32
  %v1445 = vadd.s32 %v319, 48
  %v1446 = vadd.s32 %v319, 64
  %v1447 = vadd.s32 %v319, 80
  %vm1448 = vcmp.eq.s32.totalorder %v69, %v1443
  %vm1449 = vcmp.eq.s32.totalorder %v69, %v1444
  %vm1450 = vcmp.eq.s32.totalorder %v69, %v1445
  %vm1451 = vcmp.eq.s32.totalorder %v69, %v1446
  %vm1452 = vcmp.eq.s32.totalorder %v69, %v1447
  %vm1453 = vmand %vm1448, %vm323
  %vm1454 = vmand %vm1449, %vm323
  %vm1455 = vmand %vm1450, %vm323
  %vm1456 = vmand %vm1451, %vm323
  %vm1457 = vmand %vm1452, %vm323
  %vm1458 = vcmp.lt.s32.totalorder %v319, 16
  %vm1459 = vmand %vm324, %vm1458
  %vm1460 = vmand %vm1453, %vm1458
  %vm1461 = vmand %vm1454, %vm1458
  %vm1462 = vmand %vm1455, %vm1458
  %vm1463 = vmand %vm1456, %vm1458
  %vm1464 = vmand %vm1457, %vm1458
  %v1465 = vsel %vm1459, 1.0, 0.0
  %v1466 = vsel %vm1460, 1.0, 0.0
  %v1467 = vsel %vm1461, 1.0, 0.0
  %v1468 = vsel %vm1462, 1.0, 0.0
  %v1469 = vsel %vm1463, 1.0, 0.0
  %v1470 = vsel %vm1464, 1.0, 0.0
  %v1472 = vsel %vm883, %v1465, 0
  %v1475 = vsel %vm883, %v1466, 0
  %v1478 = vsel %vm883, %v1467, 0
  %v1481 = vsel %vm883, %v1468, 0
  %v1484 = vsel %vm883, %v1469, 0
  %v1487 = vsel %vm883, %v1470, 0
  %1489 = vmatpush.msra.mxu0 0.0
  %1490 = vmatpush.msra.mxu0 0.0
  %1491 = vmatpush.msra.mxu0 0.0
  %1492 = vmatpush.msra.mxu0 0.0
  %1493 = vmatpush.msra.mxu0 %v1442
  %1494 = vmatpush.msra.mxu0 %v1441
  %1495 = vmatpush.msra.mxu0 %v1440
  %1496 = vmatpush.msra.mxu0 %v1439
  %1497 = vmatpush.msra.mxu0 %v1438
  %1498 = vmatpush.msra.mxu0 %v1437
  %1499 = vmatpush.msra.mxu0 %v1436
  %1500 = vmatpush.msra.mxu0 %v1435
  %1501 = vmatpush.msra.mxu0 %v1434
  %1502 = vmatpush.msra.mxu0 %v1433
  %1503 = vmatpush.msra.mxu0 %v1432
  %1504 = vmatpush.msra.mxu0 %v1431
  %1505 = vmatmul.f32.gmra.mxu0 %v1472
  %v1506 = vpop.f32.mrf.mxu0
  %v1507 = vadd.f32 0.0, %v1506
  %1508 = vmatmul.f32.gmra.mxu0 %v1475
  %v1509 = vpop.f32.mrf.mxu0
  %v1510 = vadd.f32 0.0, %v1509
  %1511 = vmatmul.f32.gmra.mxu0 %v1478
  %v1512 = vpop.f32.mrf.mxu0
  %v1513 = vadd.f32 0.0, %v1512
  %1514 = vmatmul.f32.gmra.mxu0 %v1481
  %v1515 = vpop.f32.mrf.mxu0
  %v1516 = vadd.f32 0.0, %v1515
  %1517 = vmatmul.f32.gmra.mxu0 %v1484
  %v1518 = vpop.f32.mrf.mxu0
  %v1519 = vadd.f32 0.0, %v1518
  %1520 = vmatmul.f32.gmra.mxu0 %v1487
  %v1521 = vpop.f32.mrf.mxu0
  %v1522 = vadd.f32 0.0, %v1521
  %1523 = vdwg.mxu0
  %v1524 = vadd.s32 %v359, 16
  %v1525 = vadd.s32 %v359, 32
  %v1526 = vadd.s32 %v359, 48
  %v1527 = vadd.s32 %v359, 64
  %v1528 = vadd.s32 %v359, 80
  %vm1529 = vcmp.eq.s32.totalorder %v69, %v1524
  %vm1530 = vcmp.eq.s32.totalorder %v69, %v1525
  %vm1531 = vcmp.eq.s32.totalorder %v69, %v1526
  %vm1532 = vcmp.eq.s32.totalorder %v69, %v1527
  %vm1533 = vcmp.eq.s32.totalorder %v69, %v1528
  %vm1534 = vmand %vm1529, %vm363
  %vm1535 = vmand %vm1530, %vm363
  %vm1536 = vmand %vm1531, %vm363
  %vm1537 = vmand %vm1532, %vm363
  %vm1538 = vmand %vm1533, %vm363
  %vm1539 = vcmp.lt.s32.totalorder %v359, 16
  %vm1540 = vmand %vm364, %vm1539
  %vm1541 = vmand %vm1534, %vm1539
  %vm1542 = vmand %vm1535, %vm1539
  %vm1543 = vmand %vm1536, %vm1539
  %vm1544 = vmand %vm1537, %vm1539
  %vm1545 = vmand %vm1538, %vm1539
  %v1546 = vsel %vm1540, 1.0, 0.0
  %v1547 = vsel %vm1541, 1.0, 0.0
  %v1548 = vsel %vm1542, 1.0, 0.0
  %v1549 = vsel %vm1543, 1.0, 0.0
  %v1550 = vsel %vm1544, 1.0, 0.0
  %v1551 = vsel %vm1545, 1.0, 0.0
  %v1553 = vsel %vm883, %v1546, 0
  %v1556 = vsel %vm883, %v1547, 0
  %v1559 = vsel %vm883, %v1548, 0
  %v1562 = vsel %vm883, %v1549, 0
  %v1565 = vsel %vm883, %v1550, 0
  %v1568 = vsel %vm883, %v1551, 0
  %1570 = vmatpush.msra.mxu0 0.0
  %1571 = vmatpush.msra.mxu0 0.0
  %1572 = vmatpush.msra.mxu0 0.0
  %1573 = vmatpush.msra.mxu0 0.0
  %1574 = vmatpush.msra.mxu0 %v1442
  %1575 = vmatpush.msra.mxu0 %v1441
  %1576 = vmatpush.msra.mxu0 %v1440
  %1577 = vmatpush.msra.mxu0 %v1439
  %1578 = vmatpush.msra.mxu0 %v1438
  %1579 = vmatpush.msra.mxu0 %v1437
  %1580 = vmatpush.msra.mxu0 %v1436
  %1581 = vmatpush.msra.mxu0 %v1435
  %1582 = vmatpush.msra.mxu0 %v1434
  %1583 = vmatpush.msra.mxu0 %v1433
  %1584 = vmatpush.msra.mxu0 %v1432
  %1585 = vmatpush.msra.mxu0 %v1431
  %1586 = vmatmul.f32.gmra.mxu0 %v1553
  %v1587 = vpop.f32.mrf.mxu0
  %v1588 = vadd.f32 0.0, %v1587
  %1589 = vmatmul.f32.gmra.mxu0 %v1556
  %v1590 = vpop.f32.mrf.mxu0
  %v1591 = vadd.f32 0.0, %v1590
  %1592 = vmatmul.f32.gmra.mxu0 %v1559
  %v1593 = vpop.f32.mrf.mxu0
  %v1594 = vadd.f32 0.0, %v1593
  %1595 = vmatmul.f32.gmra.mxu0 %v1562
  %v1596 = vpop.f32.mrf.mxu0
  %v1597 = vadd.f32 0.0, %v1596
  %1598 = vmatmul.f32.gmra.mxu0 %v1565
  %v1599 = vpop.f32.mrf.mxu0
  %v1600 = vadd.f32 0.0, %v1599
  %1601 = vmatmul.f32.gmra.mxu0 %v1568
  %v1602 = vpop.f32.mrf.mxu0
  %v1603 = vadd.f32 0.0, %v1602
  %1604 = vdwg.mxu0
  %v1605 = vmax.f32 %v1507, %v1588
  %v1606 = vmax.f32 %v1510, %v1591
  %v1607 = vmax.f32 %v1513, %v1594
  %v1608 = vmax.f32 %v1516, %v1597
  %v1609 = vmax.f32 %v1519, %v1600
  %v1610 = vmax.f32 %v1522, %v1603
  %v1611 = vadd.s32 %v124, 24
  %v1612 = vadd.s32 %v124, 40
  %vm1613 = vcmp.eq.s32.totalorder %v69, %v1611
  %vm1614 = vcmp.eq.s32.totalorder %v69, %v1612
  %vm1615 = vmand %vm1613, %vm128
  %vm1616 = vmand %vm1614, %vm128
  %vm1617 = vmand %vm847, %vm131
  %vm1618 = vmand %vm1615, %vm131
  %vm1619 = vmand %vm849, %vm131
  %vm1620 = vmand %vm1616, %vm131
  %v1621 = vsel %vm1617, 1.0, 0.0
  %v1622 = vsel %vm1618, 1.0, 0.0
  %v1623 = vsel %vm1619, 1.0, 0.0
  %v1624 = vsel %vm1620, 1.0, 0.0
  %vm1625 = vcmask 392192
  %v1626 = vsel %vm1625, %v134, 0
  %v1628 = vsel %vm1625, %v135, 0
  %v1631 = vsel %vm1625, %v1621, 0
  %v1634 = vsel %vm1625, %v1622, 0
  %v1637 = vsel %vm1625, %v1623, 0
  %v1640 = vsel %vm1625, %v1624, 0
  %1642 = vmatpush.msra.mxu0 0.0
  %1643 = vmatpush.msra.mxu0 0.0
  %1644 = vmatpush.msra.mxu0 0.0
  %1645 = vmatpush.msra.mxu0 0.0
  %1646 = vmatpush.msra.mxu0 0.0
  %1647 = vmatpush.msra.mxu0 0.0
  %1648 = vmatpush.msra.mxu0 0.0
  %1649 = vmatpush.msra.mxu0 0.0
  %1650 = vmatpush.msra.mxu0 0.0
  %1651 = vmatpush.msra.mxu0 0.0
  %1652 = vmatpush.msra.mxu0 %v1610
  %1653 = vmatpush.msra.mxu0 %v1609
  %1654 = vmatpush.msra.mxu0 %v1608
  %1655 = vmatpush.msra.mxu0 %v1607
  %1656 = vmatpush.msra.mxu0 %v1606
  %1657 = vmatpush.msra.mxu0 %v1605
  %1658 = vmatmul.f32.gmra.mxu0 %v1626
  %v1659 = vpop.f32.mrf.mxu0
  %v1660 = vadd.f32 0.0, %v1659
  %1661 = vmatmul.f32.gmra.mxu0 %v1628
  %v1662 = vpop.f32.mrf.mxu0
  %v1663 = vadd.f32 0.0, %v1662
  %1664 = vmatmul.f32.gmra.mxu0 %v1631
  %v1665 = vpop.f32.mrf.mxu0
  %v1666 = vadd.f32 0.0, %v1665
  %1667 = vmatmul.f32.gmra.mxu0 %v1634
  %v1668 = vpop.f32.mrf.mxu0
  %v1669 = vadd.f32 0.0, %v1668
  %1670 = vmatmul.f32.gmra.mxu0 %v1637
  %v1671 = vpop.f32.mrf.mxu0
  %v1672 = vadd.f32 0.0, %v1671
  %1673 = vmatmul.f32.gmra.mxu0 %v1640
  %v1674 = vpop.f32.mrf.mxu0
  %v1675 = vadd.f32 0.0, %v1674
  %1676 = vdwg.mxu0
  %v1677 = vld [vmem:[%s9] sm:$0xff]
  %v1678 = vld [vmem:[%s9 + $0x8] sm:$0xff]
  %s1679 = scalar_lea.vmem %s9, 16
  %v1680 = vld [vmem:[%s1679] sm:$0xff]
  %v1681 = vld [vmem:[%s1679 + $0x8] sm:$0xff]
  %v1683 = vsel %vm136, %v1605, 0
  %v1686 = vsel %vm136, %v1606, 0
  %v1689 = vsel %vm136, %v1607, 0
  %v1692 = vsel %vm136, %v1608, 0
  %v1695 = vsel %vm136, %v1609, 0
  %v1698 = vsel %vm136, %v1610, 0
  %1700 = vmatpush.msra.mxu0 0.0
  %1701 = vmatpush.msra.mxu0 0.0
  %1702 = vmatpush.msra.mxu0 0.0
  %1703 = vmatpush.msra.mxu0 0.0
  %1704 = vmatpush.msra.mxu0 0.0
  %1705 = vmatpush.msra.mxu0 0.0
  %1706 = vmatpush.msra.mxu0 0.0
  %1707 = vmatpush.msra.mxu0 0.0
  %1708 = vmatpush.msra.mxu0 0.0
  %1709 = vmatpush.msra.mxu0 0.0
  %1710 = vmatpush.msra.mxu0 0.0
  %1711 = vmatpush.msra.mxu0 0.0
  %1712 = vmatpush.msra.mxu0 0.0
  %1713 = vmatpush.msra.mxu0 0.0
  %1714 = vmatpush.msra.mxu0 %v1681
  %1715 = vmatpush.msra.mxu0 %v1680
  %1716 = vmatmul.f32.gmra.mxu0 %v1683
  %v1717 = vpop.f32.mrf.mxu0
  %v1718 = vadd.f32 0.0, %v1717
  %1719 = vmatmul.f32.gmra.mxu0 %v1686
  %v1720 = vpop.f32.mrf.mxu0
  %v1721 = vadd.f32 0.0, %v1720
  %1722 = vmatmul.f32.gmra.mxu0 %v1689
  %v1723 = vpop.f32.mrf.mxu0
  %v1724 = vadd.f32 0.0, %v1723
  %1725 = vmatmul.f32.gmra.mxu0 %v1692
  %v1726 = vpop.f32.mrf.mxu0
  %v1727 = vadd.f32 0.0, %v1726
  %1728 = vmatmul.f32.gmra.mxu0 %v1695
  %v1729 = vpop.f32.mrf.mxu0
  %v1730 = vadd.f32 0.0, %v1729
  %1731 = vmatmul.f32.gmra.mxu0 %v1698
  %v1732 = vpop.f32.mrf.mxu0
  %v1733 = vadd.f32 0.0, %v1732
  %1734 = vdwg.mxu0
  %v1736 = vsel %vm136, %v1660, 0
  %v1739 = vsel %vm136, %v1663, 0
  %v1742 = vsel %vm136, %v1666, 0
  %v1745 = vsel %vm136, %v1669, 0
  %v1748 = vsel %vm136, %v1672, 0
  %v1751 = vsel %vm136, %v1675, 0
  %1753 = vmatpush.msra.mxu0 0.0
  %1754 = vmatpush.msra.mxu0 0.0
  %1755 = vmatpush.msra.mxu0 0.0
  %1756 = vmatpush.msra.mxu0 0.0
  %1757 = vmatpush.msra.mxu0 0.0
  %1758 = vmatpush.msra.mxu0 0.0
  %1759 = vmatpush.msra.mxu0 0.0
  %1760 = vmatpush.msra.mxu0 0.0
  %1761 = vmatpush.msra.mxu0 0.0
  %1762 = vmatpush.msra.mxu0 0.0
  %1763 = vmatpush.msra.mxu0 0.0
  %1764 = vmatpush.msra.mxu0 0.0
  %1765 = vmatpush.msra.mxu0 0.0
  %1766 = vmatpush.msra.mxu0 0.0
  %1767 = vmatpush.msra.mxu0 %v1678
  %1768 = vmatpush.msra.mxu0 %v1677
  %1769 = vmatmul.f32.gmra.mxu0 %v1736
  %v1770 = vpop.f32.mrf.mxu0
  %v1771 = vadd.f32 %v1718, %v1770
  %1772 = vmatmul.f32.gmra.mxu0 %v1739
  %v1773 = vpop.f32.mrf.mxu0
  %v1774 = vadd.f32 %v1721, %v1773
  %1775 = vmatmul.f32.gmra.mxu0 %v1742
  %v1776 = vpop.f32.mrf.mxu0
  %v1777 = vadd.f32 %v1724, %v1776
  %1778 = vmatmul.f32.gmra.mxu0 %v1745
  %v1779 = vpop.f32.mrf.mxu0
  %v1780 = vadd.f32 %v1727, %v1779
  %1781 = vmatmul.f32.gmra.mxu0 %v1748
  %v1782 = vpop.f32.mrf.mxu0
  %v1783 = vadd.f32 %v1730, %v1782
  %1784 = vmatmul.f32.gmra.mxu0 %v1751
  %v1785 = vpop.f32.mrf.mxu0
  %v1786 = vadd.f32 %v1733, %v1785
  %1787 = vdwg.mxu0
  %v1788 = vadd.s32 %v234, 24
  %v1789 = vadd.s32 %v234, 40
  %vm1790 = vcmp.eq.s32.totalorder %v69, %v1788
  %vm1791 = vcmp.eq.s32.totalorder %v69, %v1789
  %vm1792 = vmand %vm1790, %vm238
  %vm1793 = vmand %vm1791, %vm238
  %vm1794 = vmand %vm1184, %vm241
  %vm1795 = vmand %vm1792, %vm241
  %vm1796 = vmand %vm1186, %vm241
  %vm1797 = vmand %vm1793, %vm241
  %v1798 = vsel %vm1794, 1.0, 0.0
  %v1799 = vsel %vm1795, 1.0, 0.0
  %v1800 = vsel %vm1796, 1.0, 0.0
  %v1801 = vsel %vm1797, 1.0, 0.0
  %v1802 = vsel %vm1625, %v244, 0
  %v1804 = vsel %vm1625, %v245, 0
  %v1807 = vsel %vm1625, %v1798, 0
  %v1810 = vsel %vm1625, %v1799, 0
  %v1813 = vsel %vm1625, %v1800, 0
  %v1816 = vsel %vm1625, %v1801, 0
  %1818 = vmatpush.msra.mxu0 0.0
  %1819 = vmatpush.msra.mxu0 0.0
  %1820 = vmatpush.msra.mxu0 0.0
  %1821 = vmatpush.msra.mxu0 0.0
  %1822 = vmatpush.msra.mxu0 0.0
  %1823 = vmatpush.msra.mxu0 0.0
  %1824 = vmatpush.msra.mxu0 0.0
  %1825 = vmatpush.msra.mxu0 0.0
  %1826 = vmatpush.msra.mxu0 0.0
  %1827 = vmatpush.msra.mxu0 0.0
  %1828 = vmatpush.msra.mxu0 %v1610
  %1829 = vmatpush.msra.mxu0 %v1609
  %1830 = vmatpush.msra.mxu0 %v1608
  %1831 = vmatpush.msra.mxu0 %v1607
  %1832 = vmatpush.msra.mxu0 %v1606
  %1833 = vmatpush.msra.mxu0 %v1605
  %1834 = vmatmul.f32.gmra.mxu0 %v1802
  %v1835 = vpop.f32.mrf.mxu0
  %v1836 = vadd.f32 0.0, %v1835
  %1837 = vmatmul.f32.gmra.mxu0 %v1804
  %v1838 = vpop.f32.mrf.mxu0
  %v1839 = vadd.f32 0.0, %v1838
  %1840 = vmatmul.f32.gmra.mxu0 %v1807
  %v1841 = vpop.f32.mrf.mxu0
  %v1842 = vadd.f32 0.0, %v1841
  %1843 = vmatmul.f32.gmra.mxu0 %v1810
  %v1844 = vpop.f32.mrf.mxu0
  %v1845 = vadd.f32 0.0, %v1844
  %1846 = vmatmul.f32.gmra.mxu0 %v1813
  %v1847 = vpop.f32.mrf.mxu0
  %v1848 = vadd.f32 0.0, %v1847
  %1849 = vmatmul.f32.gmra.mxu0 %v1816
  %v1850 = vpop.f32.mrf.mxu0
  %v1851 = vadd.f32 0.0, %v1850
  %1852 = vdwg.mxu0
  %s1853 = scalar_lea.vmem %s9, 32
  %v1854 = vld [vmem:[%s1853] sm:$0xff]
  %v1855 = vld [vmem:[%s1853 + $0x8] sm:$0xff]
  %v1857 = vsel %vm136, %v1836, 0
  %v1860 = vsel %vm136, %v1839, 0
  %v1863 = vsel %vm136, %v1842, 0
  %v1866 = vsel %vm136, %v1845, 0
  %v1869 = vsel %vm136, %v1848, 0
  %v1872 = vsel %vm136, %v1851, 0
  %1874 = vmatpush.msra.mxu0 0.0
  %1875 = vmatpush.msra.mxu0 0.0
  %1876 = vmatpush.msra.mxu0 0.0
  %1877 = vmatpush.msra.mxu0 0.0
  %1878 = vmatpush.msra.mxu0 0.0
  %1879 = vmatpush.msra.mxu0 0.0
  %1880 = vmatpush.msra.mxu0 0.0
  %1881 = vmatpush.msra.mxu0 0.0
  %1882 = vmatpush.msra.mxu0 0.0
  %1883 = vmatpush.msra.mxu0 0.0
  %1884 = vmatpush.msra.mxu0 0.0
  %1885 = vmatpush.msra.mxu0 0.0
  %1886 = vmatpush.msra.mxu0 0.0
  %1887 = vmatpush.msra.mxu0 0.0
  %1888 = vmatpush.msra.mxu0 %v1855
  %1889 = vmatpush.msra.mxu0 %v1854
  %1890 = vmatmul.f32.gmra.mxu0 %v1857
  %v1891 = vpop.f32.mrf.mxu0
  %v1892 = vadd.f32 0.0, %v1891
  %1893 = vmatmul.f32.gmra.mxu0 %v1860
  %v1894 = vpop.f32.mrf.mxu0
  %v1895 = vadd.f32 0.0, %v1894
  %1896 = vmatmul.f32.gmra.mxu0 %v1863
  %v1897 = vpop.f32.mrf.mxu0
  %v1898 = vadd.f32 0.0, %v1897
  %1899 = vmatmul.f32.gmra.mxu0 %v1866
  %v1900 = vpop.f32.mrf.mxu0
  %v1901 = vadd.f32 0.0, %v1900
  %1902 = vmatmul.f32.gmra.mxu0 %v1869
  %v1903 = vpop.f32.mrf.mxu0
  %v1904 = vadd.f32 0.0, %v1903
  %1905 = vmatmul.f32.gmra.mxu0 %v1872
  %v1906 = vpop.f32.mrf.mxu0
  %v1907 = vadd.f32 0.0, %v1906
  %1908 = vdwg.mxu0
  %v1909 = vadd.f32 %v1771, %v1892
  %v1910 = vadd.f32 %v1774, %v1895
  %v1911 = vadd.f32 %v1777, %v1898
  %v1912 = vadd.f32 %v1780, %v1901
  %v1913 = vadd.f32 %v1783, %v1904
  %v1914 = vadd.f32 %v1786, %v1907
  %v1915 = vld [vmem:[%s10] sm:$0x1]
  %v1917 = vperm.slane %v1915, 0
  %v1919 = vadd.f32 %v1909, %v1917
  %v1920 = vadd.f32 %v1910, %v1917
  %v1921 = vadd.f32 %v1911, %v1917
  %v1922 = vadd.f32 %v1912, %v1917
  %v1923 = vadd.f32 %v1913, %v1917
  %v1924 = vadd.f32 %v1914, %v1917
  %v1925 = vmax.f32 %v1919, 0.0
  %v1926 = vmax.f32 %v1920, 0.0
  %v1927 = vmax.f32 %v1921, 0.0
  %v1928 = vmax.f32 %v1922, 0.0
  %v1929 = vmax.f32 %v1923, 0.0
  %v1930 = vmax.f32 %v1924, 0.0
  %v1931 = vadd.s32 %v319, 24
  %v1932 = vadd.s32 %v319, 40
  %vm1933 = vcmp.eq.s32.totalorder %v69, %v1931
  %vm1934 = vcmp.eq.s32.totalorder %v69, %v1932
  %vm1935 = vmand %vm1933, %vm323
  %vm1936 = vmand %vm1934, %vm323
  %vm1937 = vmand %vm1453, %vm326
  %vm1938 = vmand %vm1935, %vm326
  %vm1939 = vmand %vm1454, %vm326
  %vm1940 = vmand %vm1936, %vm326
  %v1941 = vsel %vm1937, 1.0, 0.0
  %v1942 = vsel %vm1938, 1.0, 0.0
  %v1943 = vsel %vm1939, 1.0, 0.0
  %v1944 = vsel %vm1940, 1.0, 0.0
  %1949 = vst [vmem:[#allocation1] ss:$2 sm:$0xff] %v329
  %s1950 = scalar_lea.vmem [#allocation1], 1
  %1951 = vst [vmem:[%s1950] ss:$2 sm:$0xff] %v330
  %s1952 = scalar_lea.vmem [#allocation1], 16
  %1953 = vst [vmem:[%s1952] ss:$2 sm:$0xff] %v1941
  %s1954 = scalar_lea.vmem [#allocation1], 17
  %1955 = vst [vmem:[%s1954] ss:$2 sm:$0xff] %v1942
  %s1956 = scalar_lea.vmem [#allocation1], 32
  %1957 = vst [vmem:[%s1956] ss:$2 sm:$0xff] %v1943
  %s1958 = scalar_lea.vmem [#allocation1], 33
  %1959 = vst [vmem:[%s1958] ss:$2 sm:$0xff] %v1944
  %v1960 = vld.sshfl [vmem:[#allocation1] sm:$0xff pattern:$0x75316420]
  %v1961 = vld.sshfl [vmem:[#allocation1 + $0x10] sm:$0xff pattern:$0x75316420]
  %v1962 = vld.sshfl [vmem:[#allocation1 + $0x20] sm:$0xff pattern:$0x75316420]
  %v1963 = vsel %vm1625, %v1960, 0
  %v1965 = vsel %vm1625, %v1961, 0
  %v1967 = vsel %vm1625, %v1962, 0
  %1969 = vmatpush.msra.mxu0 0.0
  %1970 = vmatpush.msra.mxu0 0.0
  %1971 = vmatpush.msra.mxu0 0.0
  %1972 = vmatpush.msra.mxu0 0.0
  %1973 = vmatpush.msra.mxu0 0.0
  %1974 = vmatpush.msra.mxu0 0.0
  %1975 = vmatpush.msra.mxu0 0.0
  %1976 = vmatpush.msra.mxu0 0.0
  %1977 = vmatpush.msra.mxu0 0.0
  %1978 = vmatpush.msra.mxu0 0.0
  %1979 = vmatpush.msra.mxu0 %v1930
  %1980 = vmatpush.msra.mxu0 %v1929
  %1981 = vmatpush.msra.mxu0 %v1928
  %1982 = vmatpush.msra.mxu0 %v1927
  %1983 = vmatpush.msra.mxu0 %v1926
  %1984 = vmatpush.msra.mxu0 %v1925
  %1985 = vmatmul.f32.gmra.mxu0 %v1963
  %v1986 = vpop.f32.mrf.mxu0
  %v1987 = vadd.f32 0.0, %v1986
  %1988 = vmatmul.f32.gmra.mxu0 %v1965
  %v1989 = vpop.f32.mrf.mxu0
  %v1990 = vadd.f32 0.0, %v1989
  %1991 = vmatmul.f32.gmra.mxu0 %v1967
  %v1992 = vpop.f32.mrf.mxu0
  %v1993 = vadd.f32 0.0, %v1992
  %1994 = vdwg.mxu0
  %v1995 = vadd.s32 %v359, 24
  %v1996 = vadd.s32 %v359, 40
  %vm1997 = vcmp.eq.s32.totalorder %v69, %v1995
  %vm1998 = vcmp.eq.s32.totalorder %v69, %v1996
  %vm1999 = vmand %vm1997, %vm363
  %vm2000 = vmand %vm1998, %vm363
  %vm2001 = vmand %vm1534, %vm366
  %vm2002 = vmand %vm1999, %vm366
  %vm2003 = vmand %vm1535, %vm366
  %vm2004 = vmand %vm2000, %vm366
  %v2005 = vsel %vm2001, 1.0, 0.0
  %v2006 = vsel %vm2002, 1.0, 0.0
  %v2007 = vsel %vm2003, 1.0, 0.0
  %v2008 = vsel %vm2004, 1.0, 0.0
  %2013 = vst [vmem:[#allocation1] ss:$2 sm:$0xff] %v369
  %s2014 = scalar_lea.vmem [#allocation1], 1
  %2015 = vst [vmem:[%s2014] ss:$2 sm:$0xff] %v370
  %s2016 = scalar_lea.vmem [#allocation1], 16
  %2017 = vst [vmem:[%s2016] ss:$2 sm:$0xff] %v2005
  %s2018 = scalar_lea.vmem [#allocation1], 17
  %2019 = vst [vmem:[%s2018] ss:$2 sm:$0xff] %v2006
  %s2020 = scalar_lea.vmem [#allocation1], 32
  %2021 = vst [vmem:[%s2020] ss:$2 sm:$0xff] %v2007
  %s2022 = scalar_lea.vmem [#allocation1], 33
  %2023 = vst [vmem:[%s2022] ss:$2 sm:$0xff] %v2008
  %v2024 = vld.sshfl [vmem:[#allocation1] sm:$0xff pattern:$0x75316420]
  %v2025 = vld.sshfl [vmem:[#allocation1 + $0x10] sm:$0xff pattern:$0x75316420]
  %v2026 = vld.sshfl [vmem:[#allocation1 + $0x20] sm:$0xff pattern:$0x75316420]
  %v2027 = vsel %vm1625, %v2024, 0
  %v2029 = vsel %vm1625, %v2025, 0
  %v2031 = vsel %vm1625, %v2026, 0
  %2033 = vmatpush.msra.mxu0 0.0
  %2034 = vmatpush.msra.mxu0 0.0
  %2035 = vmatpush.msra.mxu0 0.0
  %2036 = vmatpush.msra.mxu0 0.0
  %2037 = vmatpush.msra.mxu0 0.0
  %2038 = vmatpush.msra.mxu0 0.0
  %2039 = vmatpush.msra.mxu0 0.0
  %2040 = vmatpush.msra.mxu0 0.0
  %2041 = vmatpush.msra.mxu0 0.0
  %2042 = vmatpush.msra.mxu0 0.0
  %2043 = vmatpush.msra.mxu0 %v1930
  %2044 = vmatpush.msra.mxu0 %v1929
  %2045 = vmatpush.msra.mxu0 %v1928
  %2046 = vmatpush.msra.mxu0 %v1927
  %2047 = vmatpush.msra.mxu0 %v1926
  %2048 = vmatpush.msra.mxu0 %v1925
  %2049 = vmatmul.f32.gmra.mxu0 %v2027
  %v2050 = vpop.f32.mrf.mxu0
  %v2051 = vadd.f32 0.0, %v2050
  %2052 = vmatmul.f32.gmra.mxu0 %v2029
  %v2053 = vpop.f32.mrf.mxu0
  %v2054 = vadd.f32 0.0, %v2053
  %2055 = vmatmul.f32.gmra.mxu0 %v2031
  %v2056 = vpop.f32.mrf.mxu0
  %v2057 = vadd.f32 0.0, %v2056
  %2058 = vdwg.mxu0
  %v2059 = vmax.f32 %v1987, %v2051
  %v2060 = vmax.f32 %v1990, %v2054
  %v2061 = vmax.f32 %v1993, %v2057
  %v2063 = vrot.slane %v629, 2
  %v2064 = vld [vmem:[%s11] sm:$0xff]
  %v2065 = vld [vmem:[%s11 + $0x8] sm:$0xff]
  %v2066 = vld [vmem:[%s11 + $0x10] sm:$0xff]
  %v2067 = vld [vmem:[%s11 + $0x18] sm:$0xff]
  %v2068 = vperm.slane %v629, 1
  %v2069 = vperm.slane %v2063, 1
  %vm2070 = vcmask 1041409
  %v2071 = vsel %vm2070, %v2069, %v2068
  %v2072 = vsel %vm136, %v2071, 0
  %2074 = vmatpush.msra.mxu0 0.0
  %2075 = vmatpush.msra.mxu0 0.0
  %2076 = vmatpush.msra.mxu0 0.0
  %2077 = vmatpush.msra.mxu0 0.0
  %2078 = vmatpush.msra.mxu0 0.0
  %2079 = vmatpush.msra.mxu0 0.0
  %2080 = vmatpush.msra.mxu0 0.0
  %2081 = vmatpush.msra.mxu0 0.0
  %2082 = vmatpush.msra.mxu0 0.0
  %2083 = vmatpush.msra.mxu0 0.0
  %2084 = vmatpush.msra.mxu0 0.0
  %2085 = vmatpush.msra.mxu0 0.0
  %2086 = vmatpush.msra.mxu0 0.0
  %2087 = vmatpush.msra.mxu0 0.0
  %2088 = vmatpush.msra.mxu0 %v2067
  %2089 = vmatpush.msra.mxu0 %v2066
  %2090 = vmatmul.f32.gmra.mxu0 %v2072
  %v2091 = vpop.f32.mrf.mxu0
  %v2092 = vadd.f32 0.0, %v2091
  %2093 = vdwg.mxu0
  %v2094 = vperm.slane %v629, 0
  %v2095 = vperm.slane %v2063, 0
  %v2096 = vsel %vm2070, %v2095, %v2094
  %v2097 = vsel %vm136, %v2096, 0
  %2099 = vmatpush.msra.mxu0 0.0
  %2100 = vmatpush.msra.mxu0 0.0
  %2101 = vmatpush.msra.mxu0 0.0
  %2102 = vmatpush.msra.mxu0 0.0
  %2103 = vmatpush.msra.mxu0 0.0
  %2104 = vmatpush.msra.mxu0 0.0
  %2105 = vmatpush.msra.mxu0 0.0
  %2106 = vmatpush.msra.mxu0 0.0
  %2107 = vmatpush.msra.mxu0 0.0
  %2108 = vmatpush.msra.mxu0 0.0
  %2109 = vmatpush.msra.mxu0 0.0
  %2110 = vmatpush.msra.mxu0 0.0
  %2111 = vmatpush.msra.mxu0 0.0
  %2112 = vmatpush.msra.mxu0 0.0
  %2113 = vmatpush.msra.mxu0 %v2065
  %2114 = vmatpush.msra.mxu0 %v2064
  %2115 = vmatmul.f32.gmra.mxu0 %v2097
  %v2116 = vpop.f32.mrf.mxu0
  %v2117 = vadd.f32 %v2092, %v2116
  %2118 = vdwg.mxu0
  %v2119 = vld [vmem:[%s13] sm:$0x1]
  %v2121 = vperm.slane %v2119, 0
  %v2123 = vadd.f32 %v2117, %v2121
  %v2127 = vrot.slane %v2059, 4
  %v2128 = vrot.slane %v2060, 4
  %v2129 = vrot.slane %v2061, 4
  %v2130 = vld [vmem:[%s12] sm:$0xff]
  %v2131 = vld [vmem:[%s12 + $0x8] sm:$0xff]
  %v2132 = vld [vmem:[%s12 + $0x10] sm:$0xff]
  %v2133 = vld [vmem:[%s12 + $0x18] sm:$0xff]
  %v2134 = vperm.slane %v2059, 1
  %v2135 = vperm.slane %v2127, 1
  %v2136 = vperm.slane %v2060, 1
  %v2137 = vperm.slane %v2128, 1
  %v2138 = vperm.slane %v2061, 1
  %v2139 = vperm.slane %v2129, 1
  %v2140 = vsel %vm2070, %v2135, %v2134
  %vm2141 = vcmask 1042434
  %v2142 = vsel %vm2141, %v2136, %v2140
  %vm2143 = vcmask 1043459
  %v2144 = vsel %vm2143, %v2137, %v2142
  %vm2145 = vcmask 1044484
  %v2146 = vsel %vm2145, %v2138, %v2144
  %vm2147 = vcmask 1045509
  %v2148 = vsel %vm2147, %v2139, %v2146
  %v2149 = vsel %vm136, %v2148, 0
  %2151 = vmatpush.msra.mxu0 0.0
  %2152 = vmatpush.msra.mxu0 0.0
  %2153 = vmatpush.msra.mxu0 0.0
  %2154 = vmatpush.msra.mxu0 0.0
  %2155 = vmatpush.msra.mxu0 0.0
  %2156 = vmatpush.msra.mxu0 0.0
  %2157 = vmatpush.msra.mxu0 0.0
  %2158 = vmatpush.msra.mxu0 0.0
  %2159 = vmatpush.msra.mxu0 0.0
  %2160 = vmatpush.msra.mxu0 0.0
  %2161 = vmatpush.msra.mxu0 0.0
  %2162 = vmatpush.msra.mxu0 0.0
  %2163 = vmatpush.msra.mxu0 0.0
  %2164 = vmatpush.msra.mxu0 0.0
  %2165 = vmatpush.msra.mxu0 %v2133
  %2166 = vmatpush.msra.mxu0 %v2132
  %2167 = vmatmul.f32.gmra.mxu0 %v2149
  %v2168 = vpop.f32.mrf.mxu0
  %v2169 = vadd.f32 0.0, %v2168
  %2170 = vdwg.mxu0
  %v2171 = vperm.slane %v2059, 0
  %v2172 = vperm.slane %v2127, 0
  %v2173 = vperm.slane %v2060, 0
  %v2174 = vperm.slane %v2128, 0
  %v2175 = vperm.slane %v2061, 0
  %v2176 = vperm.slane %v2129, 0
  %v2177 = vsel %vm2070, %v2172, %v2171
  %v2178 = vsel %vm2141, %v2173, %v2177
  %v2179 = vsel %vm2143, %v2174, %v2178
  %v2180 = vsel %vm2145, %v2175, %v2179
  %v2181 = vsel %vm2147, %v2176, %v2180
  %v2182 = vsel %vm136, %v2181, 0
  %2184 = vmatpush.msra.mxu0 0.0
  %2185 = vmatpush.msra.mxu0 0.0
  %2186 = vmatpush.msra.mxu0 0.0
  %2187 = vmatpush.msra.mxu0 0.0
  %2188 = vmatpush.msra.mxu0 0.0
  %2189 = vmatpush.msra.mxu0 0.0
  %2190 = vmatpush.msra.mxu0 0.0
  %2191 = vmatpush.msra.mxu0 0.0
  %2192 = vmatpush.msra.mxu0 0.0
  %2193 = vmatpush.msra.mxu0 0.0
  %2194 = vmatpush.msra.mxu0 0.0
  %2195 = vmatpush.msra.mxu0 0.0
  %2196 = vmatpush.msra.mxu0 0.0
  %2197 = vmatpush.msra.mxu0 0.0
  %2198 = vmatpush.msra.mxu0 %v2131
  %2199 = vmatpush.msra.mxu0 %v2130
  %2200 = vmatmul.f32.gmra.mxu0 %v2182
  %v2201 = vpop.f32.mrf.mxu0
  %v2202 = vadd.f32 %v2169, %v2201
  %2203 = vdwg.mxu0
  %v2204 = vld [vmem:[%s12 + $0x20] sm:$0xff]
  %v2205 = vld [vmem:[%s12 + $0x28] sm:$0xff]
  %v2206 = vperm.slane %v2059, 2
  %v2207 = vperm.slane %v2127, 2
  %v2208 = vperm.slane %v2060, 2
  %v2209 = vperm.slane %v2128, 2
  %v2210 = vperm.slane %v2061, 2
  %v2211 = vperm.slane %v2129, 2
  %v2212 = vsel %vm2070, %v2207, %v2206
  %v2213 = vsel %vm2141, %v2208, %v2212
  %v2214 = vsel %vm2143, %v2209, %v2213
  %v2215 = vsel %vm2145, %v2210, %v2214
  %v2216 = vsel %vm2147, %v2211, %v2215
  %v2217 = vsel %vm136, %v2216, 0
  %2219 = vmatpush.msra.mxu0 0.0
  %2220 = vmatpush.msra.mxu0 0.0
  %2221 = vmatpush.msra.mxu0 0.0
  %2222 = vmatpush.msra.mxu0 0.0
  %2223 = vmatpush.msra.mxu0 0.0
  %2224 = vmatpush.msra.mxu0 0.0
  %2225 = vmatpush.msra.mxu0 0.0
  %2226 = vmatpush.msra.mxu0 0.0
  %2227 = vmatpush.msra.mxu0 0.0
  %2228 = vmatpush.msra.mxu0 0.0
  %2229 = vmatpush.msra.mxu0 0.0
  %2230 = vmatpush.msra.mxu0 0.0
  %2231 = vmatpush.msra.mxu0 0.0
  %2232 = vmatpush.msra.mxu0 0.0
  %2233 = vmatpush.msra.mxu0 %v2205
  %2234 = vmatpush.msra.mxu0 %v2204
  %2235 = vmatmul.f32.gmra.mxu0 %v2217
  %v2236 = vpop.f32.mrf.mxu0
  %v2237 = vadd.f32 0.0, %v2236
  %2238 = vdwg.mxu0
  %v2239 = vadd.f32 %v2202, %v2237
  %v2240 = vld [vmem:[%s12 + $0x30] sm:$0xff]
  %v2241 = vld [vmem:[%s12 + $0x38] sm:$0xff]
  %v2242 = vperm.slane %v2059, 3
  %v2243 = vperm.slane %v2127, 3
  %v2244 = vperm.slane %v2060, 3
  %v2245 = vperm.slane %v2128, 3
  %v2246 = vperm.slane %v2061, 3
  %v2247 = vperm.slane %v2129, 3
  %v2248 = vsel %vm2070, %v2243, %v2242
  %v2249 = vsel %vm2141, %v2244, %v2248
  %v2250 = vsel %vm2143, %v2245, %v2249
  %v2251 = vsel %vm2145, %v2246, %v2250
  %v2252 = vsel %vm2147, %v2247, %v2251
  %v2253 = vsel %vm136, %v2252, 0
  %2255 = vmatpush.msra.mxu0 0.0
  %2256 = vmatpush.msra.mxu0 0.0
  %2257 = vmatpush.msra.mxu0 0.0
  %2258 = vmatpush.msra.mxu0 0.0
  %2259 = vmatpush.msra.mxu0 0.0
  %2260 = vmatpush.msra.mxu0 0.0
  %2261 = vmatpush.msra.mxu0 0.0
  %2262 = vmatpush.msra.mxu0 0.0
  %2263 = vmatpush.msra.mxu0 0.0
  %2264 = vmatpush.msra.mxu0 0.0
  %2265 = vmatpush.msra.mxu0 0.0
  %2266 = vmatpush.msra.mxu0 0.0
  %2267 = vmatpush.msra.mxu0 0.0
  %2268 = vmatpush.msra.mxu0 0.0
  %2269 = vmatpush.msra.mxu0 %v2241
  %2270 = vmatpush.msra.mxu0 %v2240
  %2271 = vmatmul.f32.gmra.mxu0 %v2253
  %v2272 = vpop.f32.mrf.mxu0
  %v2273 = vadd.f32 0.0, %v2272
  %2274 = vdwg.mxu0
  %v2275 = vadd.f32 %v2239, %v2273
  %v2277 = vrot.slane %v2123, 1
  %v2278 = vperm.slane %v2123, 0
  %v2279 = vperm.slane %v2277, 0
  %v2280 = vrot.slane %v2278, 1
  %v2281 = vrot.slane %v2278, 2
  %v2282 = vrot.slane %v2279, 1
  %v2283 = vrot.slane %v2279, 2
  %2284 = vst [vmem:[#allocation1] ss:$9 sm:$0xff] %v2278
  %s2285 = scalar_lea.vmem [#allocation1], 1
  %2286 = vst [vmem:[%s2285] ss:$9 sm:$0xff] %v2280
  %s2287 = scalar_lea.vmem [#allocation1], 2
  %2288 = vst [vmem:[%s2287] ss:$9 sm:$0xff] %v2281
  %s2289 = scalar_lea.vmem [#allocation1], 3
  %2290 = vst [vmem:[%s2289] ss:$9 sm:$0xff] %v2279
  %s2291 = scalar_lea.vmem [#allocation1], 4
  %2292 = vst [vmem:[%s2291] ss:$9 sm:$0xff] %v2282
  %s2293 = scalar_lea.vmem [#allocation1], 5
  %2294 = vst [vmem:[%s2293] ss:$9 sm:$0xff] %v2283
  %v2295 = vld [vmem:[#allocation1] sm:$0xff]
  %v2297 = vadd.f32 %v2275, %v2295
  %v2298 = vld [vmem:[%s14] sm:$0xff]
  %v2299 = vld [vmem:[%s14 + $0x8] sm:$0xff]
  %v2300 = vld [vmem:[%s14 + $0x10] sm:$0xff]
  %v2301 = vld [vmem:[%s14 + $0x18] sm:$0xff]
  %v2302 = vld [vmem:[%s14 + $0x20] sm:$0xff]
  %v2303 = vld [vmem:[%s14 + $0x28] sm:$0xff]
  %s2304 = sld [smem:[#allocation2]]
  %v2305 = vstv %s2304
  %v2307 = vsel %vm1625, %v2297, 0
  %2309 = vmatpush.msra.mxu0 0.0
  %2310 = vmatpush.msra.mxu0 0.0
  %2311 = vmatpush.msra.mxu0 0.0
  %2312 = vmatpush.msra.mxu0 0.0
  %2313 = vmatpush.msra.mxu0 0.0
  %2314 = vmatpush.msra.mxu0 0.0
  %2315 = vmatpush.msra.mxu0 0.0
  %2316 = vmatpush.msra.mxu0 0.0
  %2317 = vmatpush.msra.mxu0 0.0
  %2318 = vmatpush.msra.mxu0 0.0
  %2319 = vmatpush.msra.mxu0 %v2303
  %2320 = vmatpush.msra.mxu0 %v2302
  %2321 = vmatpush.msra.mxu0 %v2301
  %2322 = vmatpush.msra.mxu0 %v2300
  %2323 = vmatpush.msra.mxu0 %v2299
  %2324 = vmatpush.msra.mxu0 %v2298
  %2325 = vmatmul.f32.gmra.mxu0 %v2307
  %v2326 = vpop.f32.mrf.mxu0
  %v2327 = vadd.f32 %v2305, %v2326
  %2328 = vdwg.mxu0
  %vm2329 = vcmask 5120
  %2330 = vst.msk [vmem:[%s16] sm:$0x3f] %vm2329, %v2327
  // Predicated region
  $region66: #{tpu_custom_call.1} parent=0 // pred_check
    _
  $region67: #{tpu_custom_call.1} parent=0 // pred_check_branch
    %2332 = sbr.rel (0) target = $region69
  $region68: #{tpu_custom_call.1} parent=0 // pred_region
    _
  $region69: #{tpu_custom_call.1} parent=0 // pred_fallthru
    _
  // Predicated region
  $region70: #{tpu_custom_call.1} parent=0 // pred_check
    _
  $region71: #{tpu_custom_call.1} parent=0 // pred_check_branch
    %2334 = sbr.rel (0) target = $region73
  $region72: #{tpu_custom_call.1} parent=0 // pred_region
    _
  $region73: #{tpu_custom_call.1} parent=0 // pred_fallthru
    _

</llo_original>
